<compile_context>
chip_gen: v5e
topology: v5e:2x2
jax: 0.10.0
libtpu: 0.0.40
codegen_flags: <defaults>
</compile_context>

<pallas_src>
import functools
import math

import jax
import jax.numpy as jnp
from jax.experimental import pallas as pl
from jax.experimental.pallas import tpu as pltpu

LN_EPS_BERT = 1e-12      # layernorm eps inside the (synthesized) transformer
CLS_LN_EPS = 1e-12       # config.classifier_layer_norm_eps
_LANE = 128


# ----------------------------- in-kernel helpers -----------------------------

def _layernorm(x, eps, gamma=None, beta=None):
    """LayerNorm over the last dim (biased variance, eps inside sqrt), f32."""
    x = x.astype(jnp.float32)
    mean = jnp.mean(x, axis=-1, keepdims=True)
    var = jnp.mean((x - mean) ** 2, axis=-1, keepdims=True)
    y = (x - mean) * jax.lax.rsqrt(var + eps)
    if gamma is not None:
        y = y * gamma
    if beta is not None:
        y = y + beta
    return y


def _erf(x):
    """erf via Abramowitz & Stegun 7.1.26 (max abs err ~1.5e-7).

    Uses only exp + polynomials (EUP/VPU) so it does not depend on a lax.erf
    Mosaic lowering.
    """
    a1, a2, a3, a4, a5 = (0.254829592, -0.284496736, 1.421413741,
                          -1.453152027, 1.061405429)
    pc = 0.3275911
    sgn = jnp.where(x >= 0.0, 1.0, -1.0)
    ax = jnp.abs(x)
    t = 1.0 / (1.0 + pc * ax)
    poly = ((((a5 * t + a4) * t + a3) * t + a2) * t + a1) * t
    return sgn * (1.0 - poly * jnp.exp(-ax * ax))


def _gelu_exact(x):
    """Exact (erf-based) GELU, matching torch.nn.GELU() default (head only)."""
    return 0.5 * x * (1.0 + _erf(x * 0.7071067811865476))


_SQRT_2_OVER_PI = 0.7978845608028654


def _gelu_tanh(x):
    """tanh-approx GELU (EUP slot) for the synthesized encoder FFN."""
    return 0.5 * x * (1.0 + jnp.tanh(_SQRT_2_OVER_PI * (x + 0.044715 * x * x * x)))


# --------------------------- fused forward kernel ----------------------------

def fused_kernel(ids_ref,                       # SMEM (B*S,) int32 (scalar prefetch)
                 tok_emb_hbm,                   # HBM  (V, H) f32   (pl.ANY)
                 pos_ref,                       # VMEM (S, H) f32
                 maskb_ref,                     # VMEM (B_TILE, 1, S) f32 additive bias
                 wq_ref, bq_ref, wk_ref, bk_ref, wv_ref, bv_ref, wo_ref, bo_ref,
                 g1_ref, be1_ref, wf1_ref, bf1_ref, wf2_ref, bf2_ref,
                 g2_ref, be2_ref,
                 cw1_ref, cb1_ref, cw2_ref, cb2_ref,
                 o_ref,                         # VMEM (B_TILE, 1, LP) f32
                 x_buf,                         # VMEM (B_TILE*S, H) f32 scratch
                 dma_sems,                      # DMA sems (ring,)
                 *, ring):
    bt, _, s = maskb_ref.shape
    h = pos_ref.shape[-1]
    n_rows = bt * s
    b0s = pl.program_id(0) * n_rows             # first flattened row of this tile

    # ---- token-embedding gather: bounded ring of per-row DMAs ---------------
    def _issue(row):
        tid = ids_ref[b0s + row]
        pltpu.make_async_copy(tok_emb_hbm.at[pl.ds(tid, 1), :],
                              x_buf.at[pl.ds(row, 1), :],
                              dma_sems.at[row % ring]).start()

    @pl.loop(0, ring)                            # prime `ring` copies in flight
    def _prime(row):
        _issue(row)

    @pl.loop(0, n_rows)                          # wait row, then reuse its slot
    def _gather(row):
        tid = ids_ref[b0s + row]                 # same descriptor as the start
        pltpu.make_async_copy(tok_emb_hbm.at[pl.ds(tid, 1), :],
                              x_buf.at[pl.ds(row, 1), :],
                              dma_sems.at[row % ring]).wait()

        @pl.when(row + ring < n_rows)
        def _():
            _issue(row + ring)

    # ---- embeddings = token + position (f32) --------------------------------
    x3 = x_buf[...].reshape(bt, s, h) + pos_ref[...][None, :, :]   # (bt, s, h)
    x2_bf = x3.reshape(n_rows, h).astype(jnp.bfloat16)
    x_cls = x3[:, 0, :]                                            # (bt, h) f32

    # ---- single-head attention: K/V over all tokens, Q on CLS rows only -----
    k = jnp.dot(x2_bf, wk_ref[...], preferred_element_type=jnp.float32) + bk_ref[...]
    v = jnp.dot(x2_bf, wv_ref[...], preferred_element_type=jnp.float32) + bv_ref[...]
    # 1/sqrt(h) is folded into wq at parameter-prep time.
    q = jnp.dot(x_cls.astype(jnp.bfloat16), wq_ref[...],
                preferred_element_type=jnp.float32) + bq_ref[...]  # (bt, h)

    kf = k.reshape(bt, s, h)
    vf = v.reshape(bt, s, h)
    scores = jnp.sum(q[:, None, :] * kf, axis=-1)                  # (bt, s) f32
    scores = scores + maskb_ref[...].reshape(bt, s)
    scores = scores - jnp.max(scores, axis=-1, keepdims=True)
    p = jnp.exp(scores)
    p = p / jnp.sum(p, axis=-1, keepdims=True)                     # exact softmax
    ctx = jnp.sum(p[:, :, None] * vf, axis=1)                      # (bt, h) f32

    attn = jnp.dot(ctx.astype(jnp.bfloat16), wo_ref[...],
                   preferred_element_type=jnp.float32) + bo_ref[...]
    x1 = _layernorm(x_cls + attn, LN_EPS_BERT, g1_ref[...], be1_ref[...])  # (bt, h)

    # ---- FFN (CLS rows only) -------------------------------------------------
    ff = jnp.dot(x1.astype(jnp.bfloat16), wf1_ref[...],
                 preferred_element_type=jnp.float32) + bf1_ref[...]
    ff = _gelu_tanh(ff)
    ff = jnp.dot(ff.astype(jnp.bfloat16), wf2_ref[...],
                 preferred_element_type=jnp.float32) + bf2_ref[...]
    y = _layernorm(x1 + ff, LN_EPS_BERT, g2_ref[...], be2_ref[...])        # (bt, h)

    # ---- classifier-head epilogue --------------------------------------------
    xn = _layernorm(y, CLS_LN_EPS)               # LayerNorm, elementwise_affine=False
    hd = jnp.dot(xn.astype(jnp.bfloat16), cw1_ref[...],
                 preferred_element_type=jnp.float32) + cb1_ref[...]
    hd = _gelu_exact(hd)
    hn = _layernorm(hd, CLS_LN_EPS)              # second LayerNorm, no affine
    # nn.Dropout(classifier_dropout) is identity at inference.
    logits = jnp.dot(hn.astype(jnp.bfloat16), cw2_ref[...],
                     preferred_element_type=jnp.float32) + cb2_ref[...]    # (bt, LP)
    o_ref[...] = logits[:, None, :]              # (bt, 1, LP) lane-dense store


# ------------------------------- full forward --------------------------------

def model_forward(input_ids, attention_mask, params, *, b_tile=2):
    """input_ids: int32[B,S]; attention_mask: int[B,S] (1=token, 0=pad)."""
    B, S = input_ids.shape
    assert B % b_tile == 0, (B, b_tile)
    H = params["pos_emb"].shape[-1]
    L = params["cw2"].shape[-1]
    LP = ((L + _LANE - 1) // _LANE) * _LANE      # lane-dense padded logits width

    pos = params["pos_emb"][:S]
    # additive mask bias precomputed once, shaped (B, 1, S) for broadcast
    mask_bias = jnp.where(attention_mask > 0, 0.0, -1e30).astype(jnp.float32)
    mask_bias = mask_bias.reshape(B, 1, S)
    # flatten ids to 1D for SMEM scalar prefetch (no sublane padding)
    ids_flat = input_ids.reshape(-1).astype(jnp.int32)

    # fold the 1/sqrt(H) attention scale into wq once
    scale = 1.0 / math.sqrt(H)
    wq_s = (params["wq"].astype(jnp.float32) * scale).astype(params["wq"].dtype)
    # pad final Linear to a lane-dense output width (extra columns are zero)
    cw2_p = jnp.zeros((H, LP), params["cw2"].dtype).at[:, :L].set(params["cw2"])
    cb2_p = jnp.zeros((1, LP), jnp.float32).at[:, :L].set(params["cb2"])

    weights = [wq_s, params["bq"], params["wk"], params["bk"],
               params["wv"], params["bv"], params["wo"], params["bo"],
               params["g1"], params["be1"], params["wf1"], params["bf1"],
               params["wf2"], params["bf2"], params["g2"], params["be2"],
               params["cw1"], params["cb1"], cw2_p, cb2_p]

    n_rows = b_tile * S
    ring = min(8, n_rows)                        # bounded DMA-semaphore ring

    def run(single_buffer):
        pm = pl.Buffered(1) if single_buffer else None

        def const_spec(shape):
            nd = len(shape)

            def idx(b, ids):                     # grid-invariant block
                return (0,) * nd

            if pm is not None:
                return pl.BlockSpec(shape, idx, pipeline_mode=pm)
            return pl.BlockSpec(shape, idx)

        if pm is not None:
            pos_spec = pl.BlockSpec((S, H), lambda b, ids: (0, 0), pipeline_mode=pm)
        else:
            pos_spec = pl.BlockSpec((S, H), lambda b, ids: (0, 0))

        grid_spec = pltpu.PrefetchScalarGridSpec(
            num_scalar_prefetch=1,               # flattened input_ids -> SMEM
            grid=(B // b_tile,),
            in_specs=[
                pl.BlockSpec(memory_space=pl.ANY),                      # tok_emb HBM
                pos_spec,                                               # pos_emb
                pl.BlockSpec((b_tile, 1, S), lambda b, ids: (b, 0, 0)), # mask bias
            ] + [const_spec(w.shape) for w in weights],
            out_specs=pl.BlockSpec((b_tile, 1, LP), lambda b, ids: (b, 0, 0)),
            scratch_shapes=[
                pltpu.VMEM((n_rows, H), jnp.float32),                   # embedding buf
                pltpu.SemaphoreType.DMA((ring,)),                       # gather ring
            ],
        )

        return pl.pallas_call(
            functools.partial(fused_kernel, ring=ring),
            out_shape=jax.ShapeDtypeStruct((B, 1, LP), jnp.float32),
            grid_spec=grid_spec,
            compiler_params=pltpu.CompilerParams(
                dimension_semantics=("parallel",),    # batch blocks shard across TCs
                vmem_limit_bytes=48 * 1024 * 1024,    # < 64 MiB: headroom on v7x
            ),
        )(ids_flat, params["tok_emb"], pos, mask_bias, *weights)

    try:
        out = run(True)                          # single-buffered weights (Buffered(1))
    except Exception:                            # pragma: no cover
        # Fallback for JAX versions without BlockSpec.pipeline_mode support.
        out = run(False)

    return out[:, 0, :L]                         # (B, L) logits


# --------------------------------- params -------------------------------------

def init_params(key, V, S_max, H, F, L):
    ks = jax.random.split(key, 10)
    std = 0.02

    def w(k, shape):  # matmul weights stored in bf16 (halves DMA + VMEM)
        return (std * jax.random.normal(k, shape, jnp.float32)).astype(jnp.bfloat16)

    return {
        # embeddings (f32)
        "tok_emb": std * jax.random.normal(ks[0], (V, H), jnp.float32),
        "pos_emb": std * jax.random.normal(ks[1], (S_max, H), jnp.float32),
        # attention
        "wq": w(ks[2], (H, H)), "wk": w(ks[3], (H, H)),
        "wv": w(ks[4], (H, H)), "wo": w(ks[5], (H, H)),
        "bq": jnp.zeros((1, H), jnp.float32), "bk": jnp.zeros((1, H), jnp.float32),
        "bv": jnp.zeros((1, H), jnp.float32), "bo": jnp.zeros((1, H), jnp.float32),
        "g1": jnp.ones((1, H), jnp.float32), "be1": jnp.zeros((1, H), jnp.float32),
        # FFN
        "wf1": w(ks[6], (H, F)), "bf1": jnp.zeros((1, F), jnp.float32),
        "wf2": w(ks[7], (F, H)), "bf2": jnp.zeros((1, H), jnp.float32),
        "g2": jnp.ones((1, H), jnp.float32), "be2": jnp.zeros((1, H), jnp.float32),
        # classifier head: Linear(H,H), Linear(H,L)
        "cw1": w(ks[8], (H, H)), "cb1": jnp.zeros((1, H), jnp.float32),
        "cw2": w(ks[9], (H, L)), "cb2": jnp.zeros((1, L), jnp.float32),
    }


# ---------------------------------- main ---------------------------------------

if __name__ == "__main__":
    # lane/sublane-aligned small config: H, F multiples of 128; S multiple of 8
    B, S, H, F, V, L = 4, 8, 128, 256, 64, 3
    B_TILE = 2

    key = jax.random.PRNGKey(0)
    k_ids, k_params = jax.random.split(key)

    input_ids = jax.random.randint(k_ids, (B, S), 0, V, dtype=jnp.int32)
    lengths = jnp.array([S, 5, S, 3], dtype=jnp.int32)        # padded examples
    attention_mask = (jnp.arange(S)[None, :] < lengths[:, None]).astype(jnp.int32)

    params = init_params(k_params, V, S, H, F, L)

    logits = model_forward(input_ids, attention_mask, params, b_tile=B_TILE)
    jax.block_until_ready(logits)
    assert logits.shape == (B, L), logits.shape
    assert bool(jnp.all(jnp.isfinite(logits))), "non-finite logits"
    print("KERNEL_OK")
</pallas_src>

<mosaic_0001>
module attributes {stable_mosaic.version = 11 : i64} {
  func.func @fused_kernel(%arg0: i32, %arg1: memref<32xi32, #tpu.memory_space<smem>>, %arg2: memref<64x128xf32, #tpu.memory_space<any>>, %arg3: memref<8x128xf32, #tpu.memory_space<vmem>>, %arg4: memref<2x1x8xf32, #tpu.memory_space<vmem>>, %arg5: memref<128x128xbf16, #tpu.memory_space<vmem>>, %arg6: memref<1x128xf32, #tpu.memory_space<vmem>>, %arg7: memref<128x128xbf16, #tpu.memory_space<vmem>>, %arg8: memref<1x128xf32, #tpu.memory_space<vmem>>, %arg9: memref<128x128xbf16, #tpu.memory_space<vmem>>, %arg10: memref<1x128xf32, #tpu.memory_space<vmem>>, %arg11: memref<128x128xbf16, #tpu.memory_space<vmem>>, %arg12: memref<1x128xf32, #tpu.memory_space<vmem>>, %arg13: memref<1x128xf32, #tpu.memory_space<vmem>>, %arg14: memref<1x128xf32, #tpu.memory_space<vmem>>, %arg15: memref<128x256xbf16, #tpu.memory_space<vmem>>, %arg16: memref<1x256xf32, #tpu.memory_space<vmem>>, %arg17: memref<256x128xbf16, #tpu.memory_space<vmem>>, %arg18: memref<1x128xf32, #tpu.memory_space<vmem>>, %arg19: memref<1x128xf32, #tpu.memory_space<vmem>>, %arg20: memref<1x128xf32, #tpu.memory_space<vmem>>, %arg21: memref<128x128xbf16, #tpu.memory_space<vmem>>, %arg22: memref<1x128xf32, #tpu.memory_space<vmem>>, %arg23: memref<128x128xbf16, #tpu.memory_space<vmem>>, %arg24: memref<1x128xf32, #tpu.memory_space<vmem>>, %arg25: memref<2x1x128xf32, #tpu.memory_space<vmem>>, %arg26: memref<16x128xf32, #tpu.memory_space<vmem>>, %arg27: memref<8x!tpu.dma_semaphore, #tpu.memory_space<semaphore_mem>>) attributes {dimension_semantics = [#tpu.dimension_semantics<parallel>], iteration_bounds = array<i64: 2>, scalar_prefetch = 1 : i64, scratch_operands = 2 : i64, tpu.core_type = #tpu.core_type<tc>, window_params = [{}, {pipeline_mode = #tpu.pipeline_mode<synchronous>, transform_indices = @transform_1, window_bounds = array<i64: 8, 128>}, {transform_indices = @transform_2, window_bounds = array<i64: 2, 1, 8>}, {pipeline_mode = #tpu.pipeline_mode<synchronous>, transform_indices = @transform_3, window_bounds = array<i64: 128, 128>}, {pipeline_mode = #tpu.pipeline_mode<synchronous>, transform_indices = @transform_4, window_bounds = array<i64: 1, 128>}, {pipeline_mode = #tpu.pipeline_mode<synchronous>, transform_indices = @transform_5, window_bounds = array<i64: 128, 128>}, {pipeline_mode = #tpu.pipeline_mode<synchronous>, transform_indices = @transform_6, window_bounds = array<i64: 1, 128>}, {pipeline_mode = #tpu.pipeline_mode<synchronous>, transform_indices = @transform_7, window_bounds = array<i64: 128, 128>}, {pipeline_mode = #tpu.pipeline_mode<synchronous>, transform_indices = @transform_8, window_bounds = array<i64: 1, 128>}, {pipeline_mode = #tpu.pipeline_mode<synchronous>, transform_indices = @transform_9, window_bounds = array<i64: 128, 128>}, {pipeline_mode = #tpu.pipeline_mode<synchronous>, transform_indices = @transform_10, window_bounds = array<i64: 1, 128>}, {pipeline_mode = #tpu.pipeline_mode<synchronous>, transform_indices = @transform_11, window_bounds = array<i64: 1, 128>}, {pipeline_mode = #tpu.pipeline_mode<synchronous>, transform_indices = @transform_12, window_bounds = array<i64: 1, 128>}, {pipeline_mode = #tpu.pipeline_mode<synchronous>, transform_indices = @transform_13, window_bounds = array<i64: 128, 256>}, {pipeline_mode = #tpu.pipeline_mode<synchronous>, transform_indices = @transform_14, window_bounds = array<i64: 1, 256>}, {pipeline_mode = #tpu.pipeline_mode<synchronous>, transform_indices = @transform_15, window_bounds = array<i64: 256, 128>}, {pipeline_mode = #tpu.pipeline_mode<synchronous>, transform_indices = @transform_16, window_bounds = array<i64: 1, 128>}, {pipeline_mode = #tpu.pipeline_mode<synchronous>, transform_indices = @transform_17, window_bounds = array<i64: 1, 128>}, {pipeline_mode = #tpu.pipeline_mode<synchronous>, transform_indices = @transform_18, window_bounds = array<i64: 1, 128>}, {pipeline_mode = #tpu.pipeline_mode<synchronous>, transform_indices = @transform_19, window_bounds = array<i64: 128, 128>}, {pipeline_mode = #tpu.pipeline_mode<synchronous>, transform_indices = @transform_20, window_bounds = array<i64: 1, 128>}, {pipeline_mode = #tpu.pipeline_mode<synchronous>, transform_indices = @transform_21, window_bounds = array<i64: 128, 128>}, {pipeline_mode = #tpu.pipeline_mode<synchronous>, transform_indices = @transform_22, window_bounds = array<i64: 1, 128>}, {transform_indices = @transform_23, window_bounds = array<i64: 2, 1, 128>}]} {
    %c16_i32 = arith.constant 16 : i32
    %0 = arith.muli %arg0, %c16_i32 : i32
    %c0_i32 = arith.constant 0 : i32
    %c8_i32 = arith.constant 8 : i32
    %1 = arith.addi %c0_i32, %c8_i32 : i32
    %c1_i32 = arith.constant 1 : i32
    scf.for %arg28 = %c0_i32 to %1 step %c1_i32  : i32 {
      %c1_i32_105 = arith.constant 1 : i32
      %223 = arith.muli %arg28, %c1_i32_105 : i32
      %c0_i32_106 = arith.constant 0 : i32
      %224 = arith.addi %c0_i32_106, %223 : i32
      %225 = arith.addi %0, %224 : i32
      %226 = arith.index_cast %225 : i32 to index
      %227 = memref.load %arg1[%226] : memref<32xi32, #tpu.memory_space<smem>>
      %c8_i32_107 = arith.constant 8 : i32
      %c0_i32_108 = arith.constant 0 : i32
      %228 = arith.cmpi eq, %c8_i32_107, %c0_i32_108 : i32
      %c1_i32_109 = arith.constant 1 : i32
      %229 = arith.select %228, %c1_i32_109, %c8_i32_107 : i32
      %230 = arith.remsi %224, %229 : i32
      %c0_i32_110 = arith.constant 0 : i32
      %231 = arith.cmpi ne, %230, %c0_i32_110 : i32
      %c0_i32_111 = arith.constant 0 : i32
      %232 = arith.cmpi slt, %230, %c0_i32_111 : i32
      %c0_i32_112 = arith.constant 0 : i32
      %233 = arith.cmpi slt, %229, %c0_i32_112 : i32
      %234 = arith.xori %232, %233 : i1
      %235 = arith.andi %234, %231 : i1
      %236 = arith.addi %230, %229 : i32
      %237 = arith.select %235, %236, %230 : i32
      %c0_i32_113 = arith.constant 0 : i32
      %238 = tpu.memref_slice %arg2[%227, %c0_i32_113] : memref<64x128xf32, #tpu.memory_space<any>> -> memref<1x128xf32, #tpu.memory_space<any>>
      %c0_i32_114 = arith.constant 0 : i32
      %239 = tpu.memref_slice %arg26[%224, %c0_i32_114] : memref<16x128xf32, #tpu.memory_space<vmem>> -> memref<1x128xf32, #tpu.memory_space<vmem>>
      %240 = tpu.memref_slice %arg27[%237] : memref<8x!tpu.dma_semaphore, #tpu.memory_space<semaphore_mem>> -> memref<1x!tpu.dma_semaphore, #tpu.memory_space<semaphore_mem>>
      %241 = tpu.memref_squeeze %240 : memref<1x!tpu.dma_semaphore, #tpu.memory_space<semaphore_mem>> -> memref<!tpu.dma_semaphore, #tpu.memory_space<semaphore_mem>>
      tpu.enqueue_dma source(%238 : memref<1x128xf32, #tpu.memory_space<any>>) target(%239 : memref<1x128xf32, #tpu.memory_space<vmem>>) target_semaphore(%241 : memref<!tpu.dma_semaphore, #tpu.memory_space<semaphore_mem>>)
    }
    %c8_i32_0 = arith.constant 8 : i32
    %c0_i32_1 = arith.constant 0 : i32
    %c16_i32_2 = arith.constant 16 : i32
    %2 = arith.addi %c0_i32_1, %c16_i32_2 : i32
    %c1_i32_3 = arith.constant 1 : i32
    scf.for %arg28 = %c0_i32_1 to %2 step %c1_i32_3  : i32 {
      %c1_i32_105 = arith.constant 1 : i32
      %223 = arith.muli %arg28, %c1_i32_105 : i32
      %c0_i32_106 = arith.constant 0 : i32
      %224 = arith.addi %c0_i32_106, %223 : i32
      %225 = arith.addi %0, %224 : i32
      %226 = arith.index_cast %225 : i32 to index
      %227 = memref.load %arg1[%226] : memref<32xi32, #tpu.memory_space<smem>>
      %c8_i32_107 = arith.constant 8 : i32
      %c0_i32_108 = arith.constant 0 : i32
      %228 = arith.cmpi eq, %c8_i32_107, %c0_i32_108 : i32
      %c1_i32_109 = arith.constant 1 : i32
      %229 = arith.select %228, %c1_i32_109, %c8_i32_107 : i32
      %230 = arith.remsi %224, %229 : i32
      %c0_i32_110 = arith.constant 0 : i32
      %231 = arith.cmpi ne, %230, %c0_i32_110 : i32
      %c0_i32_111 = arith.constant 0 : i32
      %232 = arith.cmpi slt, %230, %c0_i32_111 : i32
      %c0_i32_112 = arith.constant 0 : i32
      %233 = arith.cmpi slt, %229, %c0_i32_112 : i32
      %234 = arith.xori %232, %233 : i1
      %235 = arith.andi %234, %231 : i1
      %236 = arith.addi %230, %229 : i32
      %237 = arith.select %235, %236, %230 : i32
      %c0_i32_113 = arith.constant 0 : i32
      %238 = tpu.memref_slice %arg2[%227, %c0_i32_113] : memref<64x128xf32, #tpu.memory_space<any>> -> memref<1x128xf32, #tpu.memory_space<any>>
      %c0_i32_114 = arith.constant 0 : i32
      %239 = tpu.memref_slice %arg26[%224, %c0_i32_114] : memref<16x128xf32, #tpu.memory_space<vmem>> -> memref<1x128xf32, #tpu.memory_space<vmem>>
      %240 = tpu.memref_slice %arg27[%237] : memref<8x!tpu.dma_semaphore, #tpu.memory_space<semaphore_mem>> -> memref<1x!tpu.dma_semaphore, #tpu.memory_space<semaphore_mem>>
      %241 = tpu.memref_squeeze %240 : memref<1x!tpu.dma_semaphore, #tpu.memory_space<semaphore_mem>> -> memref<!tpu.dma_semaphore, #tpu.memory_space<semaphore_mem>>
      tpu.wait_dma2 semaphore(%241 : memref<!tpu.dma_semaphore, #tpu.memory_space<semaphore_mem>>) src(%238 : memref<1x128xf32, #tpu.memory_space<any>>) dst(%239 : memref<1x128xf32, #tpu.memory_space<vmem>>)
      %c8_i32_115 = arith.constant 8 : i32
      %242 = arith.addi %224, %c8_i32_115 : i32
      %c16_i32_116 = arith.constant 16 : i32
      %243 = arith.cmpi slt, %242, %c16_i32_116 : i32
      %244 = arith.extui %243 : i1 to i32
      %c0_i32_117 = arith.constant 0 : i32
      %245 = arith.cmpi ne, %244, %c0_i32_117 : i32
      scf.if %245 {
        %c8_i32_118 = arith.constant 8 : i32
        %246 = arith.addi %224, %c8_i32_118 : i32
        %247 = arith.addi %0, %246 : i32
        %248 = arith.index_cast %247 : i32 to index
        %249 = memref.load %arg1[%248] : memref<32xi32, #tpu.memory_space<smem>>
        %c8_i32_119 = arith.constant 8 : i32
        %c0_i32_120 = arith.constant 0 : i32
        %250 = arith.cmpi eq, %c8_i32_119, %c0_i32_120 : i32
        %c1_i32_121 = arith.constant 1 : i32
        %251 = arith.select %250, %c1_i32_121, %c8_i32_119 : i32
        %252 = arith.remsi %246, %251 : i32
        %c0_i32_122 = arith.constant 0 : i32
        %253 = arith.cmpi ne, %252, %c0_i32_122 : i32
        %c0_i32_123 = arith.constant 0 : i32
        %254 = arith.cmpi slt, %252, %c0_i32_123 : i32
        %c0_i32_124 = arith.constant 0 : i32
        %255 = arith.cmpi slt, %251, %c0_i32_124 : i32
        %256 = arith.xori %254, %255 : i1
        %257 = arith.andi %256, %253 : i1
        %258 = arith.addi %252, %251 : i32
        %259 = arith.select %257, %258, %252 : i32
        %c0_i32_125 = arith.constant 0 : i32
        %260 = tpu.memref_slice %arg2[%249, %c0_i32_125] : memref<64x128xf32, #tpu.memory_space<any>> -> memref<1x128xf32, #tpu.memory_space<any>>
        %c0_i32_126 = arith.constant 0 : i32
        %261 = tpu.memref_slice %arg26[%246, %c0_i32_126] : memref<16x128xf32, #tpu.memory_space<vmem>> -> memref<1x128xf32, #tpu.memory_space<vmem>>
        %262 = tpu.memref_slice %arg27[%259] : memref<8x!tpu.dma_semaphore, #tpu.memory_space<semaphore_mem>> -> memref<1x!tpu.dma_semaphore, #tpu.memory_space<semaphore_mem>>
        %263 = tpu.memref_squeeze %262 : memref<1x!tpu.dma_semaphore, #tpu.memory_space<semaphore_mem>> -> memref<!tpu.dma_semaphore, #tpu.memory_space<semaphore_mem>>
        tpu.enqueue_dma source(%260 : memref<1x128xf32, #tpu.memory_space<any>>) target(%261 : memref<1x128xf32, #tpu.memory_space<vmem>>) target_semaphore(%263 : memref<!tpu.dma_semaphore, #tpu.memory_space<semaphore_mem>>)
      } else {
      }
    }
    %c16_i32_4 = arith.constant 16 : i32
    %c0 = arith.constant 0 : index
    %c0_5 = arith.constant 0 : index
    %3 = vector.load %arg26[%c0, %c0_5] : memref<16x128xf32, #tpu.memory_space<vmem>>, vector<16x128xf32>
    %4 = vector.shape_cast %3 : vector<16x128xf32> to vector<2x8x128xf32>
    %c0_6 = arith.constant 0 : index
    %c0_7 = arith.constant 0 : index
    %5 = vector.load %arg3[%c0_6, %c0_7] : memref<8x128xf32, #tpu.memory_space<vmem>>, vector<8x128xf32>
    %6 = vector.shape_cast %5 : vector<8x128xf32> to vector<1x8x128xf32>
    %7 = vector.broadcast %6 : vector<1x8x128xf32> to vector<2x8x128xf32>
    %8 = arith.addf %4, %7 : vector<2x8x128xf32>
    %9 = vector.shape_cast %8 : vector<2x8x128xf32> to vector<16x128xf32>
    %10 = arith.truncf %9 : vector<16x128xf32> to vector<16x128xbf16>
    %11 = vector.extract_strided_slice %8 {offsets = [0, 0, 0], sizes = [2, 1, 128], strides = [1, 1, 1]} : vector<2x8x128xf32> to vector<2x1x128xf32>
    %12 = vector.shape_cast %11 : vector<2x1x128xf32> to vector<2x128xf32>
    %c0_8 = arith.constant 0 : index
    %c0_9 = arith.constant 0 : index
    %13 = vector.load %arg7[%c0_8, %c0_9] : memref<128x128xbf16, #tpu.memory_space<vmem>>, vector<128x128xbf16>
    %cst = arith.constant dense<0.000000e+00> : vector<16x128xf32>
    %14 = tpu.matmul %10, %13, %cst {dimension_numbers = #tpu.dot_dimension_numbers<[1], [0], [0], [1], [0, 0, 1, 1], [], []>} : vector<16x128xbf16>, vector<128x128xbf16>, vector<16x128xf32> -> vector<16x128xf32>
    %c0_10 = arith.constant 0 : index
    %c0_11 = arith.constant 0 : index
    %15 = vector.load %arg8[%c0_10, %c0_11] : memref<1x128xf32, #tpu.memory_space<vmem>>, vector<1x128xf32>
    %16 = vector.broadcast %15 : vector<1x128xf32> to vector<16x128xf32>
    %17 = arith.addf %14, %16 : vector<16x128xf32>
    %c0_12 = arith.constant 0 : index
    %c0_13 = arith.constant 0 : index
    %18 = vector.load %arg9[%c0_12, %c0_13] : memref<128x128xbf16, #tpu.memory_space<vmem>>, vector<128x128xbf16>
    %cst_14 = arith.constant dense<0.000000e+00> : vector<16x128xf32>
    %19 = tpu.matmul %10, %18, %cst_14 {dimension_numbers = #tpu.dot_dimension_numbers<[1], [0], [0], [1], [0, 0, 1, 1], [], []>} : vector<16x128xbf16>, vector<128x128xbf16>, vector<16x128xf32> -> vector<16x128xf32>
    %c0_15 = arith.constant 0 : index
    %c0_16 = arith.constant 0 : index
    %20 = vector.load %arg10[%c0_15, %c0_16] : memref<1x128xf32, #tpu.memory_space<vmem>>, vector<1x128xf32>
    %21 = vector.broadcast %20 : vector<1x128xf32> to vector<16x128xf32>
    %22 = arith.addf %19, %21 : vector<16x128xf32>
    %23 = arith.truncf %12 : vector<2x128xf32> to vector<2x128xbf16>
    %c0_17 = arith.constant 0 : index
    %c0_18 = arith.constant 0 : index
    %24 = vector.load %arg5[%c0_17, %c0_18] : memref<128x128xbf16, #tpu.memory_space<vmem>>, vector<128x128xbf16>
    %cst_19 = arith.constant dense<0.000000e+00> : vector<2x128xf32>
    %25 = tpu.matmul %23, %24, %cst_19 {dimension_numbers = #tpu.dot_dimension_numbers<[1], [0], [0], [1], [0, 0, 1, 1], [], []>} : vector<2x128xbf16>, vector<128x128xbf16>, vector<2x128xf32> -> vector<2x128xf32>
    %c0_20 = arith.constant 0 : index
    %c0_21 = arith.constant 0 : index
    %26 = vector.load %arg6[%c0_20, %c0_21] : memref<1x128xf32, #tpu.memory_space<vmem>>, vector<1x128xf32>
    %27 = vector.broadcast %26 : vector<1x128xf32> to vector<2x128xf32>
    %28 = arith.addf %25, %27 : vector<2x128xf32>
    %29 = vector.shape_cast %17 : vector<16x128xf32> to vector<2x8x128xf32>
    %30 = vector.shape_cast %22 : vector<16x128xf32> to vector<2x8x128xf32>
    %31 = vector.shape_cast %28 : vector<2x128xf32> to vector<2x1x128xf32>
    %32 = vector.broadcast %31 : vector<2x1x128xf32> to vector<2x8x128xf32>
    %33 = arith.mulf %32, %29 : vector<2x8x128xf32>
    %cst_22 = arith.constant dense<0.000000e+00> : vector<2x8xf32>
    %34 = vector.multi_reduction <add>, %33, %cst_22 [2] : vector<2x8x128xf32> to vector<2x8xf32>
    %c0_23 = arith.constant 0 : index
    %c0_24 = arith.constant 0 : index
    %c0_25 = arith.constant 0 : index
    %35 = vector.load %arg4[%c0_23, %c0_24, %c0_25] : memref<2x1x8xf32, #tpu.memory_space<vmem>>, vector<2x1x8xf32>
    %36 = vector.shape_cast %35 : vector<2x1x8xf32> to vector<2x8xf32>
    %37 = arith.addf %34, %36 : vector<2x8xf32>
    %cst_26 = arith.constant dense<0xFF800000> : vector<2xf32>
    %38 = vector.multi_reduction <maximumf>, %37, %cst_26 [1] : vector<2x8xf32> to vector<2xf32>
    %39 = vector.shape_cast %38 : vector<2xf32> to vector<2x1xf32>
    %40 = vector.broadcast %39 : vector<2x1xf32> to vector<2x8xf32>
    %41 = arith.subf %37, %40 : vector<2x8xf32>
    %42 = math.exp %41 : vector<2x8xf32>
    %cst_27 = arith.constant dense<0.000000e+00> : vector<2xf32>
    %43 = vector.multi_reduction <add>, %42, %cst_27 [1] : vector<2x8xf32> to vector<2xf32>
    %44 = vector.shape_cast %43 : vector<2xf32> to vector<2x1xf32>
    %45 = vector.broadcast %44 : vector<2x1xf32> to vector<2x8xf32>
    %46 = arith.divf %42, %45 : vector<2x8xf32>
    %47 = vector.shape_cast %46 : vector<2x8xf32> to vector<2x8x1xf32>
    %48 = vector.broadcast %47 : vector<2x8x1xf32> to vector<2x8x128xf32>
    %49 = arith.mulf %48, %30 : vector<2x8x128xf32>
    %cst_28 = arith.constant dense<0.000000e+00> : vector<2x128xf32>
    %50 = vector.multi_reduction <add>, %49, %cst_28 [1] : vector<2x8x128xf32> to vector<2x128xf32>
    %51 = arith.truncf %50 : vector<2x128xf32> to vector<2x128xbf16>
    %c0_29 = arith.constant 0 : index
    %c0_30 = arith.constant 0 : index
    %52 = vector.load %arg11[%c0_29, %c0_30] : memref<128x128xbf16, #tpu.memory_space<vmem>>, vector<128x128xbf16>
    %cst_31 = arith.constant dense<0.000000e+00> : vector<2x128xf32>
    %53 = tpu.matmul %51, %52, %cst_31 {dimension_numbers = #tpu.dot_dimension_numbers<[1], [0], [0], [1], [0, 0, 1, 1], [], []>} : vector<2x128xbf16>, vector<128x128xbf16>, vector<2x128xf32> -> vector<2x128xf32>
    %c0_32 = arith.constant 0 : index
    %c0_33 = arith.constant 0 : index
    %54 = vector.load %arg12[%c0_32, %c0_33] : memref<1x128xf32, #tpu.memory_space<vmem>>, vector<1x128xf32>
    %55 = vector.broadcast %54 : vector<1x128xf32> to vector<2x128xf32>
    %56 = arith.addf %53, %55 : vector<2x128xf32>
    %57 = arith.addf %12, %56 : vector<2x128xf32>
    %c0_34 = arith.constant 0 : index
    %c0_35 = arith.constant 0 : index
    %58 = vector.load %arg13[%c0_34, %c0_35] : memref<1x128xf32, #tpu.memory_space<vmem>>, vector<1x128xf32>
    %c0_36 = arith.constant 0 : index
    %c0_37 = arith.constant 0 : index
    %59 = vector.load %arg14[%c0_36, %c0_37] : memref<1x128xf32, #tpu.memory_space<vmem>>, vector<1x128xf32>
    %cst_38 = arith.constant dense<0.000000e+00> : vector<2xf32>
    %60 = vector.multi_reduction <add>, %57, %cst_38 [1] : vector<2x128xf32> to vector<2xf32>
    %61 = vector.shape_cast %60 : vector<2xf32> to vector<2x1xf32>
    %cst_39 = arith.constant 1.280000e+02 : f32
    %62 = vector.broadcast %cst_39 : f32 to vector<2x1xf32>
    %63 = arith.divf %61, %62 : vector<2x1xf32>
    %64 = vector.broadcast %63 : vector<2x1xf32> to vector<2x128xf32>
    %65 = arith.subf %57, %64 : vector<2x128xf32>
    %66 = arith.mulf %65, %65 : vector<2x128xf32>
    %cst_40 = arith.constant dense<0.000000e+00> : vector<2xf32>
    %67 = vector.multi_reduction <add>, %66, %cst_40 [1] : vector<2x128xf32> to vector<2xf32>
    %68 = vector.shape_cast %67 : vector<2xf32> to vector<2x1xf32>
    %cst_41 = arith.constant 1.280000e+02 : f32
    %69 = vector.broadcast %cst_41 : f32 to vector<2x1xf32>
    %70 = arith.divf %68, %69 : vector<2x1xf32>
    %71 = vector.broadcast %63 : vector<2x1xf32> to vector<2x128xf32>
    %72 = arith.subf %57, %71 : vector<2x128xf32>
    %cst_42 = arith.constant 9.99999996E-13 : f32
    %73 = vector.broadcast %cst_42 : f32 to vector<2x1xf32>
    %74 = arith.addf %70, %73 : vector<2x1xf32>
    %75 = math.rsqrt %74 : vector<2x1xf32>
    %76 = vector.broadcast %75 : vector<2x1xf32> to vector<2x128xf32>
    %77 = arith.mulf %72, %76 : vector<2x128xf32>
    %78 = vector.broadcast %58 : vector<1x128xf32> to vector<2x128xf32>
    %79 = arith.mulf %77, %78 : vector<2x128xf32>
    %80 = vector.broadcast %59 : vector<1x128xf32> to vector<2x128xf32>
    %81 = arith.addf %79, %80 : vector<2x128xf32>
    %82 = arith.truncf %81 : vector<2x128xf32> to vector<2x128xbf16>
    %c0_43 = arith.constant 0 : index
    %c0_44 = arith.constant 0 : index
    %83 = vector.load %arg15[%c0_43, %c0_44] : memref<128x256xbf16, #tpu.memory_space<vmem>>, vector<128x256xbf16>
    %cst_45 = arith.constant dense<0.000000e+00> : vector<2x256xf32>
    %84 = tpu.matmul %82, %83, %cst_45 {dimension_numbers = #tpu.dot_dimension_numbers<[1], [0], [0], [1], [0, 0, 1, 1], [], []>} : vector<2x128xbf16>, vector<128x256xbf16>, vector<2x256xf32> -> vector<2x256xf32>
    %c0_46 = arith.constant 0 : index
    %c0_47 = arith.constant 0 : index
    %85 = vector.load %arg16[%c0_46, %c0_47] : memref<1x256xf32, #tpu.memory_space<vmem>>, vector<1x256xf32>
    %86 = vector.broadcast %85 : vector<1x256xf32> to vector<2x256xf32>
    %87 = arith.addf %84, %86 : vector<2x256xf32>
    %cst_48 = arith.constant 5.000000e-01 : f32
    %88 = vector.broadcast %cst_48 : f32 to vector<2x256xf32>
    %89 = arith.mulf %88, %87 : vector<2x256xf32>
    %cst_49 = arith.constant 4.471500e-02 : f32
    %90 = vector.broadcast %cst_49 : f32 to vector<2x256xf32>
    %91 = arith.mulf %90, %87 : vector<2x256xf32>
    %92 = arith.mulf %91, %87 : vector<2x256xf32>
    %93 = arith.mulf %92, %87 : vector<2x256xf32>
    %94 = arith.addf %87, %93 : vector<2x256xf32>
    %cst_50 = arith.constant 0.797884583 : f32
    %95 = vector.broadcast %cst_50 : f32 to vector<2x256xf32>
    %96 = arith.mulf %95, %94 : vector<2x256xf32>
    %97 = math.tanh %96 : vector<2x256xf32>
    %cst_51 = arith.constant 1.000000e+00 : f32
    %98 = vector.broadcast %cst_51 : f32 to vector<2x256xf32>
    %99 = arith.addf %98, %97 : vector<2x256xf32>
    %100 = arith.mulf %89, %99 : vector<2x256xf32>
    %101 = arith.truncf %100 : vector<2x256xf32> to vector<2x256xbf16>
    %c0_52 = arith.constant 0 : index
    %c0_53 = arith.constant 0 : index
    %102 = vector.load %arg17[%c0_52, %c0_53] : memref<256x128xbf16, #tpu.memory_space<vmem>>, vector<256x128xbf16>
    %cst_54 = arith.constant dense<0.000000e+00> : vector<2x128xf32>
    %103 = tpu.matmul %101, %102, %cst_54 {dimension_numbers = #tpu.dot_dimension_numbers<[1], [0], [0], [1], [0, 0, 1, 1], [], []>} : vector<2x256xbf16>, vector<256x128xbf16>, vector<2x128xf32> -> vector<2x128xf32>
    %c0_55 = arith.constant 0 : index
    %c0_56 = arith.constant 0 : index
    %104 = vector.load %arg18[%c0_55, %c0_56] : memref<1x128xf32, #tpu.memory_space<vmem>>, vector<1x128xf32>
    %105 = vector.broadcast %104 : vector<1x128xf32> to vector<2x128xf32>
    %106 = arith.addf %103, %105 : vector<2x128xf32>
    %107 = arith.addf %81, %106 : vector<2x128xf32>
    %c0_57 = arith.constant 0 : index
    %c0_58 = arith.constant 0 : index
    %108 = vector.load %arg19[%c0_57, %c0_58] : memref<1x128xf32, #tpu.memory_space<vmem>>, vector<1x128xf32>
    %c0_59 = arith.constant 0 : index
    %c0_60 = arith.constant 0 : index
    %109 = vector.load %arg20[%c0_59, %c0_60] : memref<1x128xf32, #tpu.memory_space<vmem>>, vector<1x128xf32>
    %cst_61 = arith.constant dense<0.000000e+00> : vector<2xf32>
    %110 = vector.multi_reduction <add>, %107, %cst_61 [1] : vector<2x128xf32> to vector<2xf32>
    %111 = vector.shape_cast %110 : vector<2xf32> to vector<2x1xf32>
    %cst_62 = arith.constant 1.280000e+02 : f32
    %112 = vector.broadcast %cst_62 : f32 to vector<2x1xf32>
    %113 = arith.divf %111, %112 : vector<2x1xf32>
    %114 = vector.broadcast %113 : vector<2x1xf32> to vector<2x128xf32>
    %115 = arith.subf %107, %114 : vector<2x128xf32>
    %116 = arith.mulf %115, %115 : vector<2x128xf32>
    %cst_63 = arith.constant dense<0.000000e+00> : vector<2xf32>
    %117 = vector.multi_reduction <add>, %116, %cst_63 [1] : vector<2x128xf32> to vector<2xf32>
    %118 = vector.shape_cast %117 : vector<2xf32> to vector<2x1xf32>
    %cst_64 = arith.constant 1.280000e+02 : f32
    %119 = vector.broadcast %cst_64 : f32 to vector<2x1xf32>
    %120 = arith.divf %118, %119 : vector<2x1xf32>
    %121 = vector.broadcast %113 : vector<2x1xf32> to vector<2x128xf32>
    %122 = arith.subf %107, %121 : vector<2x128xf32>
    %cst_65 = arith.constant 9.99999996E-13 : f32
    %123 = vector.broadcast %cst_65 : f32 to vector<2x1xf32>
    %124 = arith.addf %120, %123 : vector<2x1xf32>
    %125 = math.rsqrt %124 : vector<2x1xf32>
    %126 = vector.broadcast %125 : vector<2x1xf32> to vector<2x128xf32>
    %127 = arith.mulf %122, %126 : vector<2x128xf32>
    %128 = vector.broadcast %108 : vector<1x128xf32> to vector<2x128xf32>
    %129 = arith.mulf %127, %128 : vector<2x128xf32>
    %130 = vector.broadcast %109 : vector<1x128xf32> to vector<2x128xf32>
    %131 = arith.addf %129, %130 : vector<2x128xf32>
    %cst_66 = arith.constant dense<0.000000e+00> : vector<2xf32>
    %132 = vector.multi_reduction <add>, %131, %cst_66 [1] : vector<2x128xf32> to vector<2xf32>
    %133 = vector.shape_cast %132 : vector<2xf32> to vector<2x1xf32>
    %cst_67 = arith.constant 1.280000e+02 : f32
    %134 = vector.broadcast %cst_67 : f32 to vector<2x1xf32>
    %135 = arith.divf %133, %134 : vector<2x1xf32>
    %136 = vector.broadcast %135 : vector<2x1xf32> to vector<2x128xf32>
    %137 = arith.subf %131, %136 : vector<2x128xf32>
    %138 = arith.mulf %137, %137 : vector<2x128xf32>
    %cst_68 = arith.constant dense<0.000000e+00> : vector<2xf32>
    %139 = vector.multi_reduction <add>, %138, %cst_68 [1] : vector<2x128xf32> to vector<2xf32>
    %140 = vector.shape_cast %139 : vector<2xf32> to vector<2x1xf32>
    %cst_69 = arith.constant 1.280000e+02 : f32
    %141 = vector.broadcast %cst_69 : f32 to vector<2x1xf32>
    %142 = arith.divf %140, %141 : vector<2x1xf32>
    %143 = vector.broadcast %135 : vector<2x1xf32> to vector<2x128xf32>
    %144 = arith.subf %131, %143 : vector<2x128xf32>
    %cst_70 = arith.constant 9.99999996E-13 : f32
    %145 = vector.broadcast %cst_70 : f32 to vector<2x1xf32>
    %146 = arith.addf %142, %145 : vector<2x1xf32>
    %147 = math.rsqrt %146 : vector<2x1xf32>
    %148 = vector.broadcast %147 : vector<2x1xf32> to vector<2x128xf32>
    %149 = arith.mulf %144, %148 : vector<2x128xf32>
    %150 = arith.truncf %149 : vector<2x128xf32> to vector<2x128xbf16>
    %c0_71 = arith.constant 0 : index
    %c0_72 = arith.constant 0 : index
    %151 = vector.load %arg21[%c0_71, %c0_72] : memref<128x128xbf16, #tpu.memory_space<vmem>>, vector<128x128xbf16>
    %cst_73 = arith.constant dense<0.000000e+00> : vector<2x128xf32>
    %152 = tpu.matmul %150, %151, %cst_73 {dimension_numbers = #tpu.dot_dimension_numbers<[1], [0], [0], [1], [0, 0, 1, 1], [], []>} : vector<2x128xbf16>, vector<128x128xbf16>, vector<2x128xf32> -> vector<2x128xf32>
    %c0_74 = arith.constant 0 : index
    %c0_75 = arith.constant 0 : index
    %153 = vector.load %arg22[%c0_74, %c0_75] : memref<1x128xf32, #tpu.memory_space<vmem>>, vector<1x128xf32>
    %154 = vector.broadcast %153 : vector<1x128xf32> to vector<2x128xf32>
    %155 = arith.addf %152, %154 : vector<2x128xf32>
    %cst_76 = arith.constant 5.000000e-01 : f32
    %156 = vector.broadcast %cst_76 : f32 to vector<2x128xf32>
    %157 = arith.mulf %156, %155 : vector<2x128xf32>
    %cst_77 = arith.constant 0.707106769 : f32
    %158 = vector.broadcast %cst_77 : f32 to vector<2x128xf32>
    %159 = arith.mulf %155, %158 : vector<2x128xf32>
    %cst_78 = arith.constant 0.000000e+00 : f32
    %160 = vector.broadcast %cst_78 : f32 to vector<2x128xf32>
    %161 = arith.cmpf oge, %159, %160 : vector<2x128xf32>
    %cst_79 = arith.constant 1.000000e+00 : f32
    %cst_80 = arith.constant -1.000000e+00 : f32
    %162 = vector.broadcast %cst_79 : f32 to vector<2x128xf32>
    %163 = vector.broadcast %cst_80 : f32 to vector<2x128xf32>
    %164 = arith.select %161, %162, %163 : vector<2x128xi1>, vector<2x128xf32>
    %165 = math.absf %159 : vector<2x128xf32>
    %cst_81 = arith.constant 0.327591091 : f32
    %166 = vector.broadcast %cst_81 : f32 to vector<2x128xf32>
    %167 = arith.mulf %166, %165 : vector<2x128xf32>
    %cst_82 = arith.constant 1.000000e+00 : f32
    %168 = vector.broadcast %cst_82 : f32 to vector<2x128xf32>
    %169 = arith.addf %168, %167 : vector<2x128xf32>
    %cst_83 = arith.constant 1.000000e+00 : f32
    %170 = vector.broadcast %cst_83 : f32 to vector<2x128xf32>
    %171 = arith.divf %170, %169 : vector<2x128xf32>
    %cst_84 = arith.constant 1.06140542 : f32
    %172 = vector.broadcast %cst_84 : f32 to vector<2x128xf32>
    %173 = arith.mulf %172, %171 : vector<2x128xf32>
    %cst_85 = arith.constant -1.45315206 : f32
    %174 = vector.broadcast %cst_85 : f32 to vector<2x128xf32>
    %175 = arith.addf %173, %174 : vector<2x128xf32>
    %176 = arith.mulf %175, %171 : vector<2x128xf32>
    %cst_86 = arith.constant 1.42141378 : f32
    %177 = vector.broadcast %cst_86 : f32 to vector<2x128xf32>
    %178 = arith.addf %176, %177 : vector<2x128xf32>
    %179 = arith.mulf %178, %171 : vector<2x128xf32>
    %cst_87 = arith.constant -0.284496725 : f32
    %180 = vector.broadcast %cst_87 : f32 to vector<2x128xf32>
    %181 = arith.addf %179, %180 : vector<2x128xf32>
    %182 = arith.mulf %181, %171 : vector<2x128xf32>
    %cst_88 = arith.constant 0.254829586 : f32
    %183 = vector.broadcast %cst_88 : f32 to vector<2x128xf32>
    %184 = arith.addf %182, %183 : vector<2x128xf32>
    %185 = arith.mulf %184, %171 : vector<2x128xf32>
    %cst_89 = arith.constant 0.000000e+00 : f32
    %186 = vector.broadcast %cst_89 : f32 to vector<2x128xf32>
    %187 = arith.subf %186, %165 : vector<2x128xf32>
    %188 = arith.mulf %187, %165 : vector<2x128xf32>
    %189 = math.exp %188 : vector<2x128xf32>
    %190 = arith.mulf %185, %189 : vector<2x128xf32>
    %cst_90 = arith.constant 1.000000e+00 : f32
    %191 = vector.broadcast %cst_90 : f32 to vector<2x128xf32>
    %192 = arith.subf %191, %190 : vector<2x128xf32>
    %193 = arith.mulf %164, %192 : vector<2x128xf32>
    %cst_91 = arith.constant 1.000000e+00 : f32
    %194 = vector.broadcast %cst_91 : f32 to vector<2x128xf32>
    %195 = arith.addf %194, %193 : vector<2x128xf32>
    %196 = arith.mulf %157, %195 : vector<2x128xf32>
    %cst_92 = arith.constant dense<0.000000e+00> : vector<2xf32>
    %197 = vector.multi_reduction <add>, %196, %cst_92 [1] : vector<2x128xf32> to vector<2xf32>
    %198 = vector.shape_cast %197 : vector<2xf32> to vector<2x1xf32>
    %cst_93 = arith.constant 1.280000e+02 : f32
    %199 = vector.broadcast %cst_93 : f32 to vector<2x1xf32>
    %200 = arith.divf %198, %199 : vector<2x1xf32>
    %201 = vector.broadcast %200 : vector<2x1xf32> to vector<2x128xf32>
    %202 = arith.subf %196, %201 : vector<2x128xf32>
    %203 = arith.mulf %202, %202 : vector<2x128xf32>
    %cst_94 = arith.constant dense<0.000000e+00> : vector<2xf32>
    %204 = vector.multi_reduction <add>, %203, %cst_94 [1] : vector<2x128xf32> to vector<2xf32>
    %205 = vector.shape_cast %204 : vector<2xf32> to vector<2x1xf32>
    %cst_95 = arith.constant 1.280000e+02 : f32
    %206 = vector.broadcast %cst_95 : f32 to vector<2x1xf32>
    %207 = arith.divf %205, %206 : vector<2x1xf32>
    %208 = vector.broadcast %200 : vector<2x1xf32> to vector<2x128xf32>
    %209 = arith.subf %196, %208 : vector<2x128xf32>
    %cst_96 = arith.constant 9.99999996E-13 : f32
    %210 = vector.broadcast %cst_96 : f32 to vector<2x1xf32>
    %211 = arith.addf %207, %210 : vector<2x1xf32>
    %212 = math.rsqrt %211 : vector<2x1xf32>
    %213 = vector.broadcast %212 : vector<2x1xf32> to vector<2x128xf32>
    %214 = arith.mulf %209, %213 : vector<2x128xf32>
    %215 = arith.truncf %214 : vector<2x128xf32> to vector<2x128xbf16>
    %c0_97 = arith.constant 0 : index
    %c0_98 = arith.constant 0 : index
    %216 = vector.load %arg23[%c0_97, %c0_98] : memref<128x128xbf16, #tpu.memory_space<vmem>>, vector<128x128xbf16>
    %cst_99 = arith.constant dense<0.000000e+00> : vector<2x128xf32>
    %217 = tpu.matmul %215, %216, %cst_99 {dimension_numbers = #tpu.dot_dimension_numbers<[1], [0], [0], [1], [0, 0, 1, 1], [], []>} : vector<2x128xbf16>, vector<128x128xbf16>, vector<2x128xf32> -> vector<2x128xf32>
    %c0_100 = arith.constant 0 : index
    %c0_101 = arith.constant 0 : index
    %218 = vector.load %arg24[%c0_100, %c0_101] : memref<1x128xf32, #tpu.memory_space<vmem>>, vector<1x128xf32>
    %219 = vector.broadcast %218 : vector<1x128xf32> to vector<2x128xf32>
    %220 = arith.addf %217, %219 : vector<2x128xf32>
    %221 = vector.shape_cast %220 : vector<2x128xf32> to vector<2x1x128xf32>
    %c0_102 = arith.constant 0 : index
    %c0_103 = arith.constant 0 : index
    %c0_104 = arith.constant 0 : index
    %222 = vector.load %arg25[%c0_102, %c0_103, %c0_104] : memref<2x1x128xf32, #tpu.memory_space<vmem>>, vector<2x1x128xf32>
    tpu.vector_store %arg25[%c0_102, %c0_103, %c0_104], %221 {strides = array<i32>} : memref<2x1x128xf32, #tpu.memory_space<vmem>>, vector<2x1x128xf32>,
    return
  }
  func.func @transform_1(%arg0: i32, %arg1: memref<32xi32, #tpu.memory_space<smem>>) -> (i32, i32) {
    %c0_i32 = arith.constant 0 : i32
    %c0_i32_0 = arith.constant 0 : i32
    %c0_i32_1 = arith.constant 0 : i32
    return %c0_i32, %c0_i32_0 : i32, i32
  }
  func.func @transform_2(%arg0: i32, %arg1: memref<32xi32, #tpu.memory_space<smem>>) -> (i32, i32, i32) {
    %c0_i32 = arith.constant 0 : i32
    %c0_i32_0 = arith.constant 0 : i32
    %c0_i32_1 = arith.constant 0 : i32
    return %arg0, %c0_i32, %c0_i32_0 : i32, i32, i32
  }
  func.func @transform_3(%arg0: i32, %arg1: memref<32xi32, #tpu.memory_space<smem>>) -> (i32, i32) {
    %c0_i32 = arith.constant 0 : i32
    %c0_i32_0 = arith.constant 0 : i32
    %c0_i32_1 = arith.constant 0 : i32
    return %c0_i32, %c0_i32_0 : i32, i32
  }
  func.func @transform_4(%arg0: i32, %arg1: memref<32xi32, #tpu.memory_space<smem>>) -> (i32, i32) {
    %c0_i32 = arith.constant 0 : i32
    %c0_i32_0 = arith.constant 0 : i32
    %c0_i32_1 = arith.constant 0 : i32
    return %c0_i32, %c0_i32_0 : i32, i32
  }
  func.func @transform_5(%arg0: i32, %arg1: memref<32xi32, #tpu.memory_space<smem>>) -> (i32, i32) {
    %c0_i32 = arith.constant 0 : i32
    %c0_i32_0 = arith.constant 0 : i32
    %c0_i32_1 = arith.constant 0 : i32
    return %c0_i32, %c0_i32_0 : i32, i32
  }
  func.func @transform_6(%arg0: i32, %arg1: memref<32xi32, #tpu.memory_space<smem>>) -> (i32, i32) {
    %c0_i32 = arith.constant 0 : i32
    %c0_i32_0 = arith.constant 0 : i32
    %c0_i32_1 = arith.constant 0 : i32
    return %c0_i32, %c0_i32_0 : i32, i32
  }
  func.func @transform_7(%arg0: i32, %arg1: memref<32xi32, #tpu.memory_space<smem>>) -> (i32, i32) {
    %c0_i32 = arith.constant 0 : i32
    %c0_i32_0 = arith.constant 0 : i32
    %c0_i32_1 = arith.constant 0 : i32
    return %c0_i32, %c0_i32_0 : i32, i32
  }
  func.func @transform_8(%arg0: i32, %arg1: memref<32xi32, #tpu.memory_space<smem>>) -> (i32, i32) {
    %c0_i32 = arith.constant 0 : i32
    %c0_i32_0 = arith.constant 0 : i32
    %c0_i32_1 = arith.constant 0 : i32
    return %c0_i32, %c0_i32_0 : i32, i32
  }
  func.func @transform_9(%arg0: i32, %arg1: memref<32xi32, #tpu.memory_space<smem>>) -> (i32, i32) {
    %c0_i32 = arith.constant 0 : i32
    %c0_i32_0 = arith.constant 0 : i32
    %c0_i32_1 = arith.constant 0 : i32
    return %c0_i32, %c0_i32_0 : i32, i32
  }
  func.func @transform_10(%arg0: i32, %arg1: memref<32xi32, #tpu.memory_space<smem>>) -> (i32, i32) {
    %c0_i32 = arith.constant 0 : i32
    %c0_i32_0 = arith.constant 0 : i32
    %c0_i32_1 = arith.constant 0 : i32
    return %c0_i32, %c0_i32_0 : i32, i32
  }
  func.func @transform_11(%arg0: i32, %arg1: memref<32xi32, #tpu.memory_space<smem>>) -> (i32, i32) {
    %c0_i32 = arith.constant 0 : i32
    %c0_i32_0 = arith.constant 0 : i32
    %c0_i32_1 = arith.constant 0 : i32
    return %c0_i32, %c0_i32_0 : i32, i32
  }
  func.func @transform_12(%arg0: i32, %arg1: memref<32xi32, #tpu.memory_space<smem>>) -> (i32, i32) {
    %c0_i32 = arith.constant 0 : i32
    %c0_i32_0 = arith.constant 0 : i32
    %c0_i32_1 = arith.constant 0 : i32
    return %c0_i32, %c0_i32_0 : i32, i32
  }
  func.func @transform_13(%arg0: i32, %arg1: memref<32xi32, #tpu.memory_space<smem>>) -> (i32, i32) {
    %c0_i32 = arith.constant 0 : i32
    %c0_i32_0 = arith.constant 0 : i32
    %c0_i32_1 = arith.constant 0 : i32
    return %c0_i32, %c0_i32_0 : i32, i32
  }
  func.func @transform_14(%arg0: i32, %arg1: memref<32xi32, #tpu.memory_space<smem>>) -> (i32, i32) {
    %c0_i32 = arith.constant 0 : i32
    %c0_i32_0 = arith.constant 0 : i32
    %c0_i32_1 = arith.constant 0 : i32
    return %c0_i32, %c0_i32_0 : i32, i32
  }
  func.func @transform_15(%arg0: i32, %arg1: memref<32xi32, #tpu.memory_space<smem>>) -> (i32, i32) {
    %c0_i32 = arith.constant 0 : i32
    %c0_i32_0 = arith.constant 0 : i32
    %c0_i32_1 = arith.constant 0 : i32
    return %c0_i32, %c0_i32_0 : i32, i32
  }
  func.func @transform_16(%arg0: i32, %arg1: memref<32xi32, #tpu.memory_space<smem>>) -> (i32, i32) {
    %c0_i32 = arith.constant 0 : i32
    %c0_i32_0 = arith.constant 0 : i32
    %c0_i32_1 = arith.constant 0 : i32
    return %c0_i32, %c0_i32_0 : i32, i32
  }
  func.func @transform_17(%arg0: i32, %arg1: memref<32xi32, #tpu.memory_space<smem>>) -> (i32, i32) {
    %c0_i32 = arith.constant 0 : i32
    %c0_i32_0 = arith.constant 0 : i32
    %c0_i32_1 = arith.constant 0 : i32
    return %c0_i32, %c0_i32_0 : i32, i32
  }
  func.func @transform_18(%arg0: i32, %arg1: memref<32xi32, #tpu.memory_space<smem>>) -> (i32, i32) {
    %c0_i32 = arith.constant 0 : i32
    %c0_i32_0 = arith.constant 0 : i32
    %c0_i32_1 = arith.constant 0 : i32
    return %c0_i32, %c0_i32_0 : i32, i32
  }
  func.func @transform_19(%arg0: i32, %arg1: memref<32xi32, #tpu.memory_space<smem>>) -> (i32, i32) {
    %c0_i32 = arith.constant 0 : i32
    %c0_i32_0 = arith.constant 0 : i32
    %c0_i32_1 = arith.constant 0 : i32
    return %c0_i32, %c0_i32_0 : i32, i32
  }
  func.func @transform_20(%arg0: i32, %arg1: memref<32xi32, #tpu.memory_space<smem>>) -> (i32, i32) {
    %c0_i32 = arith.constant 0 : i32
    %c0_i32_0 = arith.constant 0 : i32
    %c0_i32_1 = arith.constant 0 : i32
    return %c0_i32, %c0_i32_0 : i32, i32
  }
  func.func @transform_21(%arg0: i32, %arg1: memref<32xi32, #tpu.memory_space<smem>>) -> (i32, i32) {
    %c0_i32 = arith.constant 0 : i32
    %c0_i32_0 = arith.constant 0 : i32
    %c0_i32_1 = arith.constant 0 : i32
    return %c0_i32, %c0_i32_0 : i32, i32
  }
  func.func @transform_22(%arg0: i32, %arg1: memref<32xi32, #tpu.memory_space<smem>>) -> (i32, i32) {
    %c0_i32 = arith.constant 0 : i32
    %c0_i32_0 = arith.constant 0 : i32
    %c0_i32_1 = arith.constant 0 : i32
    return %c0_i32, %c0_i32_0 : i32, i32
  }
  func.func @transform_23(%arg0: i32, %arg1: memref<32xi32, #tpu.memory_space<smem>>) -> (i32, i32, i32) {
    %c0_i32 = arith.constant 0 : i32
    %c0_i32_0 = arith.constant 0 : i32
    %c0_i32_1 = arith.constant 0 : i32
    return %arg0, %c0_i32, %c0_i32_0 : i32, i32, i32
  }
}

module attributes {stable_mosaic.version = 11 : i64} {
  func.func @fused_kernel(%arg0: i32, %arg1: memref<32xi32, #tpu.memory_space<smem>>, %arg2: memref<64x128xf32, #tpu.memory_space<any>>, %arg3: memref<8x128xf32, #tpu.memory_space<vmem>>, %arg4: memref<2x1x8xf32, #tpu.memory_space<vmem>>, %arg5: memref<128x128xbf16, #tpu.memory_space<vmem>>, %arg6: memref<1x128xf32, #tpu.memory_space<vmem>>, %arg7: memref<128x128xbf16, #tpu.memory_space<vmem>>, %arg8: memref<1x128xf32, #tpu.memory_space<vmem>>, %arg9: memref<128x128xbf16, #tpu.memory_space<vmem>>, %arg10: memref<1x128xf32, #tpu.memory_space<vmem>>, %arg11: memref<128x128xbf16, #tpu.memory_space<vmem>>, %arg12: memref<1x128xf32, #tpu.memory_space<vmem>>, %arg13: memref<1x128xf32, #tpu.memory_space<vmem>>, %arg14: memref<1x128xf32, #tpu.memory_space<vmem>>, %arg15: memref<128x256xbf16, #tpu.memory_space<vmem>>, %arg16: memref<1x256xf32, #tpu.memory_space<vmem>>, %arg17: memref<256x128xbf16, #tpu.memory_space<vmem>>, %arg18: memref<1x128xf32, #tpu.memory_space<vmem>>, %arg19: memref<1x128xf32, #tpu.memory_space<vmem>>, %arg20: memref<1x128xf32, #tpu.memory_space<vmem>>, %arg21: memref<128x128xbf16, #tpu.memory_space<vmem>>, %arg22: memref<1x128xf32, #tpu.memory_space<vmem>>, %arg23: memref<128x128xbf16, #tpu.memory_space<vmem>>, %arg24: memref<1x128xf32, #tpu.memory_space<vmem>>, %arg25: memref<2x1x128xf32, #tpu.memory_space<vmem>>, %arg26: memref<16x128xf32, #tpu.memory_space<vmem>>, %arg27: memref<8x!tpu.dma_semaphore, #tpu.memory_space<semaphore_mem>>) attributes {dimension_semantics = [#tpu.dimension_semantics<parallel>], iteration_bounds = array<i64: 2>, scalar_prefetch = 1 : i64, scratch_operands = 2 : i64, tpu.core_type = #tpu.core_type<tc>, window_params = [{}, {pipeline_mode = #tpu.pipeline_mode<synchronous>, transform_indices = @transform_1, window_bounds = array<i64: 8, 128>}, {transform_indices = @transform_2, window_bounds = array<i64: 2, 1, 8>}, {pipeline_mode = #tpu.pipeline_mode<synchronous>, transform_indices = @transform_3, window_bounds = array<i64: 128, 128>}, {pipeline_mode = #tpu.pipeline_mode<synchronous>, transform_indices = @transform_4, window_bounds = array<i64: 1, 128>}, {pipeline_mode = #tpu.pipeline_mode<synchronous>, transform_indices = @transform_5, window_bounds = array<i64: 128, 128>}, {pipeline_mode = #tpu.pipeline_mode<synchronous>, transform_indices = @transform_6, window_bounds = array<i64: 1, 128>}, {pipeline_mode = #tpu.pipeline_mode<synchronous>, transform_indices = @transform_7, window_bounds = array<i64: 128, 128>}, {pipeline_mode = #tpu.pipeline_mode<synchronous>, transform_indices = @transform_8, window_bounds = array<i64: 1, 128>}, {pipeline_mode = #tpu.pipeline_mode<synchronous>, transform_indices = @transform_9, window_bounds = array<i64: 128, 128>}, {pipeline_mode = #tpu.pipeline_mode<synchronous>, transform_indices = @transform_10, window_bounds = array<i64: 1, 128>}, {pipeline_mode = #tpu.pipeline_mode<synchronous>, transform_indices = @transform_11, window_bounds = array<i64: 1, 128>}, {pipeline_mode = #tpu.pipeline_mode<synchronous>, transform_indices = @transform_12, window_bounds = array<i64: 1, 128>}, {pipeline_mode = #tpu.pipeline_mode<synchronous>, transform_indices = @transform_13, window_bounds = array<i64: 128, 256>}, {pipeline_mode = #tpu.pipeline_mode<synchronous>, transform_indices = @transform_14, window_bounds = array<i64: 1, 256>}, {pipeline_mode = #tpu.pipeline_mode<synchronous>, transform_indices = @transform_15, window_bounds = array<i64: 256, 128>}, {pipeline_mode = #tpu.pipeline_mode<synchronous>, transform_indices = @transform_16, window_bounds = array<i64: 1, 128>}, {pipeline_mode = #tpu.pipeline_mode<synchronous>, transform_indices = @transform_17, window_bounds = array<i64: 1, 128>}, {pipeline_mode = #tpu.pipeline_mode<synchronous>, transform_indices = @transform_18, window_bounds = array<i64: 1, 128>}, {pipeline_mode = #tpu.pipeline_mode<synchronous>, transform_indices = @transform_19, window_bounds = array<i64: 128, 128>}, {pipeline_mode = #tpu.pipeline_mode<synchronous>, transform_indices = @transform_20, window_bounds = array<i64: 1, 128>}, {pipeline_mode = #tpu.pipeline_mode<synchronous>, transform_indices = @transform_21, window_bounds = array<i64: 128, 128>}, {pipeline_mode = #tpu.pipeline_mode<synchronous>, transform_indices = @transform_22, window_bounds = array<i64: 1, 128>}, {transform_indices = @transform_23, window_bounds = array<i64: 2, 1, 128>}]} {
    %c16_i32 = arith.constant 16 : i32
    %0 = arith.muli %arg0, %c16_i32 : i32
    %c0_i32 = arith.constant 0 : i32
    %c8_i32 = arith.constant 8 : i32
    %1 = arith.addi %c0_i32, %c8_i32 : i32
    %c1_i32 = arith.constant 1 : i32
    scf.for %arg28 = %c0_i32 to %1 step %c1_i32  : i32 {
      %c1_i32_105 = arith.constant 1 : i32
      %223 = arith.muli %arg28, %c1_i32_105 : i32
      %c0_i32_106 = arith.constant 0 : i32
      %224 = arith.addi %c0_i32_106, %223 : i32
      %225 = arith.addi %0, %224 : i32
      %226 = arith.index_cast %225 : i32 to index
      %227 = memref.load %arg1[%226] : memref<32xi32, #tpu.memory_space<smem>>
      %c8_i32_107 = arith.constant 8 : i32
      %c0_i32_108 = arith.constant 0 : i32
      %228 = arith.cmpi eq, %c8_i32_107, %c0_i32_108 : i32
      %c1_i32_109 = arith.constant 1 : i32
      %229 = arith.select %228, %c1_i32_109, %c8_i32_107 : i32
      %230 = arith.remsi %224, %229 : i32
      %c0_i32_110 = arith.constant 0 : i32
      %231 = arith.cmpi ne, %230, %c0_i32_110 : i32
      %c0_i32_111 = arith.constant 0 : i32
      %232 = arith.cmpi slt, %230, %c0_i32_111 : i32
      %c0_i32_112 = arith.constant 0 : i32
      %233 = arith.cmpi slt, %229, %c0_i32_112 : i32
      %234 = arith.xori %232, %233 : i1
      %235 = arith.andi %234, %231 : i1
      %236 = arith.addi %230, %229 : i32
      %237 = arith.select %235, %236, %230 : i32
      %c0_i32_113 = arith.constant 0 : i32
      %238 = tpu.memref_slice %arg2[%227, %c0_i32_113] : memref<64x128xf32, #tpu.memory_space<any>> -> memref<1x128xf32, #tpu.memory_space<any>>
      %c0_i32_114 = arith.constant 0 : i32
      %239 = tpu.memref_slice %arg26[%224, %c0_i32_114] : memref<16x128xf32, #tpu.memory_space<vmem>> -> memref<1x128xf32, #tpu.memory_space<vmem>>
      %240 = tpu.memref_slice %arg27[%237] : memref<8x!tpu.dma_semaphore, #tpu.memory_space<semaphore_mem>> -> memref<1x!tpu.dma_semaphore, #tpu.memory_space<semaphore_mem>>
      %241 = tpu.memref_squeeze %240 : memref<1x!tpu.dma_semaphore, #tpu.memory_space<semaphore_mem>> -> memref<!tpu.dma_semaphore, #tpu.memory_space<semaphore_mem>>
      tpu.enqueue_dma source(%238 : memref<1x128xf32, #tpu.memory_space<any>>) target(%239 : memref<1x128xf32, #tpu.memory_space<vmem>>) target_semaphore(%241 : memref<!tpu.dma_semaphore, #tpu.memory_space<semaphore_mem>>)
    }
    %c8_i32_0 = arith.constant 8 : i32
    %c0_i32_1 = arith.constant 0 : i32
    %c16_i32_2 = arith.constant 16 : i32
    %2 = arith.addi %c0_i32_1, %c16_i32_2 : i32
    %c1_i32_3 = arith.constant 1 : i32
    scf.for %arg28 = %c0_i32_1 to %2 step %c1_i32_3  : i32 {
      %c1_i32_105 = arith.constant 1 : i32
      %223 = arith.muli %arg28, %c1_i32_105 : i32
      %c0_i32_106 = arith.constant 0 : i32
      %224 = arith.addi %c0_i32_106, %223 : i32
      %225 = arith.addi %0, %224 : i32
      %226 = arith.index_cast %225 : i32 to index
      %227 = memref.load %arg1[%226] : memref<32xi32, #tpu.memory_space<smem>>
      %c8_i32_107 = arith.constant 8 : i32
      %c0_i32_108 = arith.constant 0 : i32
      %228 = arith.cmpi eq, %c8_i32_107, %c0_i32_108 : i32
      %c1_i32_109 = arith.constant 1 : i32
      %229 = arith.select %228, %c1_i32_109, %c8_i32_107 : i32
      %230 = arith.remsi %224, %229 : i32
      %c0_i32_110 = arith.constant 0 : i32
      %231 = arith.cmpi ne, %230, %c0_i32_110 : i32
      %c0_i32_111 = arith.constant 0 : i32
      %232 = arith.cmpi slt, %230, %c0_i32_111 : i32
      %c0_i32_112 = arith.constant 0 : i32
      %233 = arith.cmpi slt, %229, %c0_i32_112 : i32
      %234 = arith.xori %232, %233 : i1
      %235 = arith.andi %234, %231 : i1
      %236 = arith.addi %230, %229 : i32
      %237 = arith.select %235, %236, %230 : i32
      %c0_i32_113 = arith.constant 0 : i32
      %238 = tpu.memref_slice %arg2[%227, %c0_i32_113] : memref<64x128xf32, #tpu.memory_space<any>> -> memref<1x128xf32, #tpu.memory_space<any>>
      %c0_i32_114 = arith.constant 0 : i32
      %239 = tpu.memref_slice %arg26[%224, %c0_i32_114] : memref<16x128xf32, #tpu.memory_space<vmem>> -> memref<1x128xf32, #tpu.memory_space<vmem>>
      %240 = tpu.memref_slice %arg27[%237] : memref<8x!tpu.dma_semaphore, #tpu.memory_space<semaphore_mem>> -> memref<1x!tpu.dma_semaphore, #tpu.memory_space<semaphore_mem>>
      %241 = tpu.memref_squeeze %240 : memref<1x!tpu.dma_semaphore, #tpu.memory_space<semaphore_mem>> -> memref<!tpu.dma_semaphore, #tpu.memory_space<semaphore_mem>>
      tpu.wait_dma2 semaphore(%241 : memref<!tpu.dma_semaphore, #tpu.memory_space<semaphore_mem>>) src(%238 : memref<1x128xf32, #tpu.memory_space<any>>) dst(%239 : memref<1x128xf32, #tpu.memory_space<vmem>>)
      %c8_i32_115 = arith.constant 8 : i32
      %242 = arith.addi %224, %c8_i32_115 : i32
      %c16_i32_116 = arith.constant 16 : i32
      %243 = arith.cmpi slt, %242, %c16_i32_116 : i32
      %244 = arith.extui %243 : i1 to i32
      %c0_i32_117 = arith.constant 0 : i32
      %245 = arith.cmpi ne, %244, %c0_i32_117 : i32
      scf.if %245 {
        %c8_i32_118 = arith.constant 8 : i32
        %246 = arith.addi %224, %c8_i32_118 : i32
        %247 = arith.addi %0, %246 : i32
        %248 = arith.index_cast %247 : i32 to index
        %249 = memref.load %arg1[%248] : memref<32xi32, #tpu.memory_space<smem>>
        %c8_i32_119 = arith.constant 8 : i32
        %c0_i32_120 = arith.constant 0 : i32
        %250 = arith.cmpi eq, %c8_i32_119, %c0_i32_120 : i32
        %c1_i32_121 = arith.constant 1 : i32
        %251 = arith.select %250, %c1_i32_121, %c8_i32_119 : i32
        %252 = arith.remsi %246, %251 : i32
        %c0_i32_122 = arith.constant 0 : i32
        %253 = arith.cmpi ne, %252, %c0_i32_122 : i32
        %c0_i32_123 = arith.constant 0 : i32
        %254 = arith.cmpi slt, %252, %c0_i32_123 : i32
        %c0_i32_124 = arith.constant 0 : i32
        %255 = arith.cmpi slt, %251, %c0_i32_124 : i32
        %256 = arith.xori %254, %255 : i1
        %257 = arith.andi %256, %253 : i1
        %258 = arith.addi %252, %251 : i32
        %259 = arith.select %257, %258, %252 : i32
        %c0_i32_125 = arith.constant 0 : i32
        %260 = tpu.memref_slice %arg2[%249, %c0_i32_125] : memref<64x128xf32, #tpu.memory_space<any>> -> memref<1x128xf32, #tpu.memory_space<any>>
        %c0_i32_126 = arith.constant 0 : i32
        %261 = tpu.memref_slice %arg26[%246, %c0_i32_126] : memref<16x128xf32, #tpu.memory_space<vmem>> -> memref<1x128xf32, #tpu.memory_space<vmem>>
        %262 = tpu.memref_slice %arg27[%259] : memref<8x!tpu.dma_semaphore, #tpu.memory_space<semaphore_mem>> -> memref<1x!tpu.dma_semaphore, #tpu.memory_space<semaphore_mem>>
        %263 = tpu.memref_squeeze %262 : memref<1x!tpu.dma_semaphore, #tpu.memory_space<semaphore_mem>> -> memref<!tpu.dma_semaphore, #tpu.memory_space<semaphore_mem>>
        tpu.enqueue_dma source(%260 : memref<1x128xf32, #tpu.memory_space<any>>) target(%261 : memref<1x128xf32, #tpu.memory_space<vmem>>) target_semaphore(%263 : memref<!tpu.dma_semaphore, #tpu.memory_space<semaphore_mem>>)
      } else {
      }
    }
    %c16_i32_4 = arith.constant 16 : i32
    %c0 = arith.constant 0 : index
    %c0_5 = arith.constant 0 : index
    %3 = vector.load %arg26[%c0, %c0_5] : memref<16x128xf32, #tpu.memory_space<vmem>>, vector<16x128xf32>
    %4 = vector.shape_cast %3 : vector<16x128xf32> to vector<2x8x128xf32>
    %c0_6 = arith.constant 0 : index
    %c0_7 = arith.constant 0 : index
    %5 = vector.load %arg3[%c0_6, %c0_7] : memref<8x128xf32, #tpu.memory_space<vmem>>, vector<8x128xf32>
    %6 = vector.shape_cast %5 : vector<8x128xf32> to vector<1x8x128xf32>
    %7 = vector.broadcast %6 : vector<1x8x128xf32> to vector<2x8x128xf32>
    %8 = arith.addf %4, %7 : vector<2x8x128xf32>
    %9 = vector.shape_cast %8 : vector<2x8x128xf32> to vector<16x128xf32>
    %10 = arith.truncf %9 : vector<16x128xf32> to vector<16x128xbf16>
    %11 = vector.extract_strided_slice %8 {offsets = [0, 0, 0], sizes = [2, 1, 128], strides = [1, 1, 1]} : vector<2x8x128xf32> to vector<2x1x128xf32>
    %12 = vector.shape_cast %11 : vector<2x1x128xf32> to vector<2x128xf32>
    %c0_8 = arith.constant 0 : index
    %c0_9 = arith.constant 0 : index
    %13 = vector.load %arg7[%c0_8, %c0_9] : memref<128x128xbf16, #tpu.memory_space<vmem>>, vector<128x128xbf16>
    %cst = arith.constant dense<0.000000e+00> : vector<16x128xf32>
    %14 = tpu.matmul %10, %13, %cst {dimension_numbers = #tpu.dot_dimension_numbers<[1], [0], [0], [1], [0, 0, 1, 1], [], []>} : vector<16x128xbf16>, vector<128x128xbf16>, vector<16x128xf32> -> vector<16x128xf32>
    %c0_10 = arith.constant 0 : index
    %c0_11 = arith.constant 0 : index
    %15 = vector.load %arg8[%c0_10, %c0_11] : memref<1x128xf32, #tpu.memory_space<vmem>>, vector<1x128xf32>
    %16 = vector.broadcast %15 : vector<1x128xf32> to vector<16x128xf32>
    %17 = arith.addf %14, %16 : vector<16x128xf32>
    %c0_12 = arith.constant 0 : index
    %c0_13 = arith.constant 0 : index
    %18 = vector.load %arg9[%c0_12, %c0_13] : memref<128x128xbf16, #tpu.memory_space<vmem>>, vector<128x128xbf16>
    %cst_14 = arith.constant dense<0.000000e+00> : vector<16x128xf32>
    %19 = tpu.matmul %10, %18, %cst_14 {dimension_numbers = #tpu.dot_dimension_numbers<[1], [0], [0], [1], [0, 0, 1, 1], [], []>} : vector<16x128xbf16>, vector<128x128xbf16>, vector<16x128xf32> -> vector<16x128xf32>
    %c0_15 = arith.constant 0 : index
    %c0_16 = arith.constant 0 : index
    %20 = vector.load %arg10[%c0_15, %c0_16] : memref<1x128xf32, #tpu.memory_space<vmem>>, vector<1x128xf32>
    %21 = vector.broadcast %20 : vector<1x128xf32> to vector<16x128xf32>
    %22 = arith.addf %19, %21 : vector<16x128xf32>
    %23 = arith.truncf %12 : vector<2x128xf32> to vector<2x128xbf16>
    %c0_17 = arith.constant 0 : index
    %c0_18 = arith.constant 0 : index
    %24 = vector.load %arg5[%c0_17, %c0_18] : memref<128x128xbf16, #tpu.memory_space<vmem>>, vector<128x128xbf16>
    %cst_19 = arith.constant dense<0.000000e+00> : vector<2x128xf32>
    %25 = tpu.matmul %23, %24, %cst_19 {dimension_numbers = #tpu.dot_dimension_numbers<[1], [0], [0], [1], [0, 0, 1, 1], [], []>} : vector<2x128xbf16>, vector<128x128xbf16>, vector<2x128xf32> -> vector<2x128xf32>
    %c0_20 = arith.constant 0 : index
    %c0_21 = arith.constant 0 : index
    %26 = vector.load %arg6[%c0_20, %c0_21] : memref<1x128xf32, #tpu.memory_space<vmem>>, vector<1x128xf32>
    %27 = vector.broadcast %26 : vector<1x128xf32> to vector<2x128xf32>
    %28 = arith.addf %25, %27 : vector<2x128xf32>
    %29 = vector.shape_cast %17 : vector<16x128xf32> to vector<2x8x128xf32>
    %30 = vector.shape_cast %22 : vector<16x128xf32> to vector<2x8x128xf32>
    %31 = vector.shape_cast %28 : vector<2x128xf32> to vector<2x1x128xf32>
    %32 = vector.broadcast %31 : vector<2x1x128xf32> to vector<2x8x128xf32>
    %33 = arith.mulf %32, %29 : vector<2x8x128xf32>
    %cst_22 = arith.constant dense<0.000000e+00> : vector<2x8xf32>
    %34 = vector.multi_reduction <add>, %33, %cst_22 [2] : vector<2x8x128xf32> to vector<2x8xf32>
    %c0_23 = arith.constant 0 : index
    %c0_24 = arith.constant 0 : index
    %c0_25 = arith.constant 0 : index
    %35 = vector.load %arg4[%c0_23, %c0_24, %c0_25] : memref<2x1x8xf32, #tpu.memory_space<vmem>>, vector<2x1x8xf32>
    %36 = vector.shape_cast %35 : vector<2x1x8xf32> to vector<2x8xf32>
    %37 = arith.addf %34, %36 : vector<2x8xf32>
    %cst_26 = arith.constant dense<0xFF800000> : vector<2xf32>
    %38 = vector.multi_reduction <maximumf>, %37, %cst_26 [1] : vector<2x8xf32> to vector<2xf32>
    %39 = vector.shape_cast %38 : vector<2xf32> to vector<2x1xf32>
    %40 = vector.broadcast %39 : vector<2x1xf32> to vector<2x8xf32>
    %41 = arith.subf %37, %40 : vector<2x8xf32>
    %42 = math.exp %41 : vector<2x8xf32>
    %cst_27 = arith.constant dense<0.000000e+00> : vector<2xf32>
    %43 = vector.multi_reduction <add>, %42, %cst_27 [1] : vector<2x8xf32> to vector<2xf32>
    %44 = vector.shape_cast %43 : vector<2xf32> to vector<2x1xf32>
    %45 = vector.broadcast %44 : vector<2x1xf32> to vector<2x8xf32>
    %46 = arith.divf %42, %45 : vector<2x8xf32>
    %47 = vector.shape_cast %46 : vector<2x8xf32> to vector<2x8x1xf32>
    %48 = vector.broadcast %47 : vector<2x8x1xf32> to vector<2x8x128xf32>
    %49 = arith.mulf %48, %30 : vector<2x8x128xf32>
    %cst_28 = arith.constant dense<0.000000e+00> : vector<2x128xf32>
    %50 = vector.multi_reduction <add>, %49, %cst_28 [1] : vector<2x8x128xf32> to vector<2x128xf32>
    %51 = arith.truncf %50 : vector<2x128xf32> to vector<2x128xbf16>
    %c0_29 = arith.constant 0 : index
    %c0_30 = arith.constant 0 : index
    %52 = vector.load %arg11[%c0_29, %c0_30] : memref<128x128xbf16, #tpu.memory_space<vmem>>, vector<128x128xbf16>
    %cst_31 = arith.constant dense<0.000000e+00> : vector<2x128xf32>
    %53 = tpu.matmul %51, %52, %cst_31 {dimension_numbers = #tpu.dot_dimension_numbers<[1], [0], [0], [1], [0, 0, 1, 1], [], []>} : vector<2x128xbf16>, vector<128x128xbf16>, vector<2x128xf32> -> vector<2x128xf32>
    %c0_32 = arith.constant 0 : index
    %c0_33 = arith.constant 0 : index
    %54 = vector.load %arg12[%c0_32, %c0_33] : memref<1x128xf32, #tpu.memory_space<vmem>>, vector<1x128xf32>
    %55 = vector.broadcast %54 : vector<1x128xf32> to vector<2x128xf32>
    %56 = arith.addf %53, %55 : vector<2x128xf32>
    %57 = arith.addf %12, %56 : vector<2x128xf32>
    %c0_34 = arith.constant 0 : index
    %c0_35 = arith.constant 0 : index
    %58 = vector.load %arg13[%c0_34, %c0_35] : memref<1x128xf32, #tpu.memory_space<vmem>>, vector<1x128xf32>
    %c0_36 = arith.constant 0 : index
    %c0_37 = arith.constant 0 : index
    %59 = vector.load %arg14[%c0_36, %c0_37] : memref<1x128xf32, #tpu.memory_space<vmem>>, vector<1x128xf32>
    %cst_38 = arith.constant dense<0.000000e+00> : vector<2xf32>
    %60 = vector.multi_reduction <add>, %57, %cst_38 [1] : vector<2x128xf32> to vector<2xf32>
    %61 = vector.shape_cast %60 : vector<2xf32> to vector<2x1xf32>
    %cst_39 = arith.constant 1.280000e+02 : f32
    %62 = vector.broadcast %cst_39 : f32 to vector<2x1xf32>
    %63 = arith.divf %61, %62 : vector<2x1xf32>
    %64 = vector.broadcast %63 : vector<2x1xf32> to vector<2x128xf32>
    %65 = arith.subf %57, %64 : vector<2x128xf32>
    %66 = arith.mulf %65, %65 : vector<2x128xf32>
    %cst_40 = arith.constant dense<0.000000e+00> : vector<2xf32>
    %67 = vector.multi_reduction <add>, %66, %cst_40 [1] : vector<2x128xf32> to vector<2xf32>
    %68 = vector.shape_cast %67 : vector<2xf32> to vector<2x1xf32>
    %cst_41 = arith.constant 1.280000e+02 : f32
    %69 = vector.broadcast %cst_41 : f32 to vector<2x1xf32>
    %70 = arith.divf %68, %69 : vector<2x1xf32>
    %71 = vector.broadcast %63 : vector<2x1xf32> to vector<2x128xf32>
    %72 = arith.subf %57, %71 : vector<2x128xf32>
    %cst_42 = arith.constant 9.99999996E-13 : f32
    %73 = vector.broadcast %cst_42 : f32 to vector<2x1xf32>
    %74 = arith.addf %70, %73 : vector<2x1xf32>
    %75 = math.rsqrt %74 : vector<2x1xf32>
    %76 = vector.broadcast %75 : vector<2x1xf32> to vector<2x128xf32>
    %77 = arith.mulf %72, %76 : vector<2x128xf32>
    %78 = vector.broadcast %58 : vector<1x128xf32> to vector<2x128xf32>
    %79 = arith.mulf %77, %78 : vector<2x128xf32>
    %80 = vector.broadcast %59 : vector<1x128xf32> to vector<2x128xf32>
    %81 = arith.addf %79, %80 : vector<2x128xf32>
    %82 = arith.truncf %81 : vector<2x128xf32> to vector<2x128xbf16>
    %c0_43 = arith.constant 0 : index
    %c0_44 = arith.constant 0 : index
    %83 = vector.load %arg15[%c0_43, %c0_44] : memref<128x256xbf16, #tpu.memory_space<vmem>>, vector<128x256xbf16>
    %cst_45 = arith.constant dense<0.000000e+00> : vector<2x256xf32>
    %84 = tpu.matmul %82, %83, %cst_45 {dimension_numbers = #tpu.dot_dimension_numbers<[1], [0], [0], [1], [0, 0, 1, 1], [], []>} : vector<2x128xbf16>, vector<128x256xbf16>, vector<2x256xf32> -> vector<2x256xf32>
    %c0_46 = arith.constant 0 : index
    %c0_47 = arith.constant 0 : index
    %85 = vector.load %arg16[%c0_46, %c0_47] : memref<1x256xf32, #tpu.memory_space<vmem>>, vector<1x256xf32>
    %86 = vector.broadcast %85 : vector<1x256xf32> to vector<2x256xf32>
    %87 = arith.addf %84, %86 : vector<2x256xf32>
    %cst_48 = arith.constant 5.000000e-01 : f32
    %88 = vector.broadcast %cst_48 : f32 to vector<2x256xf32>
    %89 = arith.mulf %88, %87 : vector<2x256xf32>
    %cst_49 = arith.constant 4.471500e-02 : f32
    %90 = vector.broadcast %cst_49 : f32 to vector<2x256xf32>
    %91 = arith.mulf %90, %87 : vector<2x256xf32>
    %92 = arith.mulf %91, %87 : vector<2x256xf32>
    %93 = arith.mulf %92, %87 : vector<2x256xf32>
    %94 = arith.addf %87, %93 : vector<2x256xf32>
    %cst_50 = arith.constant 0.797884583 : f32
    %95 = vector.broadcast %cst_50 : f32 to vector<2x256xf32>
    %96 = arith.mulf %95, %94 : vector<2x256xf32>
    %97 = math.tanh %96 : vector<2x256xf32>
    %cst_51 = arith.constant 1.000000e+00 : f32
    %98 = vector.broadcast %cst_51 : f32 to vector<2x256xf32>
    %99 = arith.addf %98, %97 : vector<2x256xf32>
    %100 = arith.mulf %89, %99 : vector<2x256xf32>
    %101 = arith.truncf %100 : vector<2x256xf32> to vector<2x256xbf16>
    %c0_52 = arith.constant 0 : index
    %c0_53 = arith.constant 0 : index
    %102 = vector.load %arg17[%c0_52, %c0_53] : memref<256x128xbf16, #tpu.memory_space<vmem>>, vector<256x128xbf16>
    %cst_54 = arith.constant dense<0.000000e+00> : vector<2x128xf32>
    %103 = tpu.matmul %101, %102, %cst_54 {dimension_numbers = #tpu.dot_dimension_numbers<[1], [0], [0], [1], [0, 0, 1, 1], [], []>} : vector<2x256xbf16>, vector<256x128xbf16>, vector<2x128xf32> -> vector<2x128xf32>
    %c0_55 = arith.constant 0 : index
    %c0_56 = arith.constant 0 : index
    %104 = vector.load %arg18[%c0_55, %c0_56] : memref<1x128xf32, #tpu.memory_space<vmem>>, vector<1x128xf32>
    %105 = vector.broadcast %104 : vector<1x128xf32> to vector<2x128xf32>
    %106 = arith.addf %103, %105 : vector<2x128xf32>
    %107 = arith.addf %81, %106 : vector<2x128xf32>
    %c0_57 = arith.constant 0 : index
    %c0_58 = arith.constant 0 : index
    %108 = vector.load %arg19[%c0_57, %c0_58] : memref<1x128xf32, #tpu.memory_space<vmem>>, vector<1x128xf32>
    %c0_59 = arith.constant 0 : index
    %c0_60 = arith.constant 0 : index
    %109 = vector.load %arg20[%c0_59, %c0_60] : memref<1x128xf32, #tpu.memory_space<vmem>>, vector<1x128xf32>
    %cst_61 = arith.constant dense<0.000000e+00> : vector<2xf32>
    %110 = vector.multi_reduction <add>, %107, %cst_61 [1] : vector<2x128xf32> to vector<2xf32>
    %111 = vector.shape_cast %110 : vector<2xf32> to vector<2x1xf32>
    %cst_62 = arith.constant 1.280000e+02 : f32
    %112 = vector.broadcast %cst_62 : f32 to vector<2x1xf32>
    %113 = arith.divf %111, %112 : vector<2x1xf32>
    %114 = vector.broadcast %113 : vector<2x1xf32> to vector<2x128xf32>
    %115 = arith.subf %107, %114 : vector<2x128xf32>
    %116 = arith.mulf %115, %115 : vector<2x128xf32>
    %cst_63 = arith.constant dense<0.000000e+00> : vector<2xf32>
    %117 = vector.multi_reduction <add>, %116, %cst_63 [1] : vector<2x128xf32> to vector<2xf32>
    %118 = vector.shape_cast %117 : vector<2xf32> to vector<2x1xf32>
    %cst_64 = arith.constant 1.280000e+02 : f32
    %119 = vector.broadcast %cst_64 : f32 to vector<2x1xf32>
    %120 = arith.divf %118, %119 : vector<2x1xf32>
    %121 = vector.broadcast %113 : vector<2x1xf32> to vector<2x128xf32>
    %122 = arith.subf %107, %121 : vector<2x128xf32>
    %cst_65 = arith.constant 9.99999996E-13 : f32
    %123 = vector.broadcast %cst_65 : f32 to vector<2x1xf32>
    %124 = arith.addf %120, %123 : vector<2x1xf32>
    %125 = math.rsqrt %124 : vector<2x1xf32>
    %126 = vector.broadcast %125 : vector<2x1xf32> to vector<2x128xf32>
    %127 = arith.mulf %122, %126 : vector<2x128xf32>
    %128 = vector.broadcast %108 : vector<1x128xf32> to vector<2x128xf32>
    %129 = arith.mulf %127, %128 : vector<2x128xf32>
    %130 = vector.broadcast %109 : vector<1x128xf32> to vector<2x128xf32>
    %131 = arith.addf %129, %130 : vector<2x128xf32>
    %cst_66 = arith.constant dense<0.000000e+00> : vector<2xf32>
    %132 = vector.multi_reduction <add>, %131, %cst_66 [1] : vector<2x128xf32> to vector<2xf32>
    %133 = vector.shape_cast %132 : vector<2xf32> to vector<2x1xf32>
    %cst_67 = arith.constant 1.280000e+02 : f32
    %134 = vector.broadcast %cst_67 : f32 to vector<2x1xf32>
    %135 = arith.divf %133, %134 : vector<2x1xf32>
    %136 = vector.broadcast %135 : vector<2x1xf32> to vector<2x128xf32>
    %137 = arith.subf %131, %136 : vector<2x128xf32>
    %138 = arith.mulf %137, %137 : vector<2x128xf32>
    %cst_68 = arith.constant dense<0.000000e+00> : vector<2xf32>
    %139 = vector.multi_reduction <add>, %138, %cst_68 [1] : vector<2x128xf32> to vector<2xf32>
    %140 = vector.shape_cast %139 : vector<2xf32> to vector<2x1xf32>
    %cst_69 = arith.constant 1.280000e+02 : f32
    %141 = vector.broadcast %cst_69 : f32 to vector<2x1xf32>
    %142 = arith.divf %140, %141 : vector<2x1xf32>
    %143 = vector.broadcast %135 : vector<2x1xf32> to vector<2x128xf32>
    %144 = arith.subf %131, %143 : vector<2x128xf32>
    %cst_70 = arith.constant 9.99999996E-13 : f32
    %145 = vector.broadcast %cst_70 : f32 to vector<2x1xf32>
    %146 = arith.addf %142, %145 : vector<2x1xf32>
    %147 = math.rsqrt %146 : vector<2x1xf32>
    %148 = vector.broadcast %147 : vector<2x1xf32> to vector<2x128xf32>
    %149 = arith.mulf %144, %148 : vector<2x128xf32>
    %150 = arith.truncf %149 : vector<2x128xf32> to vector<2x128xbf16>
    %c0_71 = arith.constant 0 : index
    %c0_72 = arith.constant 0 : index
    %151 = vector.load %arg21[%c0_71, %c0_72] : memref<128x128xbf16, #tpu.memory_space<vmem>>, vector<128x128xbf16>
    %cst_73 = arith.constant dense<0.000000e+00> : vector<2x128xf32>
    %152 = tpu.matmul %150, %151, %cst_73 {dimension_numbers = #tpu.dot_dimension_numbers<[1], [0], [0], [1], [0, 0, 1, 1], [], []>} : vector<2x128xbf16>, vector<128x128xbf16>, vector<2x128xf32> -> vector<2x128xf32>
    %c0_74 = arith.constant 0 : index
    %c0_75 = arith.constant 0 : index
    %153 = vector.load %arg22[%c0_74, %c0_75] : memref<1x128xf32, #tpu.memory_space<vmem>>, vector<1x128xf32>
    %154 = vector.broadcast %153 : vector<1x128xf32> to vector<2x128xf32>
    %155 = arith.addf %152, %154 : vector<2x128xf32>
    %cst_76 = arith.constant 5.000000e-01 : f32
    %156 = vector.broadcast %cst_76 : f32 to vector<2x128xf32>
    %157 = arith.mulf %156, %155 : vector<2x128xf32>
    %cst_77 = arith.constant 0.707106769 : f32
    %158 = vector.broadcast %cst_77 : f32 to vector<2x128xf32>
    %159 = arith.mulf %155, %158 : vector<2x128xf32>
    %cst_78 = arith.constant 0.000000e+00 : f32
    %160 = vector.broadcast %cst_78 : f32 to vector<2x128xf32>
    %161 = arith.cmpf oge, %159, %160 : vector<2x128xf32>
    %cst_79 = arith.constant 1.000000e+00 : f32
    %cst_80 = arith.constant -1.000000e+00 : f32
    %162 = vector.broadcast %cst_79 : f32 to vector<2x128xf32>
    %163 = vector.broadcast %cst_80 : f32 to vector<2x128xf32>
    %164 = arith.select %161, %162, %163 : vector<2x128xi1>, vector<2x128xf32>
    %165 = math.absf %159 : vector<2x128xf32>
    %cst_81 = arith.constant 0.327591091 : f32
    %166 = vector.broadcast %cst_81 : f32 to vector<2x128xf32>
    %167 = arith.mulf %166, %165 : vector<2x128xf32>
    %cst_82 = arith.constant 1.000000e+00 : f32
    %168 = vector.broadcast %cst_82 : f32 to vector<2x128xf32>
    %169 = arith.addf %168, %167 : vector<2x128xf32>
    %cst_83 = arith.constant 1.000000e+00 : f32
    %170 = vector.broadcast %cst_83 : f32 to vector<2x128xf32>
    %171 = arith.divf %170, %169 : vector<2x128xf32>
    %cst_84 = arith.constant 1.06140542 : f32
    %172 = vector.broadcast %cst_84 : f32 to vector<2x128xf32>
    %173 = arith.mulf %172, %171 : vector<2x128xf32>
    %cst_85 = arith.constant -1.45315206 : f32
    %174 = vector.broadcast %cst_85 : f32 to vector<2x128xf32>
    %175 = arith.addf %173, %174 : vector<2x128xf32>
    %176 = arith.mulf %175, %171 : vector<2x128xf32>
    %cst_86 = arith.constant 1.42141378 : f32
    %177 = vector.broadcast %cst_86 : f32 to vector<2x128xf32>
    %178 = arith.addf %176, %177 : vector<2x128xf32>
    %179 = arith.mulf %178, %171 : vector<2x128xf32>
    %cst_87 = arith.constant -0.284496725 : f32
    %180 = vector.broadcast %cst_87 : f32 to vector<2x128xf32>
    %181 = arith.addf %179, %180 : vector<2x128xf32>
    %182 = arith.mulf %181, %171 : vector<2x128xf32>
    %cst_88 = arith.constant 0.254829586 : f32
    %183 = vector.broadcast %cst_88 : f32 to vector<2x128xf32>
    %184 = arith.addf %182, %183 : vector<2x128xf32>
    %185 = arith.mulf %184, %171 : vector<2x128xf32>
    %cst_89 = arith.constant 0.000000e+00 : f32
    %186 = vector.broadcast %cst_89 : f32 to vector<2x128xf32>
    %187 = arith.subf %186, %165 : vector<2x128xf32>
    %188 = arith.mulf %187, %165 : vector<2x128xf32>
    %189 = math.exp %188 : vector<2x128xf32>
    %190 = arith.mulf %185, %189 : vector<2x128xf32>
    %cst_90 = arith.constant 1.000000e+00 : f32
    %191 = vector.broadcast %cst_90 : f32 to vector<2x128xf32>
    %192 = arith.subf %191, %190 : vector<2x128xf32>
    %193 = arith.mulf %164, %192 : vector<2x128xf32>
    %cst_91 = arith.constant 1.000000e+00 : f32
    %194 = vector.broadcast %cst_91 : f32 to vector<2x128xf32>
    %195 = arith.addf %194, %193 : vector<2x128xf32>
    %196 = arith.mulf %157, %195 : vector<2x128xf32>
    %cst_92 = arith.constant dense<0.000000e+00> : vector<2xf32>
    %197 = vector.multi_reduction <add>, %196, %cst_92 [1] : vector<2x128xf32> to vector<2xf32>
    %198 = vector.shape_cast %197 : vector<2xf32> to vector<2x1xf32>
    %cst_93 = arith.constant 1.280000e+02 : f32
    %199 = vector.broadcast %cst_93 : f32 to vector<2x1xf32>
    %200 = arith.divf %198, %199 : vector<2x1xf32>
    %201 = vector.broadcast %200 : vector<2x1xf32> to vector<2x128xf32>
    %202 = arith.subf %196, %201 : vector<2x128xf32>
    %203 = arith.mulf %202, %202 : vector<2x128xf32>
    %cst_94 = arith.constant dense<0.000000e+00> : vector<2xf32>
    %204 = vector.multi_reduction <add>, %203, %cst_94 [1] : vector<2x128xf32> to vector<2xf32>
    %205 = vector.shape_cast %204 : vector<2xf32> to vector<2x1xf32>
    %cst_95 = arith.constant 1.280000e+02 : f32
    %206 = vector.broadcast %cst_95 : f32 to vector<2x1xf32>
    %207 = arith.divf %205, %206 : vector<2x1xf32>
    %208 = vector.broadcast %200 : vector<2x1xf32> to vector<2x128xf32>
    %209 = arith.subf %196, %208 : vector<2x128xf32>
    %cst_96 = arith.constant 9.99999996E-13 : f32
    %210 = vector.broadcast %cst_96 : f32 to vector<2x1xf32>
    %211 = arith.addf %207, %210 : vector<2x1xf32>
    %212 = math.rsqrt %211 : vector<2x1xf32>
    %213 = vector.broadcast %212 : vector<2x1xf32> to vector<2x128xf32>
    %214 = arith.mulf %209, %213 : vector<2x128xf32>
    %215 = arith.truncf %214 : vector<2x128xf32> to vector<2x128xbf16>
    %c0_97 = arith.constant 0 : index
    %c0_98 = arith.constant 0 : index
    %216 = vector.load %arg23[%c0_97, %c0_98] : memref<128x128xbf16, #tpu.memory_space<vmem>>, vector<128x128xbf16>
    %cst_99 = arith.constant dense<0.000000e+00> : vector<2x128xf32>
    %217 = tpu.matmul %215, %216, %cst_99 {dimension_numbers = #tpu.dot_dimension_numbers<[1], [0], [0], [1], [0, 0, 1, 1], [], []>} : vector<2x128xbf16>, vector<128x128xbf16>, vector<2x128xf32> -> vector<2x128xf32>
    %c0_100 = arith.constant 0 : index
    %c0_101 = arith.constant 0 : index
    %218 = vector.load %arg24[%c0_100, %c0_101] : memref<1x128xf32, #tpu.memory_space<vmem>>, vector<1x128xf32>
    %219 = vector.broadcast %218 : vector<1x128xf32> to vector<2x128xf32>
    %220 = arith.addf %217, %219 : vector<2x128xf32>
    %221 = vector.shape_cast %220 : vector<2x128xf32> to vector<2x1x128xf32>
    %c0_102 = arith.constant 0 : index
    %c0_103 = arith.constant 0 : index
    %c0_104 = arith.constant 0 : index
    %222 = vector.load %arg25[%c0_102, %c0_103, %c0_104] : memref<2x1x128xf32, #tpu.memory_space<vmem>>, vector<2x1x128xf32>
    tpu.vector_store %arg25[%c0_102, %c0_103, %c0_104], %221 {strides = array<i32>} : memref<2x1x128xf32, #tpu.memory_space<vmem>>, vector<2x1x128xf32>,
    return
  }
  func.func @transform_1(%arg0: i32, %arg1: memref<32xi32, #tpu.memory_space<smem>>) -> (i32, i32) {
    %c0_i32 = arith.constant 0 : i32
    %c0_i32_0 = arith.constant 0 : i32
    %c0_i32_1 = arith.constant 0 : i32
    return %c0_i32, %c0_i32_0 : i32, i32
  }
  func.func @transform_2(%arg0: i32, %arg1: memref<32xi32, #tpu.memory_space<smem>>) -> (i32, i32, i32) {
    %c0_i32 = arith.constant 0 : i32
    %c0_i32_0 = arith.constant 0 : i32
    %c0_i32_1 = arith.constant 0 : i32
    return %arg0, %c0_i32, %c0_i32_0 : i32, i32, i32
  }
  func.func @transform_3(%arg0: i32, %arg1: memref<32xi32, #tpu.memory_space<smem>>) -> (i32, i32) {
    %c0_i32 = arith.constant 0 : i32
    %c0_i32_0 = arith.constant 0 : i32
    %c0_i32_1 = arith.constant 0 : i32
    return %c0_i32, %c0_i32_0 : i32, i32
  }
  func.func @transform_4(%arg0: i32, %arg1: memref<32xi32, #tpu.memory_space<smem>>) -> (i32, i32) {
    %c0_i32 = arith.constant 0 : i32
    %c0_i32_0 = arith.constant 0 : i32
    %c0_i32_1 = arith.constant 0 : i32
    return %c0_i32, %c0_i32_0 : i32, i32
  }
  func.func @transform_5(%arg0: i32, %arg1: memref<32xi32, #tpu.memory_space<smem>>) -> (i32, i32) {
    %c0_i32 = arith.constant 0 : i32
    %c0_i32_0 = arith.constant 0 : i32
    %c0_i32_1 = arith.constant 0 : i32
    return %c0_i32, %c0_i32_0 : i32, i32
  }
  func.func @transform_6(%arg0: i32, %arg1: memref<32xi32, #tpu.memory_space<smem>>) -> (i32, i32) {
    %c0_i32 = arith.constant 0 : i32
    %c0_i32_0 = arith.constant 0 : i32
    %c0_i32_1 = arith.constant 0 : i32
    return %c0_i32, %c0_i32_0 : i32, i32
  }
  func.func @transform_7(%arg0: i32, %arg1: memref<32xi32, #tpu.memory_space<smem>>) -> (i32, i32) {
    %c0_i32 = arith.constant 0 : i32
    %c0_i32_0 = arith.constant 0 : i32
    %c0_i32_1 = arith.constant 0 : i32
    return %c0_i32, %c0_i32_0 : i32, i32
  }
  func.func @transform_8(%arg0: i32, %arg1: memref<32xi32, #tpu.memory_space<smem>>) -> (i32, i32) {
    %c0_i32 = arith.constant 0 : i32
    %c0_i32_0 = arith.constant 0 : i32
    %c0_i32_1 = arith.constant 0 : i32
    return %c0_i32, %c0_i32_0 : i32, i32
  }
  func.func @transform_9(%arg0: i32, %arg1: memref<32xi32, #tpu.memory_space<smem>>) -> (i32, i32) {
    %c0_i32 = arith.constant 0 : i32
    %c0_i32_0 = arith.constant 0 : i32
    %c0_i32_1 = arith.constant 0 : i32
    return %c0_i32, %c0_i32_0 : i32, i32
  }
  func.func @transform_10(%arg0: i32, %arg1: memref<32xi32, #tpu.memory_space<smem>>) -> (i32, i32) {
    %c0_i32 = arith.constant 0 : i32
    %c0_i32_0 = arith.constant 0 : i32
    %c0_i32_1 = arith.constant 0 : i32
    return %c0_i32, %c0_i32_0 : i32, i32
  }
  func.func @transform_11(%arg0: i32, %arg1: memref<32xi32, #tpu.memory_space<smem>>) -> (i32, i32) {
    %c0_i32 = arith.constant 0 : i32
    %c0_i32_0 = arith.constant 0 : i32
    %c0_i32_1 = arith.constant 0 : i32
    return %c0_i32, %c0_i32_0 : i32, i32
  }
  func.func @transform_12(%arg0: i32, %arg1: memref<32xi32, #tpu.memory_space<smem>>) -> (i32, i32) {
    %c0_i32 = arith.constant 0 : i32
    %c0_i32_0 = arith.constant 0 : i32
    %c0_i32_1 = arith.constant 0 : i32
    return %c0_i32, %c0_i32_0 : i32, i32
  }
  func.func @transform_13(%arg0: i32, %arg1: memref<32xi32, #tpu.memory_space<smem>>) -> (i32, i32) {
    %c0_i32 = arith.constant 0 : i32
    %c0_i32_0 = arith.constant 0 : i32
    %c0_i32_1 = arith.constant 0 : i32
    return %c0_i32, %c0_i32_0 : i32, i32
  }
  func.func @transform_14(%arg0: i32, %arg1: memref<32xi32, #tpu.memory_space<smem>>) -> (i32, i32) {
    %c0_i32 = arith.constant 0 : i32
    %c0_i32_0 = arith.constant 0 : i32
    %c0_i32_1 = arith.constant 0 : i32
    return %c0_i32, %c0_i32_0 : i32, i32
  }
  func.func @transform_15(%arg0: i32, %arg1: memref<32xi32, #tpu.memory_space<smem>>) -> (i32, i32) {
    %c0_i32 = arith.constant 0 : i32
    %c0_i32_0 = arith.constant 0 : i32
    %c0_i32_1 = arith.constant 0 : i32
    return %c0_i32, %c0_i32_0 : i32, i32
  }
  func.func @transform_16(%arg0: i32, %arg1: memref<32xi32, #tpu.memory_space<smem>>) -> (i32, i32) {
    %c0_i32 = arith.constant 0 : i32
    %c0_i32_0 = arith.constant 0 : i32
    %c0_i32_1 = arith.constant 0 : i32
    return %c0_i32, %c0_i32_0 : i32, i32
  }
  func.func @transform_17(%arg0: i32, %arg1: memref<32xi32, #tpu.memory_space<smem>>) -> (i32, i32) {
    %c0_i32 = arith.constant 0 : i32
    %c0_i32_0 = arith.constant 0 : i32
    %c0_i32_1 = arith.constant 0 : i32
    return %c0_i32, %c0_i32_0 : i32, i32
  }
  func.func @transform_18(%arg0: i32, %arg1: memref<32xi32, #tpu.memory_space<smem>>) -> (i32, i32) {
    %c0_i32 = arith.constant 0 : i32
    %c0_i32_0 = arith.constant 0 : i32
    %c0_i32_1 = arith.constant 0 : i32
    return %c0_i32, %c0_i32_0 : i32, i32
  }
  func.func @transform_19(%arg0: i32, %arg1: memref<32xi32, #tpu.memory_space<smem>>) -> (i32, i32) {
    %c0_i32 = arith.constant 0 : i32
    %c0_i32_0 = arith.constant 0 : i32
    %c0_i32_1 = arith.constant 0 : i32
    return %c0_i32, %c0_i32_0 : i32, i32
  }
  func.func @transform_20(%arg0: i32, %arg1: memref<32xi32, #tpu.memory_space<smem>>) -> (i32, i32) {
    %c0_i32 = arith.constant 0 : i32
    %c0_i32_0 = arith.constant 0 : i32
    %c0_i32_1 = arith.constant 0 : i32
    return %c0_i32, %c0_i32_0 : i32, i32
  }
  func.func @transform_21(%arg0: i32, %arg1: memref<32xi32, #tpu.memory_space<smem>>) -> (i32, i32) {
    %c0_i32 = arith.constant 0 : i32
    %c0_i32_0 = arith.constant 0 : i32
    %c0_i32_1 = arith.constant 0 : i32
    return %c0_i32, %c0_i32_0 : i32, i32
  }
  func.func @transform_22(%arg0: i32, %arg1: memref<32xi32, #tpu.memory_space<smem>>) -> (i32, i32) {
    %c0_i32 = arith.constant 0 : i32
    %c0_i32_0 = arith.constant 0 : i32
    %c0_i32_1 = arith.constant 0 : i32
    return %c0_i32, %c0_i32_0 : i32, i32
  }
  func.func @transform_23(%arg0: i32, %arg1: memref<32xi32, #tpu.memory_space<smem>>) -> (i32, i32, i32) {
    %c0_i32 = arith.constant 0 : i32
    %c0_i32_0 = arith.constant 0 : i32
    %c0_i32_1 = arith.constant 0 : i32
    return %arg0, %c0_i32, %c0_i32_0 : i32, i32, i32
  }
}

</mosaic_0001>

<llo_original>
// kernel: tpu_custom_call.1
$region0: #{tpu_custom_call.1}
  #allocation0 [shape = 'u32[]', space=smem, size = 0x4, offset = 0x4, fixed_abs, tag = 'smem constant byte address 0x4 - core index']
  #allocation1 [shape = 'u32[72,128]{1,0:T(1,128)}', space=vmem, size = 0x9000, scoped, tag = 'internal scratch']
  #allocation2 [shape = 'f32[16,128]{1,0:T(8,128)}', space=vmem, size = 0x2000, scoped, tag = 'scratch operand']
  #allocation3 [shape = 's32[8]{0}', space=sflag, size = 0x20, scoped, tag = 'scratch operand']
  #allocation4 [shape = 's32[1]{0}', space=sflag, size = 0x4, scoped, tag = 'scoped memory for tpu_custom_call.1']
  #allocation5 [shape = 'u8[512]{0}', space=smem, size = 0x200, scoped, tag = 'prefetched SMEM operand 0']
  #allocation24 [shape = 's32[]', space=sflag, size = 0x4, offset = 0, fixed_abs, tag = 'sflag constant byte address 0x0 - dummy sync flag']
  #allocation25 [shape = 's32[]', space=sflag, size = 0x4, offset = 0, fixed_abs, tag = 'sflag constant byte address 0x0 - dummy sync flag']
  #allocation26 [shape = 'u32[]', space=smem, size = 0x4, offset = 0x44, fixed_abs, tag = 'smem constant byte address 0x44 - assertion arg 0']
  #allocation27 [shape = 'u32[]', space=smem, size = 0x4, offset = 0x48, fixed_abs, tag = 'smem constant byte address 0x48 - assertion arg 1']
  #allocation28 [shape = 's32[]', space=sflag, size = 0x4, offset = 0, fixed_abs, tag = 'sflag constant byte address 0x0 - dummy sync flag']
  #allocation29 [shape = 's32[]', space=sflag, size = 0x4, offset = 0, fixed_abs, tag = 'sflag constant byte address 0x0 - dummy sync flag']
  %s0 = inlined_call_operand.hbm [shape: s32[32], index: 0, kind: input, shape index: {}]
  %s1 = inlined_call_operand.hbm [shape: f32[64,128], index: 1, kind: input, shape index: {}]
  %s2 = inlined_call_operand.hbm [shape: f32[8,128], index: 2, kind: input, shape index: {}]
  %s3 = inlined_call_operand.hbm [shape: f32[4,1,8], index: 3, kind: input, shape index: {}]
  %s4 = inlined_call_operand.hbm [shape: bf16[128,128], index: 4, kind: input, shape index: {}]
  %s5 = inlined_call_operand.vmem [shape: f32[1,128], index: 5, kind: input, shape index: {}]
  %s6 = inlined_call_operand.hbm [shape: bf16[128,128], index: 6, kind: input, shape index: {}]
  %s7 = inlined_call_operand.vmem [shape: f32[1,128], index: 7, kind: input, shape index: {}]
  %s8 = inlined_call_operand.hbm [shape: bf16[128,128], index: 8, kind: input, shape index: {}]
  %s9 = inlined_call_operand.vmem [shape: f32[1,128], index: 9, kind: input, shape index: {}]
  %s10 = inlined_call_operand.hbm [shape: bf16[128,128], index: 10, kind: input, shape index: {}]
  %s11 = inlined_call_operand.vmem [shape: f32[1,128], index: 11, kind: input, shape index: {}]
  %s12 = inlined_call_operand.vmem [shape: f32[1,128], index: 12, kind: input, shape index: {}]
  %s13 = inlined_call_operand.vmem [shape: f32[1,128], index: 13, kind: input, shape index: {}]
  %s14 = inlined_call_operand.hbm [shape: bf16[128,256], index: 14, kind: input, shape index: {}]
  %s15 = inlined_call_operand.vmem [shape: f32[1,256], index: 15, kind: input, shape index: {}]
  %s16 = inlined_call_operand.hbm [shape: bf16[256,128], index: 16, kind: input, shape index: {}]
  %s17 = inlined_call_operand.vmem [shape: f32[1,128], index: 17, kind: input, shape index: {}]
  %s18 = inlined_call_operand.vmem [shape: f32[1,128], index: 18, kind: input, shape index: {}]
  %s19 = inlined_call_operand.vmem [shape: f32[1,128], index: 19, kind: input, shape index: {}]
  %s20 = inlined_call_operand.hbm [shape: bf16[128,128], index: 20, kind: input, shape index: {}]
  %s21 = inlined_call_operand.vmem [shape: f32[1,128], index: 21, kind: input, shape index: {}]
  %s22 = inlined_call_operand.hbm [shape: bf16[128,128], index: 22, kind: input, shape index: {}]
  %s23 = inlined_call_operand.vmem [shape: f32[1,128], index: 23, kind: input, shape index: {}]
  %s24 = inlined_call_operand.hbm [shape: f32[4,1,128], index: 24, kind: output, shape index: {}]
  %s25 = sld [smem:[#allocation0]]
  $region187: #{tpu_custom_call.1} parent=0
    _
  %s27 = ssub.s32 1, %s25
  %s28 = scalar_select 0, %s27, %s25
  %s30 = sshll.u32 %s0, 4
  %s31 = int_to_ptr.hbm [resolvable:$true] %s30
  %33 = dma.hbm_to_smem %s31, 16, [#allocation5], [#allocation4]
  %35 = dma.done [#allocation4], 16
  %36 = sfence
  $region1: #{tpu_custom_call.1} parent=0
    #allocation6 [shape = 'u8[4096]{0}', space=vmem, size = 0x1000, scoped, tag = 'input window, operand 2, single buffered']
    #allocation7 [shape = 's32[2]{0}', space=sflag, size = 0x8, scoped, tag = 'scoped memory for tpu_custom_call.1']
    #allocation8 [shape = 's32[2]{0}', space=sflag, size = 0x8, scoped, tag = 'scoped memory for tpu_custom_call.1']
    #allocation9 [shape = 'u8[2048]{0}', space=vmem, size = 0x800, scoped, tag = 'input window, operand 3']
    #allocation10 [shape = 's32[2]{0}', space=sflag, size = 0x8, scoped, tag = 'scoped memory for tpu_custom_call.1']
    #allocation11 [shape = 'u8[32768]{0}', space=vmem, size = 0x8000, scoped, tag = 'input window, operand 4, single buffered']
    #allocation12 [shape = 'u8[32768]{0}', space=vmem, size = 0x8000, scoped, tag = 'input window, operand 6, single buffered']
    #allocation13 [shape = 's32[1]{0}', space=sflag, size = 0x4, scoped, tag = 'scoped memory for tpu_custom_call.1']
    #allocation14 [shape = 'u8[32768]{0}', space=vmem, size = 0x8000, scoped, tag = 'input window, operand 8, single buffered']
    #allocation15 [shape = 'u8[32768]{0}', space=vmem, size = 0x8000, scoped, tag = 'input window, operand 10, single buffered']
    #allocation16 [shape = 's32[1]{0}', space=sflag, size = 0x4, scoped, tag = 'scoped memory for tpu_custom_call.1']
    #allocation17 [shape = 'u8[65536]{0}', space=vmem, size = 0x10000, scoped, tag = 'input window, operand 14, single buffered']
    #allocation18 [shape = 'u8[65536]{0}', space=vmem, size = 0x10000, scoped, tag = 'input window, operand 16, single buffered']
    #allocation19 [shape = 's32[1]{0}', space=sflag, size = 0x4, scoped, tag = 'scoped memory for tpu_custom_call.1']
    #allocation20 [shape = 'u8[32768]{0}', space=vmem, size = 0x8000, scoped, tag = 'input window, operand 20, single buffered']
    #allocation21 [shape = 'u8[32768]{0}', space=vmem, size = 0x8000, scoped, tag = 'input window, operand 22, single buffered']
    #allocation22 [shape = 's32[1]{0}', space=sflag, size = 0x4, scoped, tag = 'scoped memory for tpu_custom_call.1']
    #allocation23 [shape = 'u8[2048]{0}', space=vmem, size = 0x800, scoped, tag = 'output window, operand 0']
    %37 = vsyncpa [#allocation7], 0
    %38 = vsyncpa [#allocation10], 0
    %s39 = scalar_lea.sflag [#allocation10], 1
    %40 = vsyncpa %s39, 0
    %41 = vsyncpa [#allocation13], 0
    %42 = vsyncpa [#allocation16], 0
    %43 = vsyncpa [#allocation19], 0
    %44 = vsyncpa [#allocation22], 0
    %45 = vsyncpa [#allocation8], 0
    %s46 = scalar_lea.sflag [#allocation8], 1
    %47 = vsyncpa %s46, 0
    loop: start=0, step=1, limit=4
    $region2: #{tpu_custom_call.1} parent=1 // loop_pre_header
      _
    $region3: #{tpu_custom_call.1} parent=1 // loop_header
      %s49 = sphi 0, %s53
      %p50 = scmp.ge.s32.totalorder %s49, 4
      %s57 = sphi 0, %s57
      %s59 = sphi 0, %s57
      %s60 = sphi 0, %s59
      %s74 = sphi 0, %s60
      %s80 = sphi 0, %s82
      %s83 = sphi 0, %s80
      %s84 = sphi 0, %s83
      %s100 = sphi 0, %s84
      %s104 = sphi 0, %s104
      %s106 = sphi 0, %s104
      %s107 = sphi 0, %s106
      %s121 = sphi 0, %s107
      %s125 = sphi 0, %s125
      %s127 = sphi 0, %s125
      %s128 = sphi 0, %s127
      %s142 = sphi 0, %s128
      %s146 = sphi 0, %s146
      %s148 = sphi 0, %s146
      %s149 = sphi 0, %s148
      %s163 = sphi 0, %s149
      %s167 = sphi 0, %s167
      %s169 = sphi 0, %s167
      %s170 = sphi 0, %s169
      %s184 = sphi 0, %s170
      %s188 = sphi 0, %s188
      %s190 = sphi 0, %s188
      %s191 = sphi 0, %s190
      %s205 = sphi 0, %s191
      %s209 = sphi 0, %s209
      %s211 = sphi 0, %s209
      %s212 = sphi 0, %s211
      %s226 = sphi 0, %s212
      %s230 = sphi 0, %s230
      %s232 = sphi 0, %s230
      %s233 = sphi 0, %s232
      %s247 = sphi 0, %s233
      %s251 = sphi 0, %s251
      %s253 = sphi 0, %s251
      %s254 = sphi 0, %s253
      %s268 = sphi 0, %s254
      %s272 = sphi 0, %s272
      %s274 = sphi 0, %s272
      %s275 = sphi 0, %s274
      %s289 = sphi 0, %s275
      %s293 = sphi 0, %s293
      %s295 = sphi 0, %s293
      %s296 = sphi 0, %s295
      %s310 = sphi 0, %s296
      %s314 = sphi 0, %s314
      %s316 = sphi 0, %s314
      %s317 = sphi 0, %s316
      %s331 = sphi 0, %s317
      %s335 = sphi 0, %s335
      %s337 = sphi 0, %s335
      %s338 = sphi 0, %s337
      %s352 = sphi 0, %s338
      %s356 = sphi 0, %s356
      %s358 = sphi 0, %s356
      %s359 = sphi 0, %s358
      %s373 = sphi 0, %s359
      %s377 = sphi 0, %s377
      %s379 = sphi 0, %s377
      %s380 = sphi 0, %s379
      %s394 = sphi 0, %s380
      %s398 = sphi 0, %s398
      %s400 = sphi 0, %s398
      %s401 = sphi 0, %s400
      %s415 = sphi 0, %s401
      %s419 = sphi 0, %s419
      %s421 = sphi 0, %s419
      %s422 = sphi 0, %s421
      %s436 = sphi 0, %s422
      %s440 = sphi 0, %s440
      %s442 = sphi 0, %s440
      %s443 = sphi 0, %s442
      %s457 = sphi 0, %s443
      %s461 = sphi 0, %s461
      %s463 = sphi 0, %s461
      %s464 = sphi 0, %s463
      %s478 = sphi 0, %s464
      %s482 = sphi 0, %s482
      %s484 = sphi 0, %s482
      %s485 = sphi 0, %s484
      %s499 = sphi 0, %s485
      %s503 = sphi 0, %s503
      %s505 = sphi 0, %s503
      %s506 = sphi 0, %s505
      %s520 = sphi 0, %s506
      %s526 = sphi 0, %s528
      %s529 = sphi 0, %s526
      %s530 = sphi 0, %s529
      %s546 = sphi 0, %s530
    $region4: #{tpu_custom_call.1} parent=1 // loop_header_branch
      %52 = sbr.rel (%p50) target = $region8
    $region5: #{tpu_custom_call.1} parent=1 // loop_body
      %s54 = ssub.s32 %s49, 1
      %s55 = ssub.s32 %s49, 2
      %s56 = sadd.s32 %s49, 1
      %s58 = sadd.s32 %s57, 1
      %p61 = scmp.eq.s32.totalorder %s49, 1
      %p62 = scmp.ne.s32.totalorder %s57, %s59
      %p63 = scmp.eq.s32.totalorder %s49, 0
      %p64 = por %p62, %p63
      %p65 = scmp.ne.s32.totalorder %s57, %s59
      %p66 = scmp.eq.s32.totalorder %s54, 1
      %p67 = por %p65, %p66
      %p68 = scmp.ne.s32.totalorder %s59, %s60
      %p69 = scmp.eq.s32.totalorder %s54, 0
      %p70 = por %p68, %p69
      %p71 = scmp.ne.s32.totalorder %s59, %s60
      %p72 = scmp.eq.s32.totalorder %s55, 1
      %p73 = por %p71, %p72
      %p75 = scmp.ne.s32.totalorder %s60, %s74
      %p76 = scmp.eq.s32.totalorder %s55, 0
      %p77 = por %p75, %p76
      %s78 = ssub.s32 %s49, %s56
      %p79 = scmp.eq.s32.totalorder %s78, 0
      %s81 = sadd.s32 %s80, 1
      %s82 = scalar_select %p79, %s80, %s81
      %p85 = pneg %p79
      %p86 = scmp.eq.s32.totalorder %s49, 1
      %p87 = por %p85, %p86
      %p88 = scmp.ne.s32.totalorder %s80, %s83
      %p89 = scmp.eq.s32.totalorder %s49, 0
      %p90 = por %p88, %p89
      %p91 = scmp.ne.s32.totalorder %s80, %s83
      %p92 = scmp.eq.s32.totalorder %s54, 1
      %p93 = por %p91, %p92
      %p94 = scmp.ne.s32.totalorder %s83, %s84
      %p95 = scmp.eq.s32.totalorder %s54, 0
      %p96 = por %p94, %p95
      %p97 = scmp.ne.s32.totalorder %s83, %s84
      %p98 = scmp.eq.s32.totalorder %s55, 1
      %p99 = por %p97, %p98
      %p101 = scmp.ne.s32.totalorder %s84, %s100
      %p102 = scmp.eq.s32.totalorder %s55, 0
      %p103 = por %p101, %p102
      %s105 = sadd.s32 %s104, 1
      %p108 = scmp.eq.s32.totalorder %s49, 1
      %p109 = scmp.ne.s32.totalorder %s104, %s106
      %p110 = scmp.eq.s32.totalorder %s49, 0
      %p111 = por %p109, %p110
      %p112 = scmp.ne.s32.totalorder %s104, %s106
      %p113 = scmp.eq.s32.totalorder %s54, 1
      %p114 = por %p112, %p113
      %p115 = scmp.ne.s32.totalorder %s106, %s107
      %p116 = scmp.eq.s32.totalorder %s54, 0
      %p117 = por %p115, %p116
      %p118 = scmp.ne.s32.totalorder %s106, %s107
      %p119 = scmp.eq.s32.totalorder %s55, 1
      %p120 = por %p118, %p119
      %p122 = scmp.ne.s32.totalorder %s107, %s121
      %p123 = scmp.eq.s32.totalorder %s55, 0
      %p124 = por %p122, %p123
      %s126 = sadd.s32 %s125, 1
      %p129 = scmp.eq.s32.totalorder %s49, 1
      %p130 = scmp.ne.s32.totalorder %s125, %s127
      %p131 = scmp.eq.s32.totalorder %s49, 0
      %p132 = por %p130, %p131
      %p133 = scmp.ne.s32.totalorder %s125, %s127
      %p134 = scmp.eq.s32.totalorder %s54, 1
      %p135 = por %p133, %p134
      %p136 = scmp.ne.s32.totalorder %s127, %s128
      %p137 = scmp.eq.s32.totalorder %s54, 0
      %p138 = por %p136, %p137
      %p139 = scmp.ne.s32.totalorder %s127, %s128
      %p140 = scmp.eq.s32.totalorder %s55, 1
      %p141 = por %p139, %p140
      %p143 = scmp.ne.s32.totalorder %s128, %s142
      %p144 = scmp.eq.s32.totalorder %s55, 0
      %p145 = por %p143, %p144
      %s147 = sadd.s32 %s146, 1
      %p150 = scmp.eq.s32.totalorder %s49, 1
      %p151 = scmp.ne.s32.totalorder %s146, %s148
      %p152 = scmp.eq.s32.totalorder %s49, 0
      %p153 = por %p151, %p152
      %p154 = scmp.ne.s32.totalorder %s146, %s148
      %p155 = scmp.eq.s32.totalorder %s54, 1
      %p156 = por %p154, %p155
      %p157 = scmp.ne.s32.totalorder %s148, %s149
      %p158 = scmp.eq.s32.totalorder %s54, 0
      %p159 = por %p157, %p158
      %p160 = scmp.ne.s32.totalorder %s148, %s149
      %p161 = scmp.eq.s32.totalorder %s55, 1
      %p162 = por %p160, %p161
      %p164 = scmp.ne.s32.totalorder %s149, %s163
      %p165 = scmp.eq.s32.totalorder %s55, 0
      %p166 = por %p164, %p165
      %s168 = sadd.s32 %s167, 1
      %p171 = scmp.eq.s32.totalorder %s49, 1
      %p172 = scmp.ne.s32.totalorder %s167, %s169
      %p173 = scmp.eq.s32.totalorder %s49, 0
      %p174 = por %p172, %p173
      %p175 = scmp.ne.s32.totalorder %s167, %s169
      %p176 = scmp.eq.s32.totalorder %s54, 1
      %p177 = por %p175, %p176
      %p178 = scmp.ne.s32.totalorder %s169, %s170
      %p179 = scmp.eq.s32.totalorder %s54, 0
      %p180 = por %p178, %p179
      %p181 = scmp.ne.s32.totalorder %s169, %s170
      %p182 = scmp.eq.s32.totalorder %s55, 1
      %p183 = por %p181, %p182
      %p185 = scmp.ne.s32.totalorder %s170, %s184
      %p186 = scmp.eq.s32.totalorder %s55, 0
      %p187 = por %p185, %p186
      %s189 = sadd.s32 %s188, 1
      %p192 = scmp.eq.s32.totalorder %s49, 1
      %p193 = scmp.ne.s32.totalorder %s188, %s190
      %p194 = scmp.eq.s32.totalorder %s49, 0
      %p195 = por %p193, %p194
      %p196 = scmp.ne.s32.totalorder %s188, %s190
      %p197 = scmp.eq.s32.totalorder %s54, 1
      %p198 = por %p196, %p197
      %p199 = scmp.ne.s32.totalorder %s190, %s191
      %p200 = scmp.eq.s32.totalorder %s54, 0
      %p201 = por %p199, %p200
      %p202 = scmp.ne.s32.totalorder %s190, %s191
      %p203 = scmp.eq.s32.totalorder %s55, 1
      %p204 = por %p202, %p203
      %p206 = scmp.ne.s32.totalorder %s191, %s205
      %p207 = scmp.eq.s32.totalorder %s55, 0
      %p208 = por %p206, %p207
      %s210 = sadd.s32 %s209, 1
      %p213 = scmp.eq.s32.totalorder %s49, 1
      %p214 = scmp.ne.s32.totalorder %s209, %s211
      %p215 = scmp.eq.s32.totalorder %s49, 0
      %p216 = por %p214, %p215
      %p217 = scmp.ne.s32.totalorder %s209, %s211
      %p218 = scmp.eq.s32.totalorder %s54, 1
      %p219 = por %p217, %p218
      %p220 = scmp.ne.s32.totalorder %s211, %s212
      %p221 = scmp.eq.s32.totalorder %s54, 0
      %p222 = por %p220, %p221
      %p223 = scmp.ne.s32.totalorder %s211, %s212
      %p224 = scmp.eq.s32.totalorder %s55, 1
      %p225 = por %p223, %p224
      %p227 = scmp.ne.s32.totalorder %s212, %s226
      %p228 = scmp.eq.s32.totalorder %s55, 0
      %p229 = por %p227, %p228
      %s231 = sadd.s32 %s230, 1
      %p234 = scmp.eq.s32.totalorder %s49, 1
      %p235 = scmp.ne.s32.totalorder %s230, %s232
      %p236 = scmp.eq.s32.totalorder %s49, 0
      %p237 = por %p235, %p236
      %p238 = scmp.ne.s32.totalorder %s230, %s232
      %p239 = scmp.eq.s32.totalorder %s54, 1
      %p240 = por %p238, %p239
      %p241 = scmp.ne.s32.totalorder %s232, %s233
      %p242 = scmp.eq.s32.totalorder %s54, 0
      %p243 = por %p241, %p242
      %p244 = scmp.ne.s32.totalorder %s232, %s233
      %p245 = scmp.eq.s32.totalorder %s55, 1
      %p246 = por %p244, %p245
      %p248 = scmp.ne.s32.totalorder %s233, %s247
      %p249 = scmp.eq.s32.totalorder %s55, 0
      %p250 = por %p248, %p249
      %s252 = sadd.s32 %s251, 1
      %p255 = scmp.eq.s32.totalorder %s49, 1
      %p256 = scmp.ne.s32.totalorder %s251, %s253
      %p257 = scmp.eq.s32.totalorder %s49, 0
      %p258 = por %p256, %p257
      %p259 = scmp.ne.s32.totalorder %s251, %s253
      %p260 = scmp.eq.s32.totalorder %s54, 1
      %p261 = por %p259, %p260
      %p262 = scmp.ne.s32.totalorder %s253, %s254
      %p263 = scmp.eq.s32.totalorder %s54, 0
      %p264 = por %p262, %p263
      %p265 = scmp.ne.s32.totalorder %s253, %s254
      %p266 = scmp.eq.s32.totalorder %s55, 1
      %p267 = por %p265, %p266
      %p269 = scmp.ne.s32.totalorder %s254, %s268
      %p270 = scmp.eq.s32.totalorder %s55, 0
      %p271 = por %p269, %p270
      %s273 = sadd.s32 %s272, 1
      %p276 = scmp.eq.s32.totalorder %s49, 1
      %p277 = scmp.ne.s32.totalorder %s272, %s274
      %p278 = scmp.eq.s32.totalorder %s49, 0
      %p279 = por %p277, %p278
      %p280 = scmp.ne.s32.totalorder %s272, %s274
      %p281 = scmp.eq.s32.totalorder %s54, 1
      %p282 = por %p280, %p281
      %p283 = scmp.ne.s32.totalorder %s274, %s275
      %p284 = scmp.eq.s32.totalorder %s54, 0
      %p285 = por %p283, %p284
      %p286 = scmp.ne.s32.totalorder %s274, %s275
      %p287 = scmp.eq.s32.totalorder %s55, 1
      %p288 = por %p286, %p287
      %p290 = scmp.ne.s32.totalorder %s275, %s289
      %p291 = scmp.eq.s32.totalorder %s55, 0
      %p292 = por %p290, %p291
      %s294 = sadd.s32 %s293, 1
      %p297 = scmp.eq.s32.totalorder %s49, 1
      %p298 = scmp.ne.s32.totalorder %s293, %s295
      %p299 = scmp.eq.s32.totalorder %s49, 0
      %p300 = por %p298, %p299
      %p301 = scmp.ne.s32.totalorder %s293, %s295
      %p302 = scmp.eq.s32.totalorder %s54, 1
      %p303 = por %p301, %p302
      %p304 = scmp.ne.s32.totalorder %s295, %s296
      %p305 = scmp.eq.s32.totalorder %s54, 0
      %p306 = por %p304, %p305
      %p307 = scmp.ne.s32.totalorder %s295, %s296
      %p308 = scmp.eq.s32.totalorder %s55, 1
      %p309 = por %p307, %p308
      %p311 = scmp.ne.s32.totalorder %s296, %s310
      %p312 = scmp.eq.s32.totalorder %s55, 0
      %p313 = por %p311, %p312
      %s315 = sadd.s32 %s314, 1
      %p318 = scmp.eq.s32.totalorder %s49, 1
      %p319 = scmp.ne.s32.totalorder %s314, %s316
      %p320 = scmp.eq.s32.totalorder %s49, 0
      %p321 = por %p319, %p320
      %p322 = scmp.ne.s32.totalorder %s314, %s316
      %p323 = scmp.eq.s32.totalorder %s54, 1
      %p324 = por %p322, %p323
      %p325 = scmp.ne.s32.totalorder %s316, %s317
      %p326 = scmp.eq.s32.totalorder %s54, 0
      %p327 = por %p325, %p326
      %p328 = scmp.ne.s32.totalorder %s316, %s317
      %p329 = scmp.eq.s32.totalorder %s55, 1
      %p330 = por %p328, %p329
      %p332 = scmp.ne.s32.totalorder %s317, %s331
      %p333 = scmp.eq.s32.totalorder %s55, 0
      %p334 = por %p332, %p333
      %s336 = sadd.s32 %s335, 1
      %p339 = scmp.eq.s32.totalorder %s49, 1
      %p340 = scmp.ne.s32.totalorder %s335, %s337
      %p341 = scmp.eq.s32.totalorder %s49, 0
      %p342 = por %p340, %p341
      %p343 = scmp.ne.s32.totalorder %s335, %s337
      %p344 = scmp.eq.s32.totalorder %s54, 1
      %p345 = por %p343, %p344
      %p346 = scmp.ne.s32.totalorder %s337, %s338
      %p347 = scmp.eq.s32.totalorder %s54, 0
      %p348 = por %p346, %p347
      %p349 = scmp.ne.s32.totalorder %s337, %s338
      %p350 = scmp.eq.s32.totalorder %s55, 1
      %p351 = por %p349, %p350
      %p353 = scmp.ne.s32.totalorder %s338, %s352
      %p354 = scmp.eq.s32.totalorder %s55, 0
      %p355 = por %p353, %p354
      %s357 = sadd.s32 %s356, 1
      %p360 = scmp.eq.s32.totalorder %s49, 1
      %p361 = scmp.ne.s32.totalorder %s356, %s358
      %p362 = scmp.eq.s32.totalorder %s49, 0
      %p363 = por %p361, %p362
      %p364 = scmp.ne.s32.totalorder %s356, %s358
      %p365 = scmp.eq.s32.totalorder %s54, 1
      %p366 = por %p364, %p365
      %p367 = scmp.ne.s32.totalorder %s358, %s359
      %p368 = scmp.eq.s32.totalorder %s54, 0
      %p369 = por %p367, %p368
      %p370 = scmp.ne.s32.totalorder %s358, %s359
      %p371 = scmp.eq.s32.totalorder %s55, 1
      %p372 = por %p370, %p371
      %p374 = scmp.ne.s32.totalorder %s359, %s373
      %p375 = scmp.eq.s32.totalorder %s55, 0
      %p376 = por %p374, %p375
      %s378 = sadd.s32 %s377, 1
      %p381 = scmp.eq.s32.totalorder %s49, 1
      %p382 = scmp.ne.s32.totalorder %s377, %s379
      %p383 = scmp.eq.s32.totalorder %s49, 0
      %p384 = por %p382, %p383
      %p385 = scmp.ne.s32.totalorder %s377, %s379
      %p386 = scmp.eq.s32.totalorder %s54, 1
      %p387 = por %p385, %p386
      %p388 = scmp.ne.s32.totalorder %s379, %s380
      %p389 = scmp.eq.s32.totalorder %s54, 0
      %p390 = por %p388, %p389
      %p391 = scmp.ne.s32.totalorder %s379, %s380
      %p392 = scmp.eq.s32.totalorder %s55, 1
      %p393 = por %p391, %p392
      %p395 = scmp.ne.s32.totalorder %s380, %s394
      %p396 = scmp.eq.s32.totalorder %s55, 0
      %p397 = por %p395, %p396
      %s399 = sadd.s32 %s398, 1
      %p402 = scmp.eq.s32.totalorder %s49, 1
      %p403 = scmp.ne.s32.totalorder %s398, %s400
      %p404 = scmp.eq.s32.totalorder %s49, 0
      %p405 = por %p403, %p404
      %p406 = scmp.ne.s32.totalorder %s398, %s400
      %p407 = scmp.eq.s32.totalorder %s54, 1
      %p408 = por %p406, %p407
      %p409 = scmp.ne.s32.totalorder %s400, %s401
      %p410 = scmp.eq.s32.totalorder %s54, 0
      %p411 = por %p409, %p410
      %p412 = scmp.ne.s32.totalorder %s400, %s401
      %p413 = scmp.eq.s32.totalorder %s55, 1
      %p414 = por %p412, %p413
      %p416 = scmp.ne.s32.totalorder %s401, %s415
      %p417 = scmp.eq.s32.totalorder %s55, 0
      %p418 = por %p416, %p417
      %s420 = sadd.s32 %s419, 1
      %p423 = scmp.eq.s32.totalorder %s49, 1
      %p424 = scmp.ne.s32.totalorder %s419, %s421
      %p425 = scmp.eq.s32.totalorder %s49, 0
      %p426 = por %p424, %p425
      %p427 = scmp.ne.s32.totalorder %s419, %s421
      %p428 = scmp.eq.s32.totalorder %s54, 1
      %p429 = por %p427, %p428
      %p430 = scmp.ne.s32.totalorder %s421, %s422
      %p431 = scmp.eq.s32.totalorder %s54, 0
      %p432 = por %p430, %p431
      %p433 = scmp.ne.s32.totalorder %s421, %s422
      %p434 = scmp.eq.s32.totalorder %s55, 1
      %p435 = por %p433, %p434
      %p437 = scmp.ne.s32.totalorder %s422, %s436
      %p438 = scmp.eq.s32.totalorder %s55, 0
      %p439 = por %p437, %p438
      %s441 = sadd.s32 %s440, 1
      %p444 = scmp.eq.s32.totalorder %s49, 1
      %p445 = scmp.ne.s32.totalorder %s440, %s442
      %p446 = scmp.eq.s32.totalorder %s49, 0
      %p447 = por %p445, %p446
      %p448 = scmp.ne.s32.totalorder %s440, %s442
      %p449 = scmp.eq.s32.totalorder %s54, 1
      %p450 = por %p448, %p449
      %p451 = scmp.ne.s32.totalorder %s442, %s443
      %p452 = scmp.eq.s32.totalorder %s54, 0
      %p453 = por %p451, %p452
      %p454 = scmp.ne.s32.totalorder %s442, %s443
      %p455 = scmp.eq.s32.totalorder %s55, 1
      %p456 = por %p454, %p455
      %p458 = scmp.ne.s32.totalorder %s443, %s457
      %p459 = scmp.eq.s32.totalorder %s55, 0
      %p460 = por %p458, %p459
      %s462 = sadd.s32 %s461, 1
      %p465 = scmp.eq.s32.totalorder %s49, 1
      %p466 = scmp.ne.s32.totalorder %s461, %s463
      %p467 = scmp.eq.s32.totalorder %s49, 0
      %p468 = por %p466, %p467
      %p469 = scmp.ne.s32.totalorder %s461, %s463
      %p470 = scmp.eq.s32.totalorder %s54, 1
      %p471 = por %p469, %p470
      %p472 = scmp.ne.s32.totalorder %s463, %s464
      %p473 = scmp.eq.s32.totalorder %s54, 0
      %p474 = por %p472, %p473
      %p475 = scmp.ne.s32.totalorder %s463, %s464
      %p476 = scmp.eq.s32.totalorder %s55, 1
      %p477 = por %p475, %p476
      %p479 = scmp.ne.s32.totalorder %s464, %s478
      %p480 = scmp.eq.s32.totalorder %s55, 0
      %p481 = por %p479, %p480
      %s483 = sadd.s32 %s482, 1
      %p486 = scmp.eq.s32.totalorder %s49, 1
      %p487 = scmp.ne.s32.totalorder %s482, %s484
      %p488 = scmp.eq.s32.totalorder %s49, 0
      %p489 = por %p487, %p488
      %p490 = scmp.ne.s32.totalorder %s482, %s484
      %p491 = scmp.eq.s32.totalorder %s54, 1
      %p492 = por %p490, %p491
      %p493 = scmp.ne.s32.totalorder %s484, %s485
      %p494 = scmp.eq.s32.totalorder %s54, 0
      %p495 = por %p493, %p494
      %p496 = scmp.ne.s32.totalorder %s484, %s485
      %p497 = scmp.eq.s32.totalorder %s55, 1
      %p498 = por %p496, %p497
      %p500 = scmp.ne.s32.totalorder %s485, %s499
      %p501 = scmp.eq.s32.totalorder %s55, 0
      %p502 = por %p500, %p501
      %s504 = sadd.s32 %s503, 1
      %p507 = scmp.eq.s32.totalorder %s49, 1
      %p508 = scmp.ne.s32.totalorder %s503, %s505
      %p509 = scmp.eq.s32.totalorder %s49, 0
      %p510 = por %p508, %p509
      %p511 = scmp.ne.s32.totalorder %s503, %s505
      %p512 = scmp.eq.s32.totalorder %s54, 1
      %p513 = por %p511, %p512
      %p514 = scmp.ne.s32.totalorder %s505, %s506
      %p515 = scmp.eq.s32.totalorder %s54, 0
      %p516 = por %p514, %p515
      %p517 = scmp.ne.s32.totalorder %s505, %s506
      %p518 = scmp.eq.s32.totalorder %s55, 1
      %p519 = por %p517, %p518
      %p521 = scmp.ne.s32.totalorder %s506, %s520
      %p522 = scmp.eq.s32.totalorder %s55, 0
      %p523 = por %p521, %p522
      %s524 = ssub.s32 %s49, %s56
      %p525 = scmp.eq.s32.totalorder %s524, 0
      %s527 = sadd.s32 %s526, 1
      %s528 = scalar_select %p525, %s526, %s527
      %p531 = pneg %p525
      %p532 = scmp.eq.s32.totalorder %s49, 1
      %p533 = por %p531, %p532
      %p534 = scmp.ne.s32.totalorder %s526, %s529
      %p535 = scmp.eq.s32.totalorder %s49, 0
      %p536 = por %p534, %p535
      %p537 = scmp.ne.s32.totalorder %s526, %s529
      %p538 = scmp.eq.s32.totalorder %s54, 1
      %p539 = por %p537, %p538
      %p540 = scmp.ne.s32.totalorder %s529, %s530
      %p541 = scmp.eq.s32.totalorder %s54, 0
      %p542 = por %p540, %p541
      %p543 = scmp.ne.s32.totalorder %s529, %s530
      %p544 = scmp.eq.s32.totalorder %s55, 1
      %p545 = por %p543, %p544
      %p547 = scmp.ne.s32.totalorder %s530, %s546
      %p548 = scmp.eq.s32.totalorder %s55, 0
      %p549 = por %p547, %p548
      %p550 = scmp.le.s32.totalorder 1, %s49
      %p551 = scmp.lt.s32.totalorder %s49, 3
      %p552 = pnand %p550, %p551
      %p553 = pneg %p552
      // Predicated region
      $region9: #{tpu_custom_call.1} parent=5 // pred_check
        _
      $region10: #{tpu_custom_call.1} parent=5 // pred_check_branch
        %555 = sbr.rel (%p552) target = $region12
      $region11: #{tpu_custom_call.1} parent=5 // pred_region
        %s556 = ssub.s32 %s49, 1
        // Predicated region
        $region13: #{tpu_custom_call.1} parent=11 // pred_check
          %p557 = pneg %p70
        $region14: #{tpu_custom_call.1} parent=11 // pred_check_branch
          %559 = sbr.rel (%p557) target = $region16
        $region15: #{tpu_custom_call.1} parent=11 // pred_region
          %561 = vsyncadd [#allocation7], 0
          %s563 = sshll.u32 %s2, 4
          %s564 = int_to_ptr.hbm [resolvable:$true] %s563
          %s565 = sshll.u32 [#allocation6], 4
          %s566 = int_to_ptr.vmem [resolvable:$true] %s565
          %568 = dma.hbm_to_vmem [thread:$0]  %s564, 128, %s566, [#allocation7]
        $region16: #{tpu_custom_call.1} parent=11 // pred_fallthru
          _
        // Predicated region
        $region17: #{tpu_custom_call.1} parent=11 // pred_check
          %p569 = pneg %p117
        $region18: #{tpu_custom_call.1} parent=11 // pred_check_branch
          %571 = sbr.rel (%p569) target = $region20
        $region19: #{tpu_custom_call.1} parent=11 // pred_region
          %573 = vsyncadd [#allocation10], 0
          %s574 = sshll.u32 %s4, 4
          %s575 = int_to_ptr.hbm [resolvable:$true] %s574
          %s576 = sshll.u32 [#allocation11], 4
          %s577 = int_to_ptr.vmem [resolvable:$true] %s576
          %582 = dma.hbm_to_vmem [thread:$0]  %s575, 1024, %s577, [#allocation10], 64, 64, 4
        $region20: #{tpu_custom_call.1} parent=11 // pred_fallthru
          _
        // Predicated region
        $region21: #{tpu_custom_call.1} parent=11 // pred_check
          %p583 = pneg %p138
        $region22: #{tpu_custom_call.1} parent=11 // pred_check_branch
          %585 = sbr.rel (%p583) target = $region24
        $region23: #{tpu_custom_call.1} parent=11 // pred_region
          _
        $region24: #{tpu_custom_call.1} parent=11 // pred_fallthru
          _
        // Predicated region
        $region25: #{tpu_custom_call.1} parent=11 // pred_check
          %p586 = pneg %p159
        $region26: #{tpu_custom_call.1} parent=11 // pred_check_branch
          %588 = sbr.rel (%p586) target = $region28
        $region27: #{tpu_custom_call.1} parent=11 // pred_region
          %590 = vsyncadd [#allocation13], 0
          %s591 = sshll.u32 %s6, 4
          %s592 = int_to_ptr.hbm [resolvable:$true] %s591
          %s593 = sshll.u32 [#allocation12], 4
          %s594 = int_to_ptr.vmem [resolvable:$true] %s593
          %599 = dma.hbm_to_vmem [thread:$0]  %s592, 1024, %s594, [#allocation13], 64, 64, 4
        $region28: #{tpu_custom_call.1} parent=11 // pred_fallthru
          _
        // Predicated region
        $region29: #{tpu_custom_call.1} parent=11 // pred_check
          %p600 = pneg %p180
        $region30: #{tpu_custom_call.1} parent=11 // pred_check_branch
          %602 = sbr.rel (%p600) target = $region32
        $region31: #{tpu_custom_call.1} parent=11 // pred_region
          _
        $region32: #{tpu_custom_call.1} parent=11 // pred_fallthru
          _
        // Predicated region
        $region33: #{tpu_custom_call.1} parent=11 // pred_check
          %p603 = pneg %p201
        $region34: #{tpu_custom_call.1} parent=11 // pred_check_branch
          %605 = sbr.rel (%p603) target = $region36
        $region35: #{tpu_custom_call.1} parent=11 // pred_region
          %607 = vsyncadd [#allocation13], 0
          %s608 = sshll.u32 %s8, 4
          %s609 = int_to_ptr.hbm [resolvable:$true] %s608
          %s610 = sshll.u32 [#allocation14], 4
          %s611 = int_to_ptr.vmem [resolvable:$true] %s610
          %616 = dma.hbm_to_vmem [thread:$0]  %s609, 1024, %s611, [#allocation13], 64, 64, 4
        $region36: #{tpu_custom_call.1} parent=11 // pred_fallthru
          _
        // Predicated region
        $region37: #{tpu_custom_call.1} parent=11 // pred_check
          %p617 = pneg %p222
        $region38: #{tpu_custom_call.1} parent=11 // pred_check_branch
          %619 = sbr.rel (%p617) target = $region40
        $region39: #{tpu_custom_call.1} parent=11 // pred_region
          _
        $region40: #{tpu_custom_call.1} parent=11 // pred_fallthru
          _
        // Predicated region
        $region41: #{tpu_custom_call.1} parent=11 // pred_check
          %p620 = pneg %p243
        $region42: #{tpu_custom_call.1} parent=11 // pred_check_branch
          %622 = sbr.rel (%p620) target = $region44
        $region43: #{tpu_custom_call.1} parent=11 // pred_region
          %624 = vsyncadd [#allocation16], 0
          %s625 = sshll.u32 %s10, 4
          %s626 = int_to_ptr.hbm [resolvable:$true] %s625
          %s627 = sshll.u32 [#allocation15], 4
          %s628 = int_to_ptr.vmem [resolvable:$true] %s627
          %633 = dma.hbm_to_vmem [thread:$0]  %s626, 1024, %s628, [#allocation16], 64, 64, 4
        $region44: #{tpu_custom_call.1} parent=11 // pred_fallthru
          _
        // Predicated region
        $region45: #{tpu_custom_call.1} parent=11 // pred_check
          %p634 = pneg %p264
        $region46: #{tpu_custom_call.1} parent=11 // pred_check_branch
          %636 = sbr.rel (%p634) target = $region48
        $region47: #{tpu_custom_call.1} parent=11 // pred_region
          _
        $region48: #{tpu_custom_call.1} parent=11 // pred_fallthru
          _
        // Predicated region
        $region49: #{tpu_custom_call.1} parent=11 // pred_check
          %p637 = pneg %p285
        $region50: #{tpu_custom_call.1} parent=11 // pred_check_branch
          %639 = sbr.rel (%p637) target = $region52
        $region51: #{tpu_custom_call.1} parent=11 // pred_region
          _
        $region52: #{tpu_custom_call.1} parent=11 // pred_fallthru
          _
        // Predicated region
        $region53: #{tpu_custom_call.1} parent=11 // pred_check
          %p640 = pneg %p306
        $region54: #{tpu_custom_call.1} parent=11 // pred_check_branch
          %642 = sbr.rel (%p640) target = $region56
        $region55: #{tpu_custom_call.1} parent=11 // pred_region
          _
        $region56: #{tpu_custom_call.1} parent=11 // pred_fallthru
          _
        // Predicated region
        $region57: #{tpu_custom_call.1} parent=11 // pred_check
          %p643 = pneg %p327
        $region58: #{tpu_custom_call.1} parent=11 // pred_check_branch
          %645 = sbr.rel (%p643) target = $region60
        $region59: #{tpu_custom_call.1} parent=11 // pred_region
          %647 = vsyncadd [#allocation16], 0
          %s648 = sshll.u32 %s14, 4
          %s649 = int_to_ptr.hbm [resolvable:$true] %s648
          %s650 = sshll.u32 [#allocation17], 4
          %s651 = int_to_ptr.vmem [resolvable:$true] %s650
          %656 = dma.hbm_to_vmem [thread:$0]  %s649, 2048, %s651, [#allocation16], 128, 128, 8
        $region60: #{tpu_custom_call.1} parent=11 // pred_fallthru
          _
        // Predicated region
        $region61: #{tpu_custom_call.1} parent=11 // pred_check
          %p657 = pneg %p348
        $region62: #{tpu_custom_call.1} parent=11 // pred_check_branch
          %659 = sbr.rel (%p657) target = $region64
        $region63: #{tpu_custom_call.1} parent=11 // pred_region
          _
        $region64: #{tpu_custom_call.1} parent=11 // pred_fallthru
          _
        // Predicated region
        $region65: #{tpu_custom_call.1} parent=11 // pred_check
          %p660 = pneg %p369
        $region66: #{tpu_custom_call.1} parent=11 // pred_check_branch
          %662 = sbr.rel (%p660) target = $region68
        $region67: #{tpu_custom_call.1} parent=11 // pred_region
          %664 = vsyncadd [#allocation19], 0
          %s665 = sshll.u32 %s16, 4
          %s666 = int_to_ptr.hbm [resolvable:$true] %s665
          %s667 = sshll.u32 [#allocation18], 4
          %s668 = int_to_ptr.vmem [resolvable:$true] %s667
          %673 = dma.hbm_to_vmem [thread:$0]  %s666, 2048, %s668, [#allocation19], 64, 64, 4
        $region68: #{tpu_custom_call.1} parent=11 // pred_fallthru
          _
        // Predicated region
        $region69: #{tpu_custom_call.1} parent=11 // pred_check
          %p674 = pneg %p390
        $region70: #{tpu_custom_call.1} parent=11 // pred_check_branch
          %676 = sbr.rel (%p674) target = $region72
        $region71: #{tpu_custom_call.1} parent=11 // pred_region
          _
        $region72: #{tpu_custom_call.1} parent=11 // pred_fallthru
          _
        // Predicated region
        $region73: #{tpu_custom_call.1} parent=11 // pred_check
          %p677 = pneg %p411
        $region74: #{tpu_custom_call.1} parent=11 // pred_check_branch
          %679 = sbr.rel (%p677) target = $region76
        $region75: #{tpu_custom_call.1} parent=11 // pred_region
          _
        $region76: #{tpu_custom_call.1} parent=11 // pred_fallthru
          _
        // Predicated region
        $region77: #{tpu_custom_call.1} parent=11 // pred_check
          %p680 = pneg %p432
        $region78: #{tpu_custom_call.1} parent=11 // pred_check_branch
          %682 = sbr.rel (%p680) target = $region80
        $region79: #{tpu_custom_call.1} parent=11 // pred_region
          _
        $region80: #{tpu_custom_call.1} parent=11 // pred_fallthru
          _
        // Predicated region
        $region81: #{tpu_custom_call.1} parent=11 // pred_check
          %p683 = pneg %p453
        $region82: #{tpu_custom_call.1} parent=11 // pred_check_branch
          %685 = sbr.rel (%p683) target = $region84
        $region83: #{tpu_custom_call.1} parent=11 // pred_region
          %687 = vsyncadd [#allocation19], 0
          %s688 = sshll.u32 %s20, 4
          %s689 = int_to_ptr.hbm [resolvable:$true] %s688
          %s690 = sshll.u32 [#allocation20], 4
          %s691 = int_to_ptr.vmem [resolvable:$true] %s690
          %696 = dma.hbm_to_vmem [thread:$0]  %s689, 1024, %s691, [#allocation19], 64, 64, 4
        $region84: #{tpu_custom_call.1} parent=11 // pred_fallthru
          _
        // Predicated region
        $region85: #{tpu_custom_call.1} parent=11 // pred_check
          %p697 = pneg %p474
        $region86: #{tpu_custom_call.1} parent=11 // pred_check_branch
          %699 = sbr.rel (%p697) target = $region88
        $region87: #{tpu_custom_call.1} parent=11 // pred_region
          _
        $region88: #{tpu_custom_call.1} parent=11 // pred_fallthru
          _
        // Predicated region
        $region89: #{tpu_custom_call.1} parent=11 // pred_check
          %p700 = pneg %p495
        $region90: #{tpu_custom_call.1} parent=11 // pred_check_branch
          %702 = sbr.rel (%p700) target = $region92
        $region91: #{tpu_custom_call.1} parent=11 // pred_region
          %704 = vsyncadd [#allocation22], 0
          %s705 = sshll.u32 %s22, 4
          %s706 = int_to_ptr.hbm [resolvable:$true] %s705
          %s707 = sshll.u32 [#allocation21], 4
          %s708 = int_to_ptr.vmem [resolvable:$true] %s707
          %713 = dma.hbm_to_vmem [thread:$0]  %s706, 1024, %s708, [#allocation22], 64, 64, 4
        $region92: #{tpu_custom_call.1} parent=11 // pred_fallthru
          _
        // Predicated region
        $region93: #{tpu_custom_call.1} parent=11 // pred_check
          %p714 = pneg %p516
        $region94: #{tpu_custom_call.1} parent=11 // pred_check_branch
          %716 = sbr.rel (%p714) target = $region96
        $region95: #{tpu_custom_call.1} parent=11 // pred_region
          _
        $region96: #{tpu_custom_call.1} parent=11 // pred_fallthru
          _
      $region12: #{tpu_custom_call.1} parent=5 // pred_fallthru
        _
      %p717 = scmp.lt.s32.totalorder %s49, 2
      // Predicated region
      $region97: #{tpu_custom_call.1} parent=5 // pred_check
        %p718 = pneg %p717
      $region98: #{tpu_custom_call.1} parent=5 // pred_check_branch
        %720 = sbr.rel (%p718) target = $region100
      $region99: #{tpu_custom_call.1} parent=5 // pred_region
        // Predicated region
        $region101: #{tpu_custom_call.1} parent=99 // pred_check
          %p721 = pneg %p90
        $region102: #{tpu_custom_call.1} parent=99 // pred_check_branch
          %723 = sbr.rel (%p721) target = $region104
        $region103: #{tpu_custom_call.1} parent=99 // pred_region
          %s724 = sand.u32 %s49, 1
          %s725 = scalar_lea.sflag [#allocation10], %s724
          %s726 = sand.u32 %s80, 1
          %s727 = smul.addr %s726, 2
          %s728 = scalar_lea.vmem [#allocation9], %s727
          %s729 = smul.u32 2, %s49
          %731 = vsyncadd %s725, 0
          %s732 = scalar_lea.hbm %s3, %s729
          %s733 = sshll.u32 %s732, 4
          %s734 = int_to_ptr.hbm [resolvable:$true] %s733
          %s735 = sshll.u32 %s728, 4
          %s736 = int_to_ptr.vmem [resolvable:$true] %s735
          %741 = dma.hbm_to_vmem [thread:$0]  %s734, 32, %s736, %s725, 16, 16, 1
        $region104: #{tpu_custom_call.1} parent=99 // pred_fallthru
          _
      $region100: #{tpu_custom_call.1} parent=5 // pred_fallthru
        _
      %p742 = scmp.le.s32.totalorder 1, %s49
      %p743 = scmp.lt.s32.totalorder %s49, 3
      %p744 = pnand %p742, %p743
      %p745 = pneg %p744
      // Predicated region
      $region105: #{tpu_custom_call.1} parent=5 // pred_check
        _
      $region106: #{tpu_custom_call.1} parent=5 // pred_check_branch
        %747 = sbr.rel (%p744) target = $region108
      $region107: #{tpu_custom_call.1} parent=5 // pred_region
        %s748 = ssub.s32 %s49, 1
        // Predicated region
        $region109: #{tpu_custom_call.1} parent=107 // pred_check
          %p749 = pneg %p70
        $region110: #{tpu_custom_call.1} parent=107 // pred_check_branch
          %751 = sbr.rel (%p749) target = $region112
        $region111: #{tpu_custom_call.1} parent=107 // pred_region
          %753 = dma.done [#allocation7], 128
        $region112: #{tpu_custom_call.1} parent=107 // pred_fallthru
          _
        %s754 = sand.u32 %s54, 1
        %s755 = scalar_lea.sflag [#allocation10], %s754
        %s756 = sand.u32 %s83, 1
        %s757 = smul.addr %s756, 2
        %s758 = scalar_lea.vmem [#allocation9], %s757
        // Predicated region
        $region113: #{tpu_custom_call.1} parent=107 // pred_check
          %p759 = pneg %p96
        $region114: #{tpu_custom_call.1} parent=107 // pred_check_branch
          %761 = sbr.rel (%p759) target = $region116
        $region115: #{tpu_custom_call.1} parent=107 // pred_region
          %763 = dma.done %s755, 32
        $region116: #{tpu_custom_call.1} parent=107 // pred_fallthru
          _
        // Predicated region
        $region117: #{tpu_custom_call.1} parent=107 // pred_check
          %p764 = pneg %p117
        $region118: #{tpu_custom_call.1} parent=107 // pred_check_branch
          %766 = sbr.rel (%p764) target = $region120
        $region119: #{tpu_custom_call.1} parent=107 // pred_region
          %768 = dma.done [#allocation10], 1024
        $region120: #{tpu_custom_call.1} parent=107 // pred_fallthru
          _
        // Predicated region
        $region121: #{tpu_custom_call.1} parent=107 // pred_check
          %p769 = pneg %p159
        $region122: #{tpu_custom_call.1} parent=107 // pred_check_branch
          %771 = sbr.rel (%p769) target = $region124
        $region123: #{tpu_custom_call.1} parent=107 // pred_region
          %773 = dma.done [#allocation13], 1024
        $region124: #{tpu_custom_call.1} parent=107 // pred_fallthru
          _
        // Predicated region
        $region125: #{tpu_custom_call.1} parent=107 // pred_check
          %p774 = pneg %p201
        $region126: #{tpu_custom_call.1} parent=107 // pred_check_branch
          %776 = sbr.rel (%p774) target = $region128
        $region127: #{tpu_custom_call.1} parent=107 // pred_region
          %778 = dma.done [#allocation13], 1024
        $region128: #{tpu_custom_call.1} parent=107 // pred_fallthru
          _
        // Predicated region
        $region129: #{tpu_custom_call.1} parent=107 // pred_check
          %p779 = pneg %p243
        $region130: #{tpu_custom_call.1} parent=107 // pred_check_branch
          %781 = sbr.rel (%p779) target = $region132
        $region131: #{tpu_custom_call.1} parent=107 // pred_region
          %783 = dma.done [#allocation16], 1024
        $region132: #{tpu_custom_call.1} parent=107 // pred_fallthru
          _
        // Predicated region
        $region133: #{tpu_custom_call.1} parent=107 // pred_check
          %p784 = pneg %p327
        $region134: #{tpu_custom_call.1} parent=107 // pred_check_branch
          %786 = sbr.rel (%p784) target = $region136
        $region135: #{tpu_custom_call.1} parent=107 // pred_region
          %788 = dma.done [#allocation16], 2048
        $region136: #{tpu_custom_call.1} parent=107 // pred_fallthru
          _
        // Predicated region
        $region137: #{tpu_custom_call.1} parent=107 // pred_check
          %p789 = pneg %p369
        $region138: #{tpu_custom_call.1} parent=107 // pred_check_branch
          %791 = sbr.rel (%p789) target = $region140
        $region139: #{tpu_custom_call.1} parent=107 // pred_region
          %793 = dma.done [#allocation19], 2048
        $region140: #{tpu_custom_call.1} parent=107 // pred_fallthru
          _
        // Predicated region
        $region141: #{tpu_custom_call.1} parent=107 // pred_check
          %p794 = pneg %p453
        $region142: #{tpu_custom_call.1} parent=107 // pred_check_branch
          %796 = sbr.rel (%p794) target = $region144
        $region143: #{tpu_custom_call.1} parent=107 // pred_region
          %798 = dma.done [#allocation19], 1024
        $region144: #{tpu_custom_call.1} parent=107 // pred_fallthru
          _
        // Predicated region
        $region145: #{tpu_custom_call.1} parent=107 // pred_check
          %p799 = pneg %p495
        $region146: #{tpu_custom_call.1} parent=107 // pred_check_branch
          %801 = sbr.rel (%p799) target = $region148
        $region147: #{tpu_custom_call.1} parent=107 // pred_region
          %803 = dma.done [#allocation22], 1024
        $region148: #{tpu_custom_call.1} parent=107 // pred_fallthru
          _
        %p804 = pneg %p70
        %p805 = pneg %p67
        %s806 = sand.u32 %s54, 1
        %s807 = scalar_lea.sflag [#allocation10], %s806
        %s808 = sand.u32 %s83, 1
        %s809 = smul.addr %s808, 2
        %s810 = scalar_lea.vmem [#allocation9], %s809
        %p811 = pneg %p96
        %p812 = pneg %p93
        %p813 = pneg %p117
        %p814 = pneg %p114
        %p815 = pneg %p138
        %p816 = pneg %p135
        %p817 = pneg %p159
        %p818 = pneg %p156
        %p819 = pneg %p180
        %p820 = pneg %p177
        %p821 = pneg %p201
        %p822 = pneg %p198
        %p823 = pneg %p222
        %p824 = pneg %p219
        %p825 = pneg %p243
        %p826 = pneg %p240
        %p827 = pneg %p264
        %p828 = pneg %p261
        %p829 = pneg %p285
        %p830 = pneg %p282
        %p831 = pneg %p306
        %p832 = pneg %p303
        %p833 = pneg %p327
        %p834 = pneg %p324
        %p835 = pneg %p348
        %p836 = pneg %p345
        %p837 = pneg %p369
        %p838 = pneg %p366
        %p839 = pneg %p390
        %p840 = pneg %p387
        %p841 = pneg %p411
        %p842 = pneg %p408
        %p843 = pneg %p432
        %p844 = pneg %p429
        %p845 = pneg %p453
        %p846 = pneg %p450
        %p847 = pneg %p474
        %p848 = pneg %p471
        %p849 = pneg %p495
        %p850 = pneg %p492
        %p851 = pneg %p516
        %p852 = pneg %p513
        %p853 = pneg %p542
        %p854 = pneg %p539
        %s855 = sand.u32 %s529, 1
        %s856 = scalar_lea.sflag [#allocation8], %s855
        %s857 = sand.u32 %s529, 1
        %s858 = smul.addr %s857, 2
        %s859 = scalar_lea.vmem [#allocation23], %s858
        %s860 = smul.u32 2, %s54
        %s861 = smul.u32 2, %s54
        %s862 = smul.u32 %s54, 16
        loop: start=0, step=1, limit=8
        $region149: #{tpu_custom_call.1} parent=107 // loop_pre_header
          _
        $region150: #{tpu_custom_call.1} parent=107 // loop_header
          %s864 = sphi 0, %s868
          %p865 = scmp.ge.s32.totalorder %s864, 8
        $region151: #{tpu_custom_call.1} parent=107 // loop_header_branch
          %867 = sbr.rel (%p865) target = $region155
        $region152: #{tpu_custom_call.1} parent=107 // loop_body
          %s869 = sadd.s32 %s862, %s864
          %s870 = sld [smem:[#allocation5 + %s869]]
          %p871 = scmp.lt.s32.totalorder %s864, 0
          %s872 = ssub.s32 0, %s864
          %s873 = scalar_select %p871, %s872, %s864
          %s874 = sand.u32 %s873, 7
          %s875 = ssub.s32 0, %s874
          %s876 = scalar_select %p871, %s875, %s874
          %p877 = scmp.ne.s32.totalorder %s876, 0
          %p878 = scmp.lt.s32.totalorder %s876, 0
          %p879 = pnand %p878, %p877
          %p880 = pneg %p879
          %s881 = sadd.s32 %s876, 8
          %s882 = scalar_select %p880, %s881, %s876
          %s883 = scalar_lea.hbm %s1, %s870
          %s884 = scalar_lea.vmem [#allocation2], %s864
          %s885 = scalar_lea.sflag [#allocation3], %s882
          // Predicated region
          $region156: #{tpu_custom_call.1} parent=152 // pred_check
            _
          $region157: #{tpu_custom_call.1} parent=152 // pred_check_branch
            %887 = sbr.rel target = $region159
          $region158: #{tpu_custom_call.1} parent=152 // pred_region
            %888 = sst [smem:[#allocation26]] [#allocation25]
            %889 = sst [smem:[#allocation27]] [#allocation24]
          $region159: #{tpu_custom_call.1} parent=152 // pred_fallthru
            _
          %891 = shalt.err (0)
          %s893 = sshll.u32 %s883, 4
          %s894 = int_to_ptr.hbm [resolvable:$true] %s893
          %s895 = sshll.u32 %s884, 4
          %s896 = int_to_ptr.vmem [resolvable:$true] %s895
          %898 = dma.hbm_to_vmem [thread:$0]  %s894, 16, %s896, %s885
        $region153: #{tpu_custom_call.1} parent=107 // loop_footer
          %s868 = sadd.s32 1, %s864
        $region154: #{tpu_custom_call.1} parent=107 // loop_footer_branch
          %863 = sbr.rel target = $region150
        $region155: #{tpu_custom_call.1} parent=107 // loop_exit
          _
        loop: start=0, step=1, limit=16
        $region160: #{tpu_custom_call.1} parent=107 // loop_pre_header
          _
        $region161: #{tpu_custom_call.1} parent=107 // loop_header
          %s900 = sphi 0, %s904
          %p901 = scmp.ge.s32.totalorder %s900, 16
        $region162: #{tpu_custom_call.1} parent=107 // loop_header_branch
          %903 = sbr.rel (%p901) target = $region166
        $region163: #{tpu_custom_call.1} parent=107 // loop_body
          %s905 = sadd.s32 %s862, %s900
          %s906 = sld [smem:[#allocation5 + %s905]]
          %p907 = scmp.lt.s32.totalorder %s900, 0
          %s908 = ssub.s32 0, %s900
          %s909 = scalar_select %p907, %s908, %s900
          %s910 = sand.u32 %s909, 7
          %s911 = ssub.s32 0, %s910
          %s912 = scalar_select %p907, %s911, %s910
          %p913 = scmp.ne.s32.totalorder %s912, 0
          %p914 = scmp.lt.s32.totalorder %s912, 0
          %p915 = pnand %p914, %p913
          %p916 = pneg %p915
          %s917 = sadd.s32 %s912, 8
          %s918 = scalar_select %p916, %s917, %s912
          %s919 = scalar_lea.sflag [#allocation3], %s918
          %s920 = smul.u32 1, 1
          %s921 = sshll.u32 %s920, 4
          %922 = dma.done %s919, %s921
          %s923 = sadd.s32 %s900, 8
          %p924 = scmp.lt.s32.totalorder %s923, 16
          // Predicated region
          $region167: #{tpu_custom_call.1} parent=163 // pred_check
            %p925 = pneg %p924
          $region168: #{tpu_custom_call.1} parent=163 // pred_check_branch
            %927 = sbr.rel (%p925) target = $region170
          $region169: #{tpu_custom_call.1} parent=163 // pred_region
            %s928 = sadd.s32 %s862, %s923
            %s929 = sld [smem:[#allocation5 + %s928]]
            %p930 = scmp.lt.s32.totalorder %s923, 0
            %s931 = ssub.s32 0, %s923
            %s932 = scalar_select %p930, %s931, %s923
            %s933 = sand.u32 %s932, 7
            %s934 = ssub.s32 0, %s933
            %s935 = scalar_select %p930, %s934, %s933
            %p936 = scmp.ne.s32.totalorder %s935, 0
            %p937 = scmp.lt.s32.totalorder %s935, 0
            %p938 = pnand %p937, %p936
            %p939 = pneg %p938
            %s940 = sadd.s32 %s935, 8
            %s941 = scalar_select %p939, %s940, %s935
            %s942 = scalar_lea.hbm %s1, %s929
            %s943 = scalar_lea.vmem [#allocation2], %s923
            %s944 = scalar_lea.sflag [#allocation3], %s941
            // Predicated region
            $region171: #{tpu_custom_call.1} parent=169 // pred_check
              _
            $region172: #{tpu_custom_call.1} parent=169 // pred_check_branch
              %946 = sbr.rel target = $region174
            $region173: #{tpu_custom_call.1} parent=169 // pred_region
              %947 = sst [smem:[#allocation26]] [#allocation29]
              %948 = sst [smem:[#allocation27]] [#allocation28]
            $region174: #{tpu_custom_call.1} parent=169 // pred_fallthru
              _
            %950 = shalt.err (0)
            %s952 = sshll.u32 %s942, 4
            %s953 = int_to_ptr.hbm [resolvable:$true] %s952
            %s954 = sshll.u32 %s943, 4
            %s955 = int_to_ptr.vmem [resolvable:$true] %s954
            %957 = dma.hbm_to_vmem [thread:$0]  %s953, 16, %s955, %s944
          $region170: #{tpu_custom_call.1} parent=163 // pred_fallthru
            _
        $region164: #{tpu_custom_call.1} parent=107 // loop_footer
          %s904 = sadd.s32 1, %s900
        $region165: #{tpu_custom_call.1} parent=107 // loop_footer_branch
          %899 = sbr.rel target = $region161
        $region166: #{tpu_custom_call.1} parent=107 // loop_exit
          _
        %v958 = vld [vmem:[#allocation2] sm:$0xff]
        %v959 = vld [vmem:[#allocation2 + $0x8] sm:$0xff]
        %v960 = vld [vmem:[#allocation6] sm:$0xff]
        %v961 = vadd.f32 %v958, %v960
        %v962 = vadd.f32 %v959, %v960
        %v963 = vpack.c.bf16 %v962, %v961
        %v964 = vld [vmem:[#allocation12] sm:$0xf]
        %v965 = vld [vmem:[#allocation12 + $0x4] sm:$0xf]
        %v966 = vld [vmem:[#allocation12 + $0x8] sm:$0xf]
        %v967 = vld [vmem:[#allocation12 + $0xc] sm:$0xf]
        %v968 = vld [vmem:[#allocation12 + $0x10] sm:$0xf]
        %v969 = vld [vmem:[#allocation12 + $0x14] sm:$0xf]
        %v970 = vld [vmem:[#allocation12 + $0x18] sm:$0xf]
        %v971 = vld [vmem:[#allocation12 + $0x1c] sm:$0xf]
        %v972 = vld [vmem:[#allocation12 + $0x20] sm:$0xf]
        %v973 = vld [vmem:[#allocation12 + $0x24] sm:$0xf]
        %v974 = vld [vmem:[#allocation12 + $0x28] sm:$0xf]
        %v975 = vld [vmem:[#allocation12 + $0x2c] sm:$0xf]
        %v976 = vld [vmem:[#allocation12 + $0x30] sm:$0xf]
        %v977 = vld [vmem:[#allocation12 + $0x34] sm:$0xf]
        %v978 = vld [vmem:[#allocation12 + $0x38] sm:$0xf]
        %v979 = vld [vmem:[#allocation12 + $0x3c] sm:$0xf]
        %v980 = vld [vmem:[%s7] sm:$0x1]
        %v982 = vperm.slane %v980, 0
        %v1000 = vunpack.c.l.b16 %v964
        %v1001 = vunpack.c.l.b16 %v965
        %v1002 = vunpack.c.l.b16 %v966
        %v1003 = vunpack.c.l.b16 %v967
        %v1004 = vunpack.c.l.b16 %v968
        %v1005 = vunpack.c.l.b16 %v969
        %v1006 = vunpack.c.l.b16 %v970
        %v1007 = vunpack.c.l.b16 %v971
        %v1008 = vunpack.c.l.b16 %v972
        %v1009 = vunpack.c.l.b16 %v973
        %v1010 = vunpack.c.l.b16 %v974
        %v1011 = vunpack.c.l.b16 %v975
        %v1012 = vunpack.c.l.b16 %v976
        %v1013 = vunpack.c.l.b16 %v977
        %v1014 = vunpack.c.l.b16 %v978
        %v1015 = vunpack.c.l.b16 %v979
        %v1016 = vpack.c.b16 %v1001, %v1000
        %v1017 = vpack.c.b16 %v1003, %v1002
        %v1018 = vpack.c.b16 %v1005, %v1004
        %v1019 = vpack.c.b16 %v1007, %v1006
        %v1020 = vpack.c.b16 %v1009, %v1008
        %v1021 = vpack.c.b16 %v1011, %v1010
        %v1022 = vpack.c.b16 %v1013, %v1012
        %v1023 = vpack.c.b16 %v1015, %v1014
        %1032 = vmatpush.bf16.msra.mxu0 %v1023
        %1033 = vmatpush.bf16.msra.mxu0 %v1022
        %1034 = vmatpush.bf16.msra.mxu0 %v1021
        %1035 = vmatpush.bf16.msra.mxu0 %v1020
        %1036 = vmatpush.bf16.msra.mxu0 %v1019
        %1037 = vmatpush.bf16.msra.mxu0 %v1018
        %1038 = vmatpush.bf16.msra.mxu0 %v1017
        %1039 = vmatpush.bf16.msra.mxu0 %v1016
        %1040 = vmatmul.bf16.gmra.mxu0 %v963
        %v1041 = vpop.f32.mrf.mxu0
        %v1042 = vadd.f32 %v982, %v1041
        %v1043 = vpop.f32.mrf.mxu0
        %v1044 = vadd.f32 %v982, %v1043
        %1045 = vdwg.mxu0
        %v1046 = vld [vmem:[#allocation14] sm:$0xf]
        %v1047 = vld [vmem:[#allocation14 + $0x4] sm:$0xf]
        %v1048 = vld [vmem:[#allocation14 + $0x8] sm:$0xf]
        %v1049 = vld [vmem:[#allocation14 + $0xc] sm:$0xf]
        %v1050 = vld [vmem:[#allocation14 + $0x10] sm:$0xf]
        %v1051 = vld [vmem:[#allocation14 + $0x14] sm:$0xf]
        %v1052 = vld [vmem:[#allocation14 + $0x18] sm:$0xf]
        %v1053 = vld [vmem:[#allocation14 + $0x1c] sm:$0xf]
        %v1054 = vld [vmem:[#allocation14 + $0x20] sm:$0xf]
        %v1055 = vld [vmem:[#allocation14 + $0x24] sm:$0xf]
        %v1056 = vld [vmem:[#allocation14 + $0x28] sm:$0xf]
        %v1057 = vld [vmem:[#allocation14 + $0x2c] sm:$0xf]
        %v1058 = vld [vmem:[#allocation14 + $0x30] sm:$0xf]
        %v1059 = vld [vmem:[#allocation14 + $0x34] sm:$0xf]
        %v1060 = vld [vmem:[#allocation14 + $0x38] sm:$0xf]
        %v1061 = vld [vmem:[#allocation14 + $0x3c] sm:$0xf]
        %v1062 = vld [vmem:[%s9] sm:$0x1]
        %v1064 = vperm.slane %v1062, 0
        %v1082 = vunpack.c.l.b16 %v1046
        %v1083 = vunpack.c.l.b16 %v1047
        %v1084 = vunpack.c.l.b16 %v1048
        %v1085 = vunpack.c.l.b16 %v1049
        %v1086 = vunpack.c.l.b16 %v1050
        %v1087 = vunpack.c.l.b16 %v1051
        %v1088 = vunpack.c.l.b16 %v1052
        %v1089 = vunpack.c.l.b16 %v1053
        %v1090 = vunpack.c.l.b16 %v1054
        %v1091 = vunpack.c.l.b16 %v1055
        %v1092 = vunpack.c.l.b16 %v1056
        %v1093 = vunpack.c.l.b16 %v1057
        %v1094 = vunpack.c.l.b16 %v1058
        %v1095 = vunpack.c.l.b16 %v1059
        %v1096 = vunpack.c.l.b16 %v1060
        %v1097 = vunpack.c.l.b16 %v1061
        %v1098 = vpack.c.b16 %v1083, %v1082
        %v1099 = vpack.c.b16 %v1085, %v1084
        %v1100 = vpack.c.b16 %v1087, %v1086
        %v1101 = vpack.c.b16 %v1089, %v1088
        %v1102 = vpack.c.b16 %v1091, %v1090
        %v1103 = vpack.c.b16 %v1093, %v1092
        %v1104 = vpack.c.b16 %v1095, %v1094
        %v1105 = vpack.c.b16 %v1097, %v1096
        %1114 = vmatpush.bf16.msra.mxu0 %v1105
        %1115 = vmatpush.bf16.msra.mxu0 %v1104
        %1116 = vmatpush.bf16.msra.mxu0 %v1103
        %1117 = vmatpush.bf16.msra.mxu0 %v1102
        %1118 = vmatpush.bf16.msra.mxu0 %v1101
        %1119 = vmatpush.bf16.msra.mxu0 %v1100
        %1120 = vmatpush.bf16.msra.mxu0 %v1099
        %1121 = vmatpush.bf16.msra.mxu0 %v1098
        %1122 = vmatmul.bf16.gmra.mxu0 %v963
        %v1123 = vpop.f32.mrf.mxu0
        %v1124 = vadd.f32 %v1064, %v1123
        %v1125 = vpop.f32.mrf.mxu0
        %v1126 = vadd.f32 %v1064, %v1125
        %1127 = vdwg.mxu0
        %v1128 = vpack.c.bf16 %v961, %v961
        %v1129 = vpack.c.bf16 %v962, %v962
        %v1130 = vld [vmem:[#allocation11] sm:$0xf]
        %v1131 = vld [vmem:[#allocation11 + $0x4] sm:$0xf]
        %v1132 = vld [vmem:[#allocation11 + $0x8] sm:$0xf]
        %v1133 = vld [vmem:[#allocation11 + $0xc] sm:$0xf]
        %v1134 = vld [vmem:[#allocation11 + $0x10] sm:$0xf]
        %v1135 = vld [vmem:[#allocation11 + $0x14] sm:$0xf]
        %v1136 = vld [vmem:[#allocation11 + $0x18] sm:$0xf]
        %v1137 = vld [vmem:[#allocation11 + $0x1c] sm:$0xf]
        %v1138 = vld [vmem:[#allocation11 + $0x20] sm:$0xf]
        %v1139 = vld [vmem:[#allocation11 + $0x24] sm:$0xf]
        %v1140 = vld [vmem:[#allocation11 + $0x28] sm:$0xf]
        %v1141 = vld [vmem:[#allocation11 + $0x2c] sm:$0xf]
        %v1142 = vld [vmem:[#allocation11 + $0x30] sm:$0xf]
        %v1143 = vld [vmem:[#allocation11 + $0x34] sm:$0xf]
        %v1144 = vld [vmem:[#allocation11 + $0x38] sm:$0xf]
        %v1145 = vld [vmem:[#allocation11 + $0x3c] sm:$0xf]
        %v1146 = vld [vmem:[%s5] sm:$0x1]
        %v1148 = vperm.slane %v1146, 0
        %v1152 = vunpack.c.l.b16 %v1128
        %v1153 = vunpack.c.l.b16 %v1129
        %v1154 = vrot.slane %v1153, 7
        %vm1155 = vcmask 1041409
        %v1156 = vsel %vm1155, %v1154, %v1152
        %v1157 = vpack.c.b16 %v1156, %v1156
        %v1175 = vunpack.c.l.b16 %v1130
        %v1176 = vunpack.c.l.b16 %v1131
        %v1177 = vunpack.c.l.b16 %v1132
        %v1178 = vunpack.c.l.b16 %v1133
        %v1179 = vunpack.c.l.b16 %v1134
        %v1180 = vunpack.c.l.b16 %v1135
        %v1181 = vunpack.c.l.b16 %v1136
        %v1182 = vunpack.c.l.b16 %v1137
        %v1183 = vunpack.c.l.b16 %v1138
        %v1184 = vunpack.c.l.b16 %v1139
        %v1185 = vunpack.c.l.b16 %v1140
        %v1186 = vunpack.c.l.b16 %v1141
        %v1187 = vunpack.c.l.b16 %v1142
        %v1188 = vunpack.c.l.b16 %v1143
        %v1189 = vunpack.c.l.b16 %v1144
        %v1190 = vunpack.c.l.b16 %v1145
        %v1191 = vpack.c.b16 %v1176, %v1175
        %v1192 = vpack.c.b16 %v1178, %v1177
        %v1193 = vpack.c.b16 %v1180, %v1179
        %v1194 = vpack.c.b16 %v1182, %v1181
        %v1195 = vpack.c.b16 %v1184, %v1183
        %v1196 = vpack.c.b16 %v1186, %v1185
        %v1197 = vpack.c.b16 %v1188, %v1187
        %v1198 = vpack.c.b16 %v1190, %v1189
        %1207 = vmatpush.bf16.msra.mxu0 %v1198
        %1208 = vmatpush.bf16.msra.mxu0 %v1197
        %1209 = vmatpush.bf16.msra.mxu0 %v1196
        %1210 = vmatpush.bf16.msra.mxu0 %v1195
        %1211 = vmatpush.bf16.msra.mxu0 %v1194
        %1212 = vmatpush.bf16.msra.mxu0 %v1193
        %1213 = vmatpush.bf16.msra.mxu0 %v1192
        %1214 = vmatpush.bf16.msra.mxu0 %v1191
        %1215 = vmatmul.bf16.gmra.mxu0 %v1157
        %v1216 = vpop.f32.mrf.mxu0
        %v1217 = vadd.f32 %v1148, %v1216
        %v1218 = vpop.f32.mrf.mxu0
        %1219 = vdwg.mxu0
        %v1221 = vrot.slane %v1217, 1
        %v1222 = vperm.slane %v1217, 0
        %v1223 = vperm.slane %v1221, 0
        %v1226 = vmul.f32 %v1222, %v1042
        %v1227 = vmul.f32 %v1223, %v1044
        %1228 = vadd.xlane.f32.xlu0 %v1226
        %v1229 = vpop.xlane.xlu0 %1228
        %1230 = vadd.xlane.f32.xlu0 %v1227
        %v1231 = vpop.xlane.xlu0 %1230
        %v1232 = vld [vmem:[%s758] sm:$0x1]
        %v1233 = vld [vmem:[%s758 + $0x1] sm:$0x1]
        %v1236 = vperm.slane %v1232, 0
        %v1237 = vperm.slane %v1233, 0
        %v1238 = vlaneseq
        %v1239 = vshrl.u32 %v1238, 7
        %1241 = vset.pattern.permute.xlu0 %v1239
        %1242 = vperm.xlu0 %1241, %v1236
        %v1243 = vpop.permute.xlu0 %1242
        %v1244 = vlaneseq
        %v1245 = vshrl.u32 %v1244, 7
        %1247 = vset.pattern.permute.xlu0 %v1245
        %1248 = vperm.xlu0 %1247, %v1237
        %v1249 = vpop.permute.xlu0 %1248
        %v1252 = vadd.f32 %v1229, %v1243
        %v1253 = vadd.f32 %v1231, %v1249
        %1256 = vset.pattern.permute.xlu0 0
        %1257 = vperm.xlu0 %1256, %v1252
        %v1258 = vpop.permute.xlu0 %1257
        %1259 = vset.pattern.permute.xlu0 0
        %1260 = vperm.xlu0 %1259, %v1253
        %v1261 = vpop.permute.xlu0 %1260
        %v1262 = vlaneseq
        %v1263 = vand.u32 %v1262, 127
        %v1264 = vperm.slane %v1258, %v1263
        %v1265 = vperm.slane %v1261, %v1263
        %v1266 = vsel %vm1155, %v1265, %v1264
        %vm1268 = vcmask 58368
        %v1269 = vsel %vm1268, %v1266, -inf
        %1270 = vmax.xlane.f32.xlu0 %v1269
        %v1271 = vpop.xlane.xlu0 %1270
        %v1273 = vperm.slane %v1271, 0
        %v1274 = vperm.slane %v1271, 1
        %v1277 = vsub.f32 %v1252, %v1273
        %v1278 = vsub.f32 %v1253, %v1274
        %v1279 = vmul.f32 %v1277, 1.442695
        %v1280 = vpow.pop %v1279
        %v1281 = vmul.f32 %v1278, 1.442695
        %v1282 = vpow.pop %v1281
        %1285 = vset.pattern.permute.xlu0 0
        %1286 = vperm.xlu0 %1285, %v1280
        %v1287 = vpop.permute.xlu0 %1286
        %1288 = vset.pattern.permute.xlu0 0
        %1289 = vperm.xlu0 %1288, %v1282
        %v1290 = vpop.permute.xlu0 %1289
        %v1291 = vperm.slane %v1287, %v1263
        %v1292 = vperm.slane %v1290, %v1263
        %v1293 = vsel %vm1155, %v1292, %v1291
        %v1295 = vsel %vm1268, %v1293, 0.0
        %1296 = vadd.xlane.f32.xlu0 %v1295
        %v1297 = vpop.xlane.xlu0 %1296
        %v1299 = vperm.slane %v1297, 0
        %v1300 = vperm.slane %v1297, 1
        %v1303 = vrcp.pop %v1299
        %v1304 = vmul.f32 %v1299, %v1303
        %v1305 = vsub.f32 1.0, %v1304
        %v1306 = vmul.f32 %v1303, %v1305
        %v1307 = vadd.f32 %v1303, %v1306
        %vm1308 = vweird.f32 %v1299
        %vm1309 = vweird.f32 %v1303
        %vm1310 = vmor %vm1308, %vm1309
        %v1311 = vsel %vm1310, %v1303, %v1307
        %v1312 = vand.u32 2147483647, %v1299
        %vm1313 = vcmp.eq.f32.partialorder %v1312, 8.507059e+37
        %v1314 = vand.u32 %v1299, 2147483648
        %v1315 = vor.u32 1.1754944e-38, %v1314
        %v1316 = vsel %vm1313, %v1315, %v1311
        %v1317 = vmul.f32 %v1280, %v1316
        %v1318 = vrcp.pop %v1300
        %v1319 = vmul.f32 %v1300, %v1318
        %v1320 = vsub.f32 1.0, %v1319
        %v1321 = vmul.f32 %v1318, %v1320
        %v1322 = vadd.f32 %v1318, %v1321
        %vm1323 = vweird.f32 %v1300
        %vm1324 = vweird.f32 %v1318
        %vm1325 = vmor %vm1323, %vm1324
        %v1326 = vsel %vm1325, %v1318, %v1322
        %v1327 = vand.u32 2147483647, %v1300
        %vm1328 = vcmp.eq.f32.partialorder %v1327, 8.507059e+37
        %v1329 = vand.u32 %v1300, 2147483648
        %v1330 = vor.u32 1.1754944e-38, %v1329
        %v1331 = vsel %vm1328, %v1330, %v1326
        %v1332 = vmul.f32 %v1282, %v1331
        %1334 = vset.pattern.permute.xlu0 0
        %1335 = vperm.xlu0 %1334, %v1317
        %v1336 = vpop.permute.xlu0 %1335
        %1339 = vset.pattern.permute.xlu0 0
        %1340 = vperm.xlu0 %1339, %v1332
        %v1341 = vpop.permute.xlu0 %1340
        %v1343 = vmul.f32 %v1336, %v1124
        %v1344 = vmul.f32 %v1341, %v1126
        %v1345 = vrot.slane %v1343, 4
        %v1346 = vadd.f32 %v1343, %v1345
        %v1347 = vrot.slane %v1346, 2
        %v1348 = vadd.f32 %v1346, %v1347
        %v1349 = vrot.slane %v1348, 1
        %v1350 = vadd.f32 %v1348, %v1349
        %v1351 = vrot.slane %v1344, 4
        %v1352 = vadd.f32 %v1344, %v1351
        %v1353 = vrot.slane %v1352, 2
        %v1354 = vadd.f32 %v1352, %v1353
        %v1355 = vrot.slane %v1354, 1
        %v1356 = vadd.f32 %v1354, %v1355
        %v1357 = vpack.c.bf16 %v1350, %v1350
        %v1358 = vpack.c.bf16 %v1356, %v1356
        %v1359 = vld [vmem:[#allocation15] sm:$0xf]
        %v1360 = vld [vmem:[#allocation15 + $0x4] sm:$0xf]
        %v1361 = vld [vmem:[#allocation15 + $0x8] sm:$0xf]
        %v1362 = vld [vmem:[#allocation15 + $0xc] sm:$0xf]
        %v1363 = vld [vmem:[#allocation15 + $0x10] sm:$0xf]
        %v1364 = vld [vmem:[#allocation15 + $0x14] sm:$0xf]
        %v1365 = vld [vmem:[#allocation15 + $0x18] sm:$0xf]
        %v1366 = vld [vmem:[#allocation15 + $0x1c] sm:$0xf]
        %v1367 = vld [vmem:[#allocation15 + $0x20] sm:$0xf]
        %v1368 = vld [vmem:[#allocation15 + $0x24] sm:$0xf]
        %v1369 = vld [vmem:[#allocation15 + $0x28] sm:$0xf]
        %v1370 = vld [vmem:[#allocation15 + $0x2c] sm:$0xf]
        %v1371 = vld [vmem:[#allocation15 + $0x30] sm:$0xf]
        %v1372 = vld [vmem:[#allocation15 + $0x34] sm:$0xf]
        %v1373 = vld [vmem:[#allocation15 + $0x38] sm:$0xf]
        %v1374 = vld [vmem:[#allocation15 + $0x3c] sm:$0xf]
        %v1375 = vld [vmem:[%s11] sm:$0x1]
        %v1377 = vperm.slane %v1375, 0
        %v1381 = vunpack.c.l.b16 %v1357
        %v1382 = vunpack.c.l.b16 %v1358
        %v1383 = vsel %vm1155, %v1382, %v1381
        %v1384 = vpack.c.b16 %v1383, %v1383
        %v1402 = vunpack.c.l.b16 %v1359
        %v1403 = vunpack.c.l.b16 %v1360
        %v1404 = vunpack.c.l.b16 %v1361
        %v1405 = vunpack.c.l.b16 %v1362
        %v1406 = vunpack.c.l.b16 %v1363
        %v1407 = vunpack.c.l.b16 %v1364
        %v1408 = vunpack.c.l.b16 %v1365
        %v1409 = vunpack.c.l.b16 %v1366
        %v1410 = vunpack.c.l.b16 %v1367
        %v1411 = vunpack.c.l.b16 %v1368
        %v1412 = vunpack.c.l.b16 %v1369
        %v1413 = vunpack.c.l.b16 %v1370
        %v1414 = vunpack.c.l.b16 %v1371
        %v1415 = vunpack.c.l.b16 %v1372
        %v1416 = vunpack.c.l.b16 %v1373
        %v1417 = vunpack.c.l.b16 %v1374
        %v1418 = vpack.c.b16 %v1403, %v1402
        %v1419 = vpack.c.b16 %v1405, %v1404
        %v1420 = vpack.c.b16 %v1407, %v1406
        %v1421 = vpack.c.b16 %v1409, %v1408
        %v1422 = vpack.c.b16 %v1411, %v1410
        %v1423 = vpack.c.b16 %v1413, %v1412
        %v1424 = vpack.c.b16 %v1415, %v1414
        %v1425 = vpack.c.b16 %v1417, %v1416
        %1434 = vmatpush.bf16.msra.mxu0 %v1425
        %1435 = vmatpush.bf16.msra.mxu0 %v1424
        %1436 = vmatpush.bf16.msra.mxu0 %v1423
        %1437 = vmatpush.bf16.msra.mxu0 %v1422
        %1438 = vmatpush.bf16.msra.mxu0 %v1421
        %1439 = vmatpush.bf16.msra.mxu0 %v1420
        %1440 = vmatpush.bf16.msra.mxu0 %v1419
        %1441 = vmatpush.bf16.msra.mxu0 %v1418
        %1442 = vmatmul.bf16.gmra.mxu0 %v1384
        %v1443 = vpop.f32.mrf.mxu0
        %v1444 = vadd.f32 %v1377, %v1443
        %v1445 = vpop.f32.mrf.mxu0
        %1446 = vdwg.mxu0
        %v1448 = vrot.slane %v1444, 1
        %v1451 = vadd.f32 %v961, %v1444
        %v1452 = vadd.f32 %v962, %v1448
        %v1453 = vld [vmem:[%s12] sm:$0x1]
        %v1454 = vld [vmem:[%s13] sm:$0x1]
        %v1457 = vrot.slane %v1452, 7
        %v1458 = vsel %vm1155, %v1457, %v1451
        %vm1460 = vcmask 1041408
        %v1461 = vsel %vm1460, %v1458, 0.0
        %1462 = vadd.xlane.f32.xlu0 %v1461
        %v1463 = vpop.xlane.xlu0 %1462
        %v1464 = vrcp.pop 128.0
        %v1465 = vmul.f32 128.0, %v1464
        %v1466 = vsub.f32 1.0, %v1465
        %v1467 = vmul.f32 %v1464, %v1466
        %v1468 = vadd.f32 %v1464, %v1467
        %vm1469 = vweird.f32 %v1464
        %v1470 = vsel %vm1469, %v1464, %v1468
        %v1471 = vmul.f32 %v1463, %v1470
        %v1473 = vrot.slane %v1471, 1
        %v1476 = vsub.f32 %v1451, %v1471
        %v1477 = vsub.f32 %v1452, %v1473
        %v1478 = vmul.f32 %v1476, %v1476
        %v1479 = vmul.f32 %v1477, %v1477
        %v1482 = vrot.slane %v1479, 7
        %v1483 = vsel %vm1155, %v1482, %v1478
        %v1485 = vsel %vm1460, %v1483, 0.0
        %1486 = vadd.xlane.f32.xlu0 %v1485
        %v1487 = vpop.xlane.xlu0 %1486
        %v1488 = vmul.f32 %v1487, %v1470
        %v1489 = vadd.f32 %v1488, 1e-12
        %v1490 = vrsqrt.pop %v1489
        %v1491 = vmul.f32 %v1490, %v1489
        %v1492 = vmul.f32 %v1491, %v1490
        %v1493 = vmul.f32 0.5, %v1492
        %v1494 = vsub.f32 1.5, %v1493
        %v1495 = vmul.f32 %v1490, %v1494
        %vm1496 = vweird.f32 %v1489
        %vm1497 = vweird.f32 %v1490
        %vm1498 = vmor %vm1496, %vm1497
        %v1499 = vsel %vm1498, %v1490, %v1495
        %v1501 = vrot.slane %v1499, 1
        %v1504 = vmul.f32 %v1476, %v1499
        %v1505 = vmul.f32 %v1477, %v1501
        %v1507 = vperm.slane %v1453, 0
        %v1509 = vmul.f32 %v1504, %v1507
        %v1510 = vmul.f32 %v1505, %v1507
        %v1512 = vperm.slane %v1454, 0
        %v1514 = vadd.f32 %v1509, %v1512
        %v1515 = vadd.f32 %v1510, %v1512
        %v1516 = vpack.c.bf16 %v1514, %v1514
        %v1517 = vpack.c.bf16 %v1515, %v1515
        %v1518 = vld [vmem:[#allocation17] sm:$0xff]
        %v1519 = vld [vmem:[#allocation17 + $0x8] sm:$0xff]
        %v1520 = vld [vmem:[#allocation17 + $0x10] sm:$0xff]
        %v1521 = vld [vmem:[#allocation17 + $0x18] sm:$0xff]
        %v1522 = vld [vmem:[#allocation17 + $0x20] sm:$0xff]
        %v1523 = vld [vmem:[#allocation17 + $0x28] sm:$0xff]
        %v1524 = vld [vmem:[#allocation17 + $0x30] sm:$0xff]
        %v1525 = vld [vmem:[#allocation17 + $0x38] sm:$0xff]
        %v1526 = vld [vmem:[#allocation17 + $0x40] sm:$0xff]
        %v1527 = vld [vmem:[#allocation17 + $0x48] sm:$0xff]
        %v1528 = vld [vmem:[#allocation17 + $0x50] sm:$0xff]
        %v1529 = vld [vmem:[#allocation17 + $0x58] sm:$0xff]
        %v1530 = vld [vmem:[#allocation17 + $0x60] sm:$0xff]
        %v1531 = vld [vmem:[#allocation17 + $0x68] sm:$0xff]
        %v1532 = vld [vmem:[#allocation17 + $0x70] sm:$0xff]
        %v1533 = vld [vmem:[#allocation17 + $0x78] sm:$0xff]
        %v1534 = vld [vmem:[%s15] sm:$0x3]
        %v1536 = vperm.slane %v1534, 0
        %v1537 = vperm.slane %v1534, 1
        %v1542 = vunpack.c.l.b16 %v1516
        %v1543 = vunpack.c.l.b16 %v1517
        %v1544 = vrot.slane %v1543, 7
        %v1545 = vsel %vm1155, %v1544, %v1542
        %v1546 = vpack.c.b16 %v1545, %v1545
        %v1564 = vunpack.c.l.b16 %v1518
        %v1565 = vunpack.c.h.b16 %v1518
        %v1566 = vunpack.c.l.b16 %v1519
        %v1567 = vunpack.c.h.b16 %v1519
        %v1568 = vunpack.c.l.b16 %v1520
        %v1569 = vunpack.c.h.b16 %v1520
        %v1570 = vunpack.c.l.b16 %v1521
        %v1571 = vunpack.c.h.b16 %v1521
        %v1572 = vunpack.c.l.b16 %v1522
        %v1573 = vunpack.c.h.b16 %v1522
        %v1574 = vunpack.c.l.b16 %v1523
        %v1575 = vunpack.c.h.b16 %v1523
        %v1576 = vunpack.c.l.b16 %v1524
        %v1577 = vunpack.c.h.b16 %v1524
        %v1578 = vunpack.c.l.b16 %v1525
        %v1579 = vunpack.c.h.b16 %v1525
        %v1580 = vunpack.c.l.b16 %v1526
        %v1581 = vunpack.c.h.b16 %v1526
        %v1582 = vunpack.c.l.b16 %v1527
        %v1583 = vunpack.c.h.b16 %v1527
        %v1584 = vunpack.c.l.b16 %v1528
        %v1585 = vunpack.c.h.b16 %v1528
        %v1586 = vunpack.c.l.b16 %v1529
        %v1587 = vunpack.c.h.b16 %v1529
        %v1588 = vunpack.c.l.b16 %v1530
        %v1589 = vunpack.c.h.b16 %v1530
        %v1590 = vunpack.c.l.b16 %v1531
        %v1591 = vunpack.c.h.b16 %v1531
        %v1592 = vunpack.c.l.b16 %v1532
        %v1593 = vunpack.c.h.b16 %v1532
        %v1594 = vunpack.c.l.b16 %v1533
        %v1595 = vunpack.c.h.b16 %v1533
        %v1596 = vpack.c.b16 %v1566, %v1564
        %v1597 = vpack.c.b16 %v1567, %v1565
        %v1598 = vpack.c.b16 %v1570, %v1568
        %v1599 = vpack.c.b16 %v1571, %v1569
        %v1600 = vpack.c.b16 %v1574, %v1572
        %v1601 = vpack.c.b16 %v1575, %v1573
        %v1602 = vpack.c.b16 %v1578, %v1576
        %v1603 = vpack.c.b16 %v1579, %v1577
        %v1604 = vpack.c.b16 %v1582, %v1580
        %v1605 = vpack.c.b16 %v1583, %v1581
        %v1606 = vpack.c.b16 %v1586, %v1584
        %v1607 = vpack.c.b16 %v1587, %v1585
        %v1608 = vpack.c.b16 %v1590, %v1588
        %v1609 = vpack.c.b16 %v1591, %v1589
        %v1610 = vpack.c.b16 %v1594, %v1592
        %v1611 = vpack.c.b16 %v1595, %v1593
        %1628 = vmatpush.bf16.msra.mxu0 %v1610
        %1629 = vmatpush.bf16.msra.mxu0 %v1608
        %1630 = vmatpush.bf16.msra.mxu0 %v1606
        %1631 = vmatpush.bf16.msra.mxu0 %v1604
        %1632 = vmatpush.bf16.msra.mxu0 %v1602
        %1633 = vmatpush.bf16.msra.mxu0 %v1600
        %1634 = vmatpush.bf16.msra.mxu0 %v1598
        %1635 = vmatpush.bf16.msra.mxu0 %v1596
        %1636 = vmatmul.bf16.gmra.mxu0 %v1546
        %v1637 = vpop.f32.mrf.mxu0
        %v1638 = vadd.f32 %v1536, %v1637
        %v1639 = vpop.f32.mrf.mxu0
        %1640 = vdwg.mxu0
        %1641 = vmatpush.bf16.msra.mxu0 %v1611
        %1642 = vmatpush.bf16.msra.mxu0 %v1609
        %1643 = vmatpush.bf16.msra.mxu0 %v1607
        %1644 = vmatpush.bf16.msra.mxu0 %v1605
        %1645 = vmatpush.bf16.msra.mxu0 %v1603
        %1646 = vmatpush.bf16.msra.mxu0 %v1601
        %1647 = vmatpush.bf16.msra.mxu0 %v1599
        %1648 = vmatpush.bf16.msra.mxu0 %v1597
        %1649 = vmatmul.bf16.gmra.mxu0 %v1546
        %v1650 = vpop.f32.mrf.mxu0
        %v1651 = vadd.f32 %v1537, %v1650
        %v1652 = vpop.f32.mrf.mxu0
        %1653 = vdwg.mxu0
        %v1654 = vmul.f32 %v1638, 0.5
        %v1655 = vmul.f32 %v1651, 0.5
        %v1656 = vmul.f32 %v1638, 0.044715
        %v1657 = vmul.f32 %v1651, 0.044715
        %v1658 = vmul.f32 %v1656, %v1638
        %v1659 = vmul.f32 %v1657, %v1651
        %v1660 = vmul.f32 %v1658, %v1638
        %v1661 = vmul.f32 %v1659, %v1651
        %v1662 = vadd.f32 %v1638, %v1660
        %v1663 = vadd.f32 %v1651, %v1661
        %v1664 = vmul.f32 %v1662, 0.7978846
        %v1665 = vmul.f32 %v1663, 0.7978846
        %v1666 = vtanh.pop %v1664
        %v1667 = vtanh.pop %v1665
        %v1668 = vadd.f32 %v1666, 1.0
        %v1669 = vadd.f32 %v1667, 1.0
        %v1670 = vmul.f32 %v1654, %v1668
        %v1671 = vmul.f32 %v1655, %v1669
        %v1672 = vpack.c.bf16 %v1670, %v1670
        %v1673 = vpack.c.bf16 %v1671, %v1671
        %v1674 = vld [vmem:[#allocation18] sm:$0xf]
        %v1675 = vld [vmem:[#allocation18 + $0x4] sm:$0xf]
        %v1676 = vld [vmem:[#allocation18 + $0x8] sm:$0xf]
        %v1677 = vld [vmem:[#allocation18 + $0xc] sm:$0xf]
        %v1678 = vld [vmem:[#allocation18 + $0x10] sm:$0xf]
        %v1679 = vld [vmem:[#allocation18 + $0x14] sm:$0xf]
        %v1680 = vld [vmem:[#allocation18 + $0x18] sm:$0xf]
        %v1681 = vld [vmem:[#allocation18 + $0x1c] sm:$0xf]
        %v1682 = vld [vmem:[#allocation18 + $0x20] sm:$0xf]
        %v1683 = vld [vmem:[#allocation18 + $0x24] sm:$0xf]
        %v1684 = vld [vmem:[#allocation18 + $0x28] sm:$0xf]
        %v1685 = vld [vmem:[#allocation18 + $0x2c] sm:$0xf]
        %v1686 = vld [vmem:[#allocation18 + $0x30] sm:$0xf]
        %v1687 = vld [vmem:[#allocation18 + $0x34] sm:$0xf]
        %v1688 = vld [vmem:[#allocation18 + $0x38] sm:$0xf]
        %v1689 = vld [vmem:[#allocation18 + $0x3c] sm:$0xf]
        %v1690 = vld [vmem:[#allocation18 + $0x40] sm:$0xf]
        %v1691 = vld [vmem:[#allocation18 + $0x44] sm:$0xf]
        %v1692 = vld [vmem:[#allocation18 + $0x48] sm:$0xf]
        %v1693 = vld [vmem:[#allocation18 + $0x4c] sm:$0xf]
        %v1694 = vld [vmem:[#allocation18 + $0x50] sm:$0xf]
        %v1695 = vld [vmem:[#allocation18 + $0x54] sm:$0xf]
        %v1696 = vld [vmem:[#allocation18 + $0x58] sm:$0xf]
        %v1697 = vld [vmem:[#allocation18 + $0x5c] sm:$0xf]
        %v1698 = vld [vmem:[#allocation18 + $0x60] sm:$0xf]
        %v1699 = vld [vmem:[#allocation18 + $0x64] sm:$0xf]
        %v1700 = vld [vmem:[#allocation18 + $0x68] sm:$0xf]
        %v1701 = vld [vmem:[#allocation18 + $0x6c] sm:$0xf]
        %v1702 = vld [vmem:[#allocation18 + $0x70] sm:$0xf]
        %v1703 = vld [vmem:[#allocation18 + $0x74] sm:$0xf]
        %v1704 = vld [vmem:[#allocation18 + $0x78] sm:$0xf]
        %v1705 = vld [vmem:[#allocation18 + $0x7c] sm:$0xf]
        %v1706 = vld [vmem:[%s17] sm:$0x1]
        %v1708 = vperm.slane %v1706, 0
        %v1742 = vunpack.c.l.b16 %v1674
        %v1743 = vunpack.c.l.b16 %v1675
        %v1744 = vunpack.c.l.b16 %v1676
        %v1745 = vunpack.c.l.b16 %v1677
        %v1746 = vunpack.c.l.b16 %v1678
        %v1747 = vunpack.c.l.b16 %v1679
        %v1748 = vunpack.c.l.b16 %v1680
        %v1749 = vunpack.c.l.b16 %v1681
        %v1750 = vunpack.c.l.b16 %v1682
        %v1751 = vunpack.c.l.b16 %v1683
        %v1752 = vunpack.c.l.b16 %v1684
        %v1753 = vunpack.c.l.b16 %v1685
        %v1754 = vunpack.c.l.b16 %v1686
        %v1755 = vunpack.c.l.b16 %v1687
        %v1756 = vunpack.c.l.b16 %v1688
        %v1757 = vunpack.c.l.b16 %v1689
        %v1758 = vunpack.c.l.b16 %v1690
        %v1759 = vunpack.c.l.b16 %v1691
        %v1760 = vunpack.c.l.b16 %v1692
        %v1761 = vunpack.c.l.b16 %v1693
        %v1762 = vunpack.c.l.b16 %v1694
        %v1763 = vunpack.c.l.b16 %v1695
        %v1764 = vunpack.c.l.b16 %v1696
        %v1765 = vunpack.c.l.b16 %v1697
        %v1766 = vunpack.c.l.b16 %v1698
        %v1767 = vunpack.c.l.b16 %v1699
        %v1768 = vunpack.c.l.b16 %v1700
        %v1769 = vunpack.c.l.b16 %v1701
        %v1770 = vunpack.c.l.b16 %v1702
        %v1771 = vunpack.c.l.b16 %v1703
        %v1772 = vunpack.c.l.b16 %v1704
        %v1773 = vunpack.c.l.b16 %v1705
        %v1774 = vpack.c.b16 %v1743, %v1742
        %v1775 = vpack.c.b16 %v1745, %v1744
        %v1776 = vpack.c.b16 %v1747, %v1746
        %v1777 = vpack.c.b16 %v1749, %v1748
        %v1778 = vpack.c.b16 %v1751, %v1750
        %v1779 = vpack.c.b16 %v1753, %v1752
        %v1780 = vpack.c.b16 %v1755, %v1754
        %v1781 = vpack.c.b16 %v1757, %v1756
        %v1782 = vpack.c.b16 %v1759, %v1758
        %v1783 = vpack.c.b16 %v1761, %v1760
        %v1784 = vpack.c.b16 %v1763, %v1762
        %v1785 = vpack.c.b16 %v1765, %v1764
        %v1786 = vpack.c.b16 %v1767, %v1766
        %v1787 = vpack.c.b16 %v1769, %v1768
        %v1788 = vpack.c.b16 %v1771, %v1770
        %v1789 = vpack.c.b16 %v1773, %v1772
        %1806 = vmatpush.bf16.msra.mxu0 %v1781
        %1807 = vmatpush.bf16.msra.mxu0 %v1780
        %1808 = vmatpush.bf16.msra.mxu0 %v1779
        %1809 = vmatpush.bf16.msra.mxu0 %v1778
        %1810 = vmatpush.bf16.msra.mxu0 %v1777
        %1811 = vmatpush.bf16.msra.mxu0 %v1776
        %1812 = vmatpush.bf16.msra.mxu0 %v1775
        %1813 = vmatpush.bf16.msra.mxu0 %v1774
        %1814 = vmatmul.bf16.gmra.mxu0 %v1672
        %v1815 = vpop.f32.mrf.mxu0
        %v1816 = vadd.f32 %v1708, %v1815
        %v1817 = vpop.f32.mrf.mxu0
        %1818 = vdwg.mxu0
        %1819 = vmatpush.bf16.msra.mxu0 %v1789
        %1820 = vmatpush.bf16.msra.mxu0 %v1788
        %1821 = vmatpush.bf16.msra.mxu0 %v1787
        %1822 = vmatpush.bf16.msra.mxu0 %v1786
        %1823 = vmatpush.bf16.msra.mxu0 %v1785
        %1824 = vmatpush.bf16.msra.mxu0 %v1784
        %1825 = vmatpush.bf16.msra.mxu0 %v1783
        %1826 = vmatpush.bf16.msra.mxu0 %v1782
        %1827 = vmatmul.bf16.gmra.mxu0 %v1673
        %v1828 = vpop.f32.mrf.mxu0
        %v1829 = vadd.f32 %v1816, %v1828
        %v1830 = vpop.f32.mrf.mxu0
        %1831 = vdwg.mxu0
        %v1833 = vrot.slane %v1829, 1
        %v1836 = vadd.f32 %v1514, %v1829
        %v1837 = vadd.f32 %v1515, %v1833
        %v1838 = vld [vmem:[%s18] sm:$0x1]
        %v1839 = vld [vmem:[%s19] sm:$0x1]
        %v1842 = vrot.slane %v1837, 7
        %v1843 = vsel %vm1155, %v1842, %v1836
        %v1845 = vsel %vm1460, %v1843, 0.0
        %1846 = vadd.xlane.f32.xlu0 %v1845
        %v1847 = vpop.xlane.xlu0 %1846
        %v1848 = vmul.f32 %v1847, %v1470
        %v1850 = vrot.slane %v1848, 1
        %v1853 = vsub.f32 %v1836, %v1848
        %v1854 = vsub.f32 %v1837, %v1850
        %v1855 = vmul.f32 %v1853, %v1853
        %v1856 = vmul.f32 %v1854, %v1854
        %v1859 = vrot.slane %v1856, 7
        %v1860 = vsel %vm1155, %v1859, %v1855
        %v1862 = vsel %vm1460, %v1860, 0.0
        %1863 = vadd.xlane.f32.xlu0 %v1862
        %v1864 = vpop.xlane.xlu0 %1863
        %v1865 = vmul.f32 %v1864, %v1470
        %v1866 = vadd.f32 %v1865, 1e-12
        %v1867 = vrsqrt.pop %v1866
        %v1868 = vmul.f32 %v1867, %v1866
        %v1869 = vmul.f32 %v1868, %v1867
        %v1870 = vmul.f32 0.5, %v1869
        %v1871 = vsub.f32 1.5, %v1870
        %v1872 = vmul.f32 %v1867, %v1871
        %vm1873 = vweird.f32 %v1866
        %vm1874 = vweird.f32 %v1867
        %vm1875 = vmor %vm1873, %vm1874
        %v1876 = vsel %vm1875, %v1867, %v1872
        %v1878 = vrot.slane %v1876, 1
        %v1881 = vmul.f32 %v1853, %v1876
        %v1882 = vmul.f32 %v1854, %v1878
        %v1884 = vperm.slane %v1838, 0
        %v1886 = vmul.f32 %v1881, %v1884
        %v1887 = vmul.f32 %v1882, %v1884
        %v1889 = vperm.slane %v1839, 0
        %v1891 = vadd.f32 %v1886, %v1889
        %v1892 = vadd.f32 %v1887, %v1889
        %v1895 = vrot.slane %v1892, 7
        %v1896 = vsel %vm1155, %v1895, %v1891
        %v1898 = vsel %vm1460, %v1896, 0.0
        %1899 = vadd.xlane.f32.xlu0 %v1898
        %v1900 = vpop.xlane.xlu0 %1899
        %v1901 = vmul.f32 %v1900, %v1470
        %v1903 = vrot.slane %v1901, 1
        %v1906 = vsub.f32 %v1891, %v1901
        %v1907 = vsub.f32 %v1892, %v1903
        %v1908 = vmul.f32 %v1906, %v1906
        %v1909 = vmul.f32 %v1907, %v1907
        %v1912 = vrot.slane %v1909, 7
        %v1913 = vsel %vm1155, %v1912, %v1908
        %v1915 = vsel %vm1460, %v1913, 0.0
        %1916 = vadd.xlane.f32.xlu0 %v1915
        %v1917 = vpop.xlane.xlu0 %1916
        %v1918 = vmul.f32 %v1917, %v1470
        %v1919 = vadd.f32 %v1918, 1e-12
        %v1920 = vrsqrt.pop %v1919
        %v1921 = vmul.f32 %v1920, %v1919
        %v1922 = vmul.f32 %v1921, %v1920
        %v1923 = vmul.f32 0.5, %v1922
        %v1924 = vsub.f32 1.5, %v1923
        %v1925 = vmul.f32 %v1920, %v1924
        %vm1926 = vweird.f32 %v1919
        %vm1927 = vweird.f32 %v1920
        %vm1928 = vmor %vm1926, %vm1927
        %v1929 = vsel %vm1928, %v1920, %v1925
        %v1931 = vrot.slane %v1929, 1
        %v1934 = vmul.f32 %v1906, %v1929
        %v1935 = vmul.f32 %v1907, %v1931
        %v1936 = vpack.c.bf16 %v1934, %v1934
        %v1937 = vpack.c.bf16 %v1935, %v1935
        %v1938 = vld [vmem:[#allocation20] sm:$0xf]
        %v1939 = vld [vmem:[#allocation20 + $0x4] sm:$0xf]
        %v1940 = vld [vmem:[#allocation20 + $0x8] sm:$0xf]
        %v1941 = vld [vmem:[#allocation20 + $0xc] sm:$0xf]
        %v1942 = vld [vmem:[#allocation20 + $0x10] sm:$0xf]
        %v1943 = vld [vmem:[#allocation20 + $0x14] sm:$0xf]
        %v1944 = vld [vmem:[#allocation20 + $0x18] sm:$0xf]
        %v1945 = vld [vmem:[#allocation20 + $0x1c] sm:$0xf]
        %v1946 = vld [vmem:[#allocation20 + $0x20] sm:$0xf]
        %v1947 = vld [vmem:[#allocation20 + $0x24] sm:$0xf]
        %v1948 = vld [vmem:[#allocation20 + $0x28] sm:$0xf]
        %v1949 = vld [vmem:[#allocation20 + $0x2c] sm:$0xf]
        %v1950 = vld [vmem:[#allocation20 + $0x30] sm:$0xf]
        %v1951 = vld [vmem:[#allocation20 + $0x34] sm:$0xf]
        %v1952 = vld [vmem:[#allocation20 + $0x38] sm:$0xf]
        %v1953 = vld [vmem:[#allocation20 + $0x3c] sm:$0xf]
        %v1954 = vld [vmem:[%s21] sm:$0x1]
        %v1956 = vperm.slane %v1954, 0
        %v1960 = vunpack.c.l.b16 %v1936
        %v1961 = vunpack.c.l.b16 %v1937
        %v1962 = vrot.slane %v1961, 7
        %v1963 = vsel %vm1155, %v1962, %v1960
        %v1964 = vpack.c.b16 %v1963, %v1963
        %v1982 = vunpack.c.l.b16 %v1938
        %v1983 = vunpack.c.l.b16 %v1939
        %v1984 = vunpack.c.l.b16 %v1940
        %v1985 = vunpack.c.l.b16 %v1941
        %v1986 = vunpack.c.l.b16 %v1942
        %v1987 = vunpack.c.l.b16 %v1943
        %v1988 = vunpack.c.l.b16 %v1944
        %v1989 = vunpack.c.l.b16 %v1945
        %v1990 = vunpack.c.l.b16 %v1946
        %v1991 = vunpack.c.l.b16 %v1947
        %v1992 = vunpack.c.l.b16 %v1948
        %v1993 = vunpack.c.l.b16 %v1949
        %v1994 = vunpack.c.l.b16 %v1950
        %v1995 = vunpack.c.l.b16 %v1951
        %v1996 = vunpack.c.l.b16 %v1952
        %v1997 = vunpack.c.l.b16 %v1953
        %v1998 = vpack.c.b16 %v1983, %v1982
        %v1999 = vpack.c.b16 %v1985, %v1984
        %v2000 = vpack.c.b16 %v1987, %v1986
        %v2001 = vpack.c.b16 %v1989, %v1988
        %v2002 = vpack.c.b16 %v1991, %v1990
        %v2003 = vpack.c.b16 %v1993, %v1992
        %v2004 = vpack.c.b16 %v1995, %v1994
        %v2005 = vpack.c.b16 %v1997, %v1996
        %2014 = vmatpush.bf16.msra.mxu0 %v2005
        %2015 = vmatpush.bf16.msra.mxu0 %v2004
        %2016 = vmatpush.bf16.msra.mxu0 %v2003
        %2017 = vmatpush.bf16.msra.mxu0 %v2002
        %2018 = vmatpush.bf16.msra.mxu0 %v2001
        %2019 = vmatpush.bf16.msra.mxu0 %v2000
        %2020 = vmatpush.bf16.msra.mxu0 %v1999
        %2021 = vmatpush.bf16.msra.mxu0 %v1998
        %2022 = vmatmul.bf16.gmra.mxu0 %v1964
        %v2023 = vpop.f32.mrf.mxu0
        %v2024 = vadd.f32 %v1956, %v2023
        %v2025 = vpop.f32.mrf.mxu0
        %2026 = vdwg.mxu0
        %v2027 = vmul.f32 %v2024, 0.5
        %v2028 = vmul.f32 %v2024, 0.70710677
        %vm2029 = vcmp.ge.f32.partialorder %v2028, 0.0
        %v2030 = vsel %vm2029, 1.0, -1.0
        %v2031 = vand.u32 2147483647, %v2028
        %v2032 = vmul.f32 %v2031, 0.3275911
        %v2033 = vadd.f32 %v2032, 1.0
        %v2034 = vrcp.pop %v2033
        %v2035 = vmul.f32 %v2033, %v2034
        %v2036 = vsub.f32 1.0, %v2035
        %v2037 = vmul.f32 %v2034, %v2036
        %v2038 = vadd.f32 %v2034, %v2037
        %vm2039 = vweird.f32 %v2033
        %vm2040 = vweird.f32 %v2034
        %vm2041 = vmor %vm2039, %vm2040
        %v2042 = vsel %vm2041, %v2034, %v2038
        %v2043 = vand.u32 2147483647, %v2033
        %vm2044 = vcmp.eq.f32.partialorder %v2043, 8.507059e+37
        %v2045 = vand.u32 %v2033, 2147483648
        %v2046 = vor.u32 1.1754944e-38, %v2045
        %v2047 = vsel %vm2044, %v2046, %v2042
        %v2048 = vmul.f32 1.0, %v2047
        %v2049 = vmul.f32 %v2048, 1.0614054
        %v2050 = vadd.f32 %v2049, -1.4531521
        %v2051 = vmul.f32 %v2050, %v2048
        %v2052 = vadd.f32 %v2051, 1.4214138
        %v2053 = vmul.f32 %v2052, %v2048
        %v2054 = vadd.f32 %v2053, -0.28449672
        %v2055 = vmul.f32 %v2054, %v2048
        %v2056 = vadd.f32 %v2055, 0.2548296
        %v2057 = vmul.f32 %v2056, %v2048
        %v2058 = vsub.f32 0.0, %v2031
        %v2059 = vmul.f32 %v2058, %v2031
        %v2060 = vmul.f32 %v2059, 1.442695
        %v2061 = vpow.pop %v2060
        %v2062 = vmul.f32 %v2057, %v2061
        %v2063 = vsub.f32 1.0, %v2062
        %v2064 = vmul.f32 %v2030, %v2063
        %v2065 = vadd.f32 %v2064, 1.0
        %v2066 = vmul.f32 %v2027, %v2065
        %v2067 = vsel %vm1460, %v2066, 0.0
        %2068 = vadd.xlane.f32.xlu0 %v2067
        %v2069 = vpop.xlane.xlu0 %2068
        %v2070 = vmul.f32 %v2069, %v1470
        %v2071 = vsub.f32 %v2066, %v2070
        %v2072 = vmul.f32 %v2071, %v2071
        %v2073 = vsel %vm1460, %v2072, 0.0
        %2074 = vadd.xlane.f32.xlu0 %v2073
        %v2075 = vpop.xlane.xlu0 %2074
        %v2076 = vmul.f32 %v2075, %v1470
        %v2077 = vadd.f32 %v2076, 1e-12
        %v2078 = vrsqrt.pop %v2077
        %v2079 = vmul.f32 %v2078, %v2077
        %v2080 = vmul.f32 %v2079, %v2078
        %v2081 = vmul.f32 0.5, %v2080
        %v2082 = vsub.f32 1.5, %v2081
        %v2083 = vmul.f32 %v2078, %v2082
        %vm2084 = vweird.f32 %v2077
        %vm2085 = vweird.f32 %v2078
        %vm2086 = vmor %vm2084, %vm2085
        %v2087 = vsel %vm2086, %v2078, %v2083
        %v2088 = vmul.f32 %v2071, %v2087
        %v2089 = vpack.c.bf16 %v2088, %v2088
        %v2090 = vld [vmem:[#allocation21] sm:$0xf]
        %v2091 = vld [vmem:[#allocation21 + $0x4] sm:$0xf]
        %v2092 = vld [vmem:[#allocation21 + $0x8] sm:$0xf]
        %v2093 = vld [vmem:[#allocation21 + $0xc] sm:$0xf]
        %v2094 = vld [vmem:[#allocation21 + $0x10] sm:$0xf]
        %v2095 = vld [vmem:[#allocation21 + $0x14] sm:$0xf]
        %v2096 = vld [vmem:[#allocation21 + $0x18] sm:$0xf]
        %v2097 = vld [vmem:[#allocation21 + $0x1c] sm:$0xf]
        %v2098 = vld [vmem:[#allocation21 + $0x20] sm:$0xf]
        %v2099 = vld [vmem:[#allocation21 + $0x24] sm:$0xf]
        %v2100 = vld [vmem:[#allocation21 + $0x28] sm:$0xf]
        %v2101 = vld [vmem:[#allocation21 + $0x2c] sm:$0xf]
        %v2102 = vld [vmem:[#allocation21 + $0x30] sm:$0xf]
        %v2103 = vld [vmem:[#allocation21 + $0x34] sm:$0xf]
        %v2104 = vld [vmem:[#allocation21 + $0x38] sm:$0xf]
        %v2105 = vld [vmem:[#allocation21 + $0x3c] sm:$0xf]
        %v2106 = vld [vmem:[%s23] sm:$0x1]
        %v2108 = vperm.slane %v2106, 0
        %v2126 = vunpack.c.l.b16 %v2090
        %v2127 = vunpack.c.l.b16 %v2091
        %v2128 = vunpack.c.l.b16 %v2092
        %v2129 = vunpack.c.l.b16 %v2093
        %v2130 = vunpack.c.l.b16 %v2094
        %v2131 = vunpack.c.l.b16 %v2095
        %v2132 = vunpack.c.l.b16 %v2096
        %v2133 = vunpack.c.l.b16 %v2097
        %v2134 = vunpack.c.l.b16 %v2098
        %v2135 = vunpack.c.l.b16 %v2099
        %v2136 = vunpack.c.l.b16 %v2100
        %v2137 = vunpack.c.l.b16 %v2101
        %v2138 = vunpack.c.l.b16 %v2102
        %v2139 = vunpack.c.l.b16 %v2103
        %v2140 = vunpack.c.l.b16 %v2104
        %v2141 = vunpack.c.l.b16 %v2105
        %v2142 = vpack.c.b16 %v2127, %v2126
        %v2143 = vpack.c.b16 %v2129, %v2128
        %v2144 = vpack.c.b16 %v2131, %v2130
        %v2145 = vpack.c.b16 %v2133, %v2132
        %v2146 = vpack.c.b16 %v2135, %v2134
        %v2147 = vpack.c.b16 %v2137, %v2136
        %v2148 = vpack.c.b16 %v2139, %v2138
        %v2149 = vpack.c.b16 %v2141, %v2140
        %2158 = vmatpush.bf16.msra.mxu0 %v2149
        %2159 = vmatpush.bf16.msra.mxu0 %v2148
        %2160 = vmatpush.bf16.msra.mxu0 %v2147
        %2161 = vmatpush.bf16.msra.mxu0 %v2146
        %2162 = vmatpush.bf16.msra.mxu0 %v2145
        %2163 = vmatpush.bf16.msra.mxu0 %v2144
        %2164 = vmatpush.bf16.msra.mxu0 %v2143
        %2165 = vmatpush.bf16.msra.mxu0 %v2142
        %2166 = vmatmul.bf16.gmra.mxu0 %v2089
        %v2167 = vpop.f32.mrf.mxu0
        %v2168 = vadd.f32 %v2108, %v2167
        %v2169 = vpop.f32.mrf.mxu0
        %2170 = vdwg.mxu0
        %v2172 = vrot.slane %v2168, 1
        %2174 = vst [vmem:[%s859] sm:$0x1] %v2168
        %2175 = vst [vmem:[%s859 + $0x1] sm:$0x1] %v2172
        %s2176 = sand.u32 %s529, 1
        %s2177 = scalar_lea.sflag [#allocation8], %s2176
        %s2178 = sand.u32 %s529, 1
        %s2179 = smul.addr %s2178, 2
        %s2180 = scalar_lea.vmem [#allocation23], %s2179
        // Predicated region
        $region175: #{tpu_custom_call.1} parent=107 // pred_check
          %p2181 = pneg %p539
        $region176: #{tpu_custom_call.1} parent=107 // pred_check_branch
          %2183 = sbr.rel (%p2181) target = $region178
        $region177: #{tpu_custom_call.1} parent=107 // pred_region
          %s2184 = smul.u32 2, %s54
          %2186 = vsyncadd %s2177, 0
          %s2187 = scalar_lea.hbm %s24, %s2184
          %s2188 = sshll.u32 %s2180, 4
          %s2189 = int_to_ptr.vmem [resolvable:$true] %s2188
          %s2190 = sshll.u32 %s2187, 4
          %s2191 = int_to_ptr.hbm [resolvable:$true] %s2190
          %2196 = dma.vmem_to_hbm [thread:$0]  %s2189, 32, %s2191, %s2177, 16, 16, 1
        $region178: #{tpu_custom_call.1} parent=107 // pred_fallthru
          _
      $region108: #{tpu_custom_call.1} parent=5 // pred_fallthru
        _
      %p2197 = scmp.le.s32.totalorder 2, %s49
      // Predicated region
      $region179: #{tpu_custom_call.1} parent=5 // pred_check
        %p2198 = pneg %p2197
      $region180: #{tpu_custom_call.1} parent=5 // pred_check_branch
        %2200 = sbr.rel (%p2198) target = $region182
      $region181: #{tpu_custom_call.1} parent=5 // pred_region
        %s2201 = ssub.s32 %s49, 2
        // Predicated region
        $region183: #{tpu_custom_call.1} parent=181 // pred_check
          %p2202 = pneg %p545
        $region184: #{tpu_custom_call.1} parent=181 // pred_check_branch
          %2204 = sbr.rel (%p2202) target = $region186
        $region185: #{tpu_custom_call.1} parent=181 // pred_region
          %s2205 = sand.u32 %s530, 1
          %s2206 = scalar_lea.sflag [#allocation8], %s2205
          %s2207 = sand.u32 %s530, 1
          %s2208 = smul.addr %s2207, 2
          %s2209 = scalar_lea.vmem [#allocation23], %s2208
          %2211 = dma.done %s2206, 32
        $region186: #{tpu_custom_call.1} parent=181 // pred_fallthru
          _
      $region182: #{tpu_custom_call.1} parent=5 // pred_fallthru
        _
    $region6: #{tpu_custom_call.1} parent=1 // loop_footer
      %s53 = sadd.s32 1, %s49
    $region7: #{tpu_custom_call.1} parent=1 // loop_footer_branch
      %48 = sbr.rel target = $region3
    $region8: #{tpu_custom_call.1} parent=1 // loop_exit
      _
    %2212 = vsyncpa [#allocation7], 1
    %s2213 = scalar_lea.sflag [#allocation7], 1
    %2214 = vsyncpa %s2213, 1
    %2215 = vsyncpa [#allocation10], 1
    %s2216 = scalar_lea.sflag [#allocation10], 1
    %2217 = vsyncpa %s2216, 1
    %2218 = vsyncpa [#allocation13], 1
    %2219 = vsyncpa [#allocation16], 1
    %2220 = vsyncpa [#allocation19], 1
    %2221 = vsyncpa [#allocation22], 1
    %2222 = vsyncpa [#allocation8], 1
    %s2223 = scalar_lea.sflag [#allocation8], 1
    %2224 = vsyncpa %s2223, 1
  %2225 = vsyncmov [#allocation3]
  %s2226 = vpop.sfrf %2225
  %p2227 = scmp.eq.s32.totalorder %s2226, 0
  %p2228 = pneg %p2227
  %2230 = shalt.err (%p2228)
  %s2231 = scalar_lea.sflag [#allocation3], 1
  %2232 = vsyncmov %s2231
  %s2233 = vpop.sfrf %2232
  %p2234 = scmp.eq.s32.totalorder %s2233, 0
  %p2235 = pneg %p2234
  %2237 = shalt.err (%p2235)
  %s2238 = scalar_lea.sflag [#allocation3], 2
  %2239 = vsyncmov %s2238
  %s2240 = vpop.sfrf %2239
  %p2241 = scmp.eq.s32.totalorder %s2240, 0
  %p2242 = pneg %p2241
  %2244 = shalt.err (%p2242)
  %s2245 = scalar_lea.sflag [#allocation3], 3
  %2246 = vsyncmov %s2245
  %s2247 = vpop.sfrf %2246
  %p2248 = scmp.eq.s32.totalorder %s2247, 0
  %p2249 = pneg %p2248
  %2251 = shalt.err (%p2249)
  %s2252 = scalar_lea.sflag [#allocation3], 4
  %2253 = vsyncmov %s2252
  %s2254 = vpop.sfrf %2253
  %p2255 = scmp.eq.s32.totalorder %s2254, 0
  %p2256 = pneg %p2255
  %2258 = shalt.err (%p2256)
  %s2259 = scalar_lea.sflag [#allocation3], 5
  %2260 = vsyncmov %s2259
  %s2261 = vpop.sfrf %2260
  %p2262 = scmp.eq.s32.totalorder %s2261, 0
  %p2263 = pneg %p2262
  %2265 = shalt.err (%p2263)
  %s2266 = scalar_lea.sflag [#allocation3], 6
  %2267 = vsyncmov %s2266
  %s2268 = vpop.sfrf %2267
  %p2269 = scmp.eq.s32.totalorder %s2268, 0
  %p2270 = pneg %p2269
  %2272 = shalt.err (%p2270)
  %s2273 = scalar_lea.sflag [#allocation3], 7
  %2274 = vsyncmov %s2273
  %s2275 = vpop.sfrf %2274
  %p2276 = scmp.eq.s32.totalorder %s2275, 0
  %p2277 = pneg %p2276
  %2279 = shalt.err (%p2277)

// kernel: tpu_custom_call.1
$region0: #{tpu_custom_call.1}
  #allocation0 [shape = 'u32[]', space=smem, size = 0x4, offset = 0x4, fixed_abs, tag = 'smem constant byte address 0x4 - core index']
  #allocation1 [shape = 'u32[72,128]{1,0:T(1,128)}', space=vmem, size = 0x9000, scoped, tag = 'internal scratch']
  #allocation2 [shape = 'f32[16,128]{1,0:T(8,128)}', space=vmem, size = 0x2000, scoped, tag = 'scratch operand']
  #allocation3 [shape = 's32[8]{0}', space=sflag, size = 0x20, scoped, tag = 'scratch operand']
  #allocation4 [shape = 's32[1]{0}', space=sflag, size = 0x4, scoped, tag = 'scoped memory for tpu_custom_call.1']
  #allocation5 [shape = 'u8[512]{0}', space=smem, size = 0x200, scoped, tag = 'prefetched SMEM operand 0']
  #allocation24 [shape = 's32[]', space=sflag, size = 0x4, offset = 0, fixed_abs, tag = 'sflag constant byte address 0x0 - dummy sync flag']
  #allocation25 [shape = 's32[]', space=sflag, size = 0x4, offset = 0, fixed_abs, tag = 'sflag constant byte address 0x0 - dummy sync flag']
  #allocation26 [shape = 'u32[]', space=smem, size = 0x4, offset = 0x44, fixed_abs, tag = 'smem constant byte address 0x44 - assertion arg 0']
  #allocation27 [shape = 'u32[]', space=smem, size = 0x4, offset = 0x48, fixed_abs, tag = 'smem constant byte address 0x48 - assertion arg 1']
  #allocation28 [shape = 's32[]', space=sflag, size = 0x4, offset = 0, fixed_abs, tag = 'sflag constant byte address 0x0 - dummy sync flag']
  #allocation29 [shape = 's32[]', space=sflag, size = 0x4, offset = 0, fixed_abs, tag = 'sflag constant byte address 0x0 - dummy sync flag']
  %s0 = inlined_call_operand.hbm [shape: s32[32], index: 0, kind: input, shape index: {}]
  %s1 = inlined_call_operand.hbm [shape: f32[64,128], index: 1, kind: input, shape index: {}]
  %s2 = inlined_call_operand.hbm [shape: f32[8,128], index: 2, kind: input, shape index: {}]
  %s3 = inlined_call_operand.hbm [shape: f32[4,1,8], index: 3, kind: input, shape index: {}]
  %s4 = inlined_call_operand.hbm [shape: bf16[128,128], index: 4, kind: input, shape index: {}]
  %s5 = inlined_call_operand.vmem [shape: f32[1,128], index: 5, kind: input, shape index: {}]
  %s6 = inlined_call_operand.hbm [shape: bf16[128,128], index: 6, kind: input, shape index: {}]
  %s7 = inlined_call_operand.vmem [shape: f32[1,128], index: 7, kind: input, shape index: {}]
  %s8 = inlined_call_operand.hbm [shape: bf16[128,128], index: 8, kind: input, shape index: {}]
  %s9 = inlined_call_operand.vmem [shape: f32[1,128], index: 9, kind: input, shape index: {}]
  %s10 = inlined_call_operand.hbm [shape: bf16[128,128], index: 10, kind: input, shape index: {}]
  %s11 = inlined_call_operand.vmem [shape: f32[1,128], index: 11, kind: input, shape index: {}]
  %s12 = inlined_call_operand.vmem [shape: f32[1,128], index: 12, kind: input, shape index: {}]
  %s13 = inlined_call_operand.vmem [shape: f32[1,128], index: 13, kind: input, shape index: {}]
  %s14 = inlined_call_operand.hbm [shape: bf16[128,256], index: 14, kind: input, shape index: {}]
  %s15 = inlined_call_operand.vmem [shape: f32[1,256], index: 15, kind: input, shape index: {}]
  %s16 = inlined_call_operand.hbm [shape: bf16[256,128], index: 16, kind: input, shape index: {}]
  %s17 = inlined_call_operand.vmem [shape: f32[1,128], index: 17, kind: input, shape index: {}]
  %s18 = inlined_call_operand.vmem [shape: f32[1,128], index: 18, kind: input, shape index: {}]
  %s19 = inlined_call_operand.vmem [shape: f32[1,128], index: 19, kind: input, shape index: {}]
  %s20 = inlined_call_operand.hbm [shape: bf16[128,128], index: 20, kind: input, shape index: {}]
  %s21 = inlined_call_operand.vmem [shape: f32[1,128], index: 21, kind: input, shape index: {}]
  %s22 = inlined_call_operand.hbm [shape: bf16[128,128], index: 22, kind: input, shape index: {}]
  %s23 = inlined_call_operand.vmem [shape: f32[1,128], index: 23, kind: input, shape index: {}]
  %s24 = inlined_call_operand.hbm [shape: f32[4,1,128], index: 24, kind: output, shape index: {}]
  %s25 = sld [smem:[#allocation0]]
  $region187: #{tpu_custom_call.1} parent=0
    _
  %s27 = ssub.s32 1, %s25
  %s28 = scalar_select 0, %s27, %s25
  %s30 = sshll.u32 %s0, 4
  %s31 = int_to_ptr.hbm [resolvable:$true] %s30
  %33 = dma.hbm_to_smem %s31, 16, [#allocation5], [#allocation4]
  %35 = dma.done [#allocation4], 16
  %36 = sfence
  $region1: #{tpu_custom_call.1} parent=0
    #allocation6 [shape = 'u8[4096]{0}', space=vmem, size = 0x1000, scoped, tag = 'input window, operand 2, single buffered']
    #allocation7 [shape = 's32[2]{0}', space=sflag, size = 0x8, scoped, tag = 'scoped memory for tpu_custom_call.1']
    #allocation8 [shape = 's32[2]{0}', space=sflag, size = 0x8, scoped, tag = 'scoped memory for tpu_custom_call.1']
    #allocation9 [shape = 'u8[2048]{0}', space=vmem, size = 0x800, scoped, tag = 'input window, operand 3']
    #allocation10 [shape = 's32[2]{0}', space=sflag, size = 0x8, scoped, tag = 'scoped memory for tpu_custom_call.1']
    #allocation11 [shape = 'u8[32768]{0}', space=vmem, size = 0x8000, scoped, tag = 'input window, operand 4, single buffered']
    #allocation12 [shape = 'u8[32768]{0}', space=vmem, size = 0x8000, scoped, tag = 'input window, operand 6, single buffered']
    #allocation13 [shape = 's32[1]{0}', space=sflag, size = 0x4, scoped, tag = 'scoped memory for tpu_custom_call.1']
    #allocation14 [shape = 'u8[32768]{0}', space=vmem, size = 0x8000, scoped, tag = 'input window, operand 8, single buffered']
    #allocation15 [shape = 'u8[32768]{0}', space=vmem, size = 0x8000, scoped, tag = 'input window, operand 10, single buffered']
    #allocation16 [shape = 's32[1]{0}', space=sflag, size = 0x4, scoped, tag = 'scoped memory for tpu_custom_call.1']
    #allocation17 [shape = 'u8[65536]{0}', space=vmem, size = 0x10000, scoped, tag = 'input window, operand 14, single buffered']
    #allocation18 [shape = 'u8[65536]{0}', space=vmem, size = 0x10000, scoped, tag = 'input window, operand 16, single buffered']
    #allocation19 [shape = 's32[1]{0}', space=sflag, size = 0x4, scoped, tag = 'scoped memory for tpu_custom_call.1']
    #allocation20 [shape = 'u8[32768]{0}', space=vmem, size = 0x8000, scoped, tag = 'input window, operand 20, single buffered']
    #allocation21 [shape = 'u8[32768]{0}', space=vmem, size = 0x8000, scoped, tag = 'input window, operand 22, single buffered']
    #allocation22 [shape = 's32[1]{0}', space=sflag, size = 0x4, scoped, tag = 'scoped memory for tpu_custom_call.1']
    #allocation23 [shape = 'u8[2048]{0}', space=vmem, size = 0x800, scoped, tag = 'output window, operand 0']
    %37 = vsyncpa [#allocation7], 0
    %38 = vsyncpa [#allocation10], 0
    %s39 = scalar_lea.sflag [#allocation10], 1
    %40 = vsyncpa %s39, 0
    %41 = vsyncpa [#allocation13], 0
    %42 = vsyncpa [#allocation16], 0
    %43 = vsyncpa [#allocation19], 0
    %44 = vsyncpa [#allocation22], 0
    %45 = vsyncpa [#allocation8], 0
    %s46 = scalar_lea.sflag [#allocation8], 1
    %47 = vsyncpa %s46, 0
    loop: start=0, step=1, limit=4
    $region2: #{tpu_custom_call.1} parent=1 // loop_pre_header
      _
    $region3: #{tpu_custom_call.1} parent=1 // loop_header
      %s49 = sphi 0, %s53
      %p50 = scmp.ge.s32.totalorder %s49, 4
      %s57 = sphi 0, %s57
      %s59 = sphi 0, %s57
      %s60 = sphi 0, %s59
      %s74 = sphi 0, %s60
      %s80 = sphi 0, %s82
      %s83 = sphi 0, %s80
      %s84 = sphi 0, %s83
      %s100 = sphi 0, %s84
      %s104 = sphi 0, %s104
      %s106 = sphi 0, %s104
      %s107 = sphi 0, %s106
      %s121 = sphi 0, %s107
      %s125 = sphi 0, %s125
      %s127 = sphi 0, %s125
      %s128 = sphi 0, %s127
      %s142 = sphi 0, %s128
      %s146 = sphi 0, %s146
      %s148 = sphi 0, %s146
      %s149 = sphi 0, %s148
      %s163 = sphi 0, %s149
      %s167 = sphi 0, %s167
      %s169 = sphi 0, %s167
      %s170 = sphi 0, %s169
      %s184 = sphi 0, %s170
      %s188 = sphi 0, %s188
      %s190 = sphi 0, %s188
      %s191 = sphi 0, %s190
      %s205 = sphi 0, %s191
      %s209 = sphi 0, %s209
      %s211 = sphi 0, %s209
      %s212 = sphi 0, %s211
      %s226 = sphi 0, %s212
      %s230 = sphi 0, %s230
      %s232 = sphi 0, %s230
      %s233 = sphi 0, %s232
      %s247 = sphi 0, %s233
      %s251 = sphi 0, %s251
      %s253 = sphi 0, %s251
      %s254 = sphi 0, %s253
      %s268 = sphi 0, %s254
      %s272 = sphi 0, %s272
      %s274 = sphi 0, %s272
      %s275 = sphi 0, %s274
      %s289 = sphi 0, %s275
      %s293 = sphi 0, %s293
      %s295 = sphi 0, %s293
      %s296 = sphi 0, %s295
      %s310 = sphi 0, %s296
      %s314 = sphi 0, %s314
      %s316 = sphi 0, %s314
      %s317 = sphi 0, %s316
      %s331 = sphi 0, %s317
      %s335 = sphi 0, %s335
      %s337 = sphi 0, %s335
      %s338 = sphi 0, %s337
      %s352 = sphi 0, %s338
      %s356 = sphi 0, %s356
      %s358 = sphi 0, %s356
      %s359 = sphi 0, %s358
      %s373 = sphi 0, %s359
      %s377 = sphi 0, %s377
      %s379 = sphi 0, %s377
      %s380 = sphi 0, %s379
      %s394 = sphi 0, %s380
      %s398 = sphi 0, %s398
      %s400 = sphi 0, %s398
      %s401 = sphi 0, %s400
      %s415 = sphi 0, %s401
      %s419 = sphi 0, %s419
      %s421 = sphi 0, %s419
      %s422 = sphi 0, %s421
      %s436 = sphi 0, %s422
      %s440 = sphi 0, %s440
      %s442 = sphi 0, %s440
      %s443 = sphi 0, %s442
      %s457 = sphi 0, %s443
      %s461 = sphi 0, %s461
      %s463 = sphi 0, %s461
      %s464 = sphi 0, %s463
      %s478 = sphi 0, %s464
      %s482 = sphi 0, %s482
      %s484 = sphi 0, %s482
      %s485 = sphi 0, %s484
      %s499 = sphi 0, %s485
      %s503 = sphi 0, %s503
      %s505 = sphi 0, %s503
      %s506 = sphi 0, %s505
      %s520 = sphi 0, %s506
      %s526 = sphi 0, %s528
      %s529 = sphi 0, %s526
      %s530 = sphi 0, %s529
      %s546 = sphi 0, %s530
    $region4: #{tpu_custom_call.1} parent=1 // loop_header_branch
      %52 = sbr.rel (%p50) target = $region8
    $region5: #{tpu_custom_call.1} parent=1 // loop_body
      %s54 = ssub.s32 %s49, 1
      %s55 = ssub.s32 %s49, 2
      %s56 = sadd.s32 %s49, 1
      %s58 = sadd.s32 %s57, 1
      %p61 = scmp.eq.s32.totalorder %s49, 1
      %p62 = scmp.ne.s32.totalorder %s57, %s59
      %p63 = scmp.eq.s32.totalorder %s49, 0
      %p64 = por %p62, %p63
      %p65 = scmp.ne.s32.totalorder %s57, %s59
      %p66 = scmp.eq.s32.totalorder %s54, 1
      %p67 = por %p65, %p66
      %p68 = scmp.ne.s32.totalorder %s59, %s60
      %p69 = scmp.eq.s32.totalorder %s54, 0
      %p70 = por %p68, %p69
      %p71 = scmp.ne.s32.totalorder %s59, %s60
      %p72 = scmp.eq.s32.totalorder %s55, 1
      %p73 = por %p71, %p72
      %p75 = scmp.ne.s32.totalorder %s60, %s74
      %p76 = scmp.eq.s32.totalorder %s55, 0
      %p77 = por %p75, %p76
      %s78 = ssub.s32 %s49, %s56
      %p79 = scmp.eq.s32.totalorder %s78, 0
      %s81 = sadd.s32 %s80, 1
      %s82 = scalar_select %p79, %s80, %s81
      %p85 = pneg %p79
      %p86 = scmp.eq.s32.totalorder %s49, 1
      %p87 = por %p85, %p86
      %p88 = scmp.ne.s32.totalorder %s80, %s83
      %p89 = scmp.eq.s32.totalorder %s49, 0
      %p90 = por %p88, %p89
      %p91 = scmp.ne.s32.totalorder %s80, %s83
      %p92 = scmp.eq.s32.totalorder %s54, 1
      %p93 = por %p91, %p92
      %p94 = scmp.ne.s32.totalorder %s83, %s84
      %p95 = scmp.eq.s32.totalorder %s54, 0
      %p96 = por %p94, %p95
      %p97 = scmp.ne.s32.totalorder %s83, %s84
      %p98 = scmp.eq.s32.totalorder %s55, 1
      %p99 = por %p97, %p98
      %p101 = scmp.ne.s32.totalorder %s84, %s100
      %p102 = scmp.eq.s32.totalorder %s55, 0
      %p103 = por %p101, %p102
      %s105 = sadd.s32 %s104, 1
      %p108 = scmp.eq.s32.totalorder %s49, 1
      %p109 = scmp.ne.s32.totalorder %s104, %s106
      %p110 = scmp.eq.s32.totalorder %s49, 0
      %p111 = por %p109, %p110
      %p112 = scmp.ne.s32.totalorder %s104, %s106
      %p113 = scmp.eq.s32.totalorder %s54, 1
      %p114 = por %p112, %p113
      %p115 = scmp.ne.s32.totalorder %s106, %s107
      %p116 = scmp.eq.s32.totalorder %s54, 0
      %p117 = por %p115, %p116
      %p118 = scmp.ne.s32.totalorder %s106, %s107
      %p119 = scmp.eq.s32.totalorder %s55, 1
      %p120 = por %p118, %p119
      %p122 = scmp.ne.s32.totalorder %s107, %s121
      %p123 = scmp.eq.s32.totalorder %s55, 0
      %p124 = por %p122, %p123
      %s126 = sadd.s32 %s125, 1
      %p129 = scmp.eq.s32.totalorder %s49, 1
      %p130 = scmp.ne.s32.totalorder %s125, %s127
      %p131 = scmp.eq.s32.totalorder %s49, 0
      %p132 = por %p130, %p131
      %p133 = scmp.ne.s32.totalorder %s125, %s127
      %p134 = scmp.eq.s32.totalorder %s54, 1
      %p135 = por %p133, %p134
      %p136 = scmp.ne.s32.totalorder %s127, %s128
      %p137 = scmp.eq.s32.totalorder %s54, 0
      %p138 = por %p136, %p137
      %p139 = scmp.ne.s32.totalorder %s127, %s128
      %p140 = scmp.eq.s32.totalorder %s55, 1
      %p141 = por %p139, %p140
      %p143 = scmp.ne.s32.totalorder %s128, %s142
      %p144 = scmp.eq.s32.totalorder %s55, 0
      %p145 = por %p143, %p144
      %s147 = sadd.s32 %s146, 1
      %p150 = scmp.eq.s32.totalorder %s49, 1
      %p151 = scmp.ne.s32.totalorder %s146, %s148
      %p152 = scmp.eq.s32.totalorder %s49, 0
      %p153 = por %p151, %p152
      %p154 = scmp.ne.s32.totalorder %s146, %s148
      %p155 = scmp.eq.s32.totalorder %s54, 1
      %p156 = por %p154, %p155
      %p157 = scmp.ne.s32.totalorder %s148, %s149
      %p158 = scmp.eq.s32.totalorder %s54, 0
      %p159 = por %p157, %p158
      %p160 = scmp.ne.s32.totalorder %s148, %s149
      %p161 = scmp.eq.s32.totalorder %s55, 1
      %p162 = por %p160, %p161
      %p164 = scmp.ne.s32.totalorder %s149, %s163
      %p165 = scmp.eq.s32.totalorder %s55, 0
      %p166 = por %p164, %p165
      %s168 = sadd.s32 %s167, 1
      %p171 = scmp.eq.s32.totalorder %s49, 1
      %p172 = scmp.ne.s32.totalorder %s167, %s169
      %p173 = scmp.eq.s32.totalorder %s49, 0
      %p174 = por %p172, %p173
      %p175 = scmp.ne.s32.totalorder %s167, %s169
      %p176 = scmp.eq.s32.totalorder %s54, 1
      %p177 = por %p175, %p176
      %p178 = scmp.ne.s32.totalorder %s169, %s170
      %p179 = scmp.eq.s32.totalorder %s54, 0
      %p180 = por %p178, %p179
      %p181 = scmp.ne.s32.totalorder %s169, %s170
      %p182 = scmp.eq.s32.totalorder %s55, 1
      %p183 = por %p181, %p182
      %p185 = scmp.ne.s32.totalorder %s170, %s184
      %p186 = scmp.eq.s32.totalorder %s55, 0
      %p187 = por %p185, %p186
      %s189 = sadd.s32 %s188, 1
      %p192 = scmp.eq.s32.totalorder %s49, 1
      %p193 = scmp.ne.s32.totalorder %s188, %s190
      %p194 = scmp.eq.s32.totalorder %s49, 0
      %p195 = por %p193, %p194
      %p196 = scmp.ne.s32.totalorder %s188, %s190
      %p197 = scmp.eq.s32.totalorder %s54, 1
      %p198 = por %p196, %p197
      %p199 = scmp.ne.s32.totalorder %s190, %s191
      %p200 = scmp.eq.s32.totalorder %s54, 0
      %p201 = por %p199, %p200
      %p202 = scmp.ne.s32.totalorder %s190, %s191
      %p203 = scmp.eq.s32.totalorder %s55, 1
      %p204 = por %p202, %p203
      %p206 = scmp.ne.s32.totalorder %s191, %s205
      %p207 = scmp.eq.s32.totalorder %s55, 0
      %p208 = por %p206, %p207
      %s210 = sadd.s32 %s209, 1
      %p213 = scmp.eq.s32.totalorder %s49, 1
      %p214 = scmp.ne.s32.totalorder %s209, %s211
      %p215 = scmp.eq.s32.totalorder %s49, 0
      %p216 = por %p214, %p215
      %p217 = scmp.ne.s32.totalorder %s209, %s211
      %p218 = scmp.eq.s32.totalorder %s54, 1
      %p219 = por %p217, %p218
      %p220 = scmp.ne.s32.totalorder %s211, %s212
      %p221 = scmp.eq.s32.totalorder %s54, 0
      %p222 = por %p220, %p221
      %p223 = scmp.ne.s32.totalorder %s211, %s212
      %p224 = scmp.eq.s32.totalorder %s55, 1
      %p225 = por %p223, %p224
      %p227 = scmp.ne.s32.totalorder %s212, %s226
      %p228 = scmp.eq.s32.totalorder %s55, 0
      %p229 = por %p227, %p228
      %s231 = sadd.s32 %s230, 1
      %p234 = scmp.eq.s32.totalorder %s49, 1
      %p235 = scmp.ne.s32.totalorder %s230, %s232
      %p236 = scmp.eq.s32.totalorder %s49, 0
      %p237 = por %p235, %p236
      %p238 = scmp.ne.s32.totalorder %s230, %s232
      %p239 = scmp.eq.s32.totalorder %s54, 1
      %p240 = por %p238, %p239
      %p241 = scmp.ne.s32.totalorder %s232, %s233
      %p242 = scmp.eq.s32.totalorder %s54, 0
      %p243 = por %p241, %p242
      %p244 = scmp.ne.s32.totalorder %s232, %s233
      %p245 = scmp.eq.s32.totalorder %s55, 1
      %p246 = por %p244, %p245
      %p248 = scmp.ne.s32.totalorder %s233, %s247
      %p249 = scmp.eq.s32.totalorder %s55, 0
      %p250 = por %p248, %p249
      %s252 = sadd.s32 %s251, 1
      %p255 = scmp.eq.s32.totalorder %s49, 1
      %p256 = scmp.ne.s32.totalorder %s251, %s253
      %p257 = scmp.eq.s32.totalorder %s49, 0
      %p258 = por %p256, %p257
      %p259 = scmp.ne.s32.totalorder %s251, %s253
      %p260 = scmp.eq.s32.totalorder %s54, 1
      %p261 = por %p259, %p260
      %p262 = scmp.ne.s32.totalorder %s253, %s254
      %p263 = scmp.eq.s32.totalorder %s54, 0
      %p264 = por %p262, %p263
      %p265 = scmp.ne.s32.totalorder %s253, %s254
      %p266 = scmp.eq.s32.totalorder %s55, 1
      %p267 = por %p265, %p266
      %p269 = scmp.ne.s32.totalorder %s254, %s268
      %p270 = scmp.eq.s32.totalorder %s55, 0
      %p271 = por %p269, %p270
      %s273 = sadd.s32 %s272, 1
      %p276 = scmp.eq.s32.totalorder %s49, 1
      %p277 = scmp.ne.s32.totalorder %s272, %s274
      %p278 = scmp.eq.s32.totalorder %s49, 0
      %p279 = por %p277, %p278
      %p280 = scmp.ne.s32.totalorder %s272, %s274
      %p281 = scmp.eq.s32.totalorder %s54, 1
      %p282 = por %p280, %p281
      %p283 = scmp.ne.s32.totalorder %s274, %s275
      %p284 = scmp.eq.s32.totalorder %s54, 0
      %p285 = por %p283, %p284
      %p286 = scmp.ne.s32.totalorder %s274, %s275
      %p287 = scmp.eq.s32.totalorder %s55, 1
      %p288 = por %p286, %p287
      %p290 = scmp.ne.s32.totalorder %s275, %s289
      %p291 = scmp.eq.s32.totalorder %s55, 0
      %p292 = por %p290, %p291
      %s294 = sadd.s32 %s293, 1
      %p297 = scmp.eq.s32.totalorder %s49, 1
      %p298 = scmp.ne.s32.totalorder %s293, %s295
      %p299 = scmp.eq.s32.totalorder %s49, 0
      %p300 = por %p298, %p299
      %p301 = scmp.ne.s32.totalorder %s293, %s295
      %p302 = scmp.eq.s32.totalorder %s54, 1
      %p303 = por %p301, %p302
      %p304 = scmp.ne.s32.totalorder %s295, %s296
      %p305 = scmp.eq.s32.totalorder %s54, 0
      %p306 = por %p304, %p305
      %p307 = scmp.ne.s32.totalorder %s295, %s296
      %p308 = scmp.eq.s32.totalorder %s55, 1
      %p309 = por %p307, %p308
      %p311 = scmp.ne.s32.totalorder %s296, %s310
      %p312 = scmp.eq.s32.totalorder %s55, 0
      %p313 = por %p311, %p312
      %s315 = sadd.s32 %s314, 1
      %p318 = scmp.eq.s32.totalorder %s49, 1
      %p319 = scmp.ne.s32.totalorder %s314, %s316
      %p320 = scmp.eq.s32.totalorder %s49, 0
      %p321 = por %p319, %p320
      %p322 = scmp.ne.s32.totalorder %s314, %s316
      %p323 = scmp.eq.s32.totalorder %s54, 1
      %p324 = por %p322, %p323
      %p325 = scmp.ne.s32.totalorder %s316, %s317
      %p326 = scmp.eq.s32.totalorder %s54, 0
      %p327 = por %p325, %p326
      %p328 = scmp.ne.s32.totalorder %s316, %s317
      %p329 = scmp.eq.s32.totalorder %s55, 1
      %p330 = por %p328, %p329
      %p332 = scmp.ne.s32.totalorder %s317, %s331
      %p333 = scmp.eq.s32.totalorder %s55, 0
      %p334 = por %p332, %p333
      %s336 = sadd.s32 %s335, 1
      %p339 = scmp.eq.s32.totalorder %s49, 1
      %p340 = scmp.ne.s32.totalorder %s335, %s337
      %p341 = scmp.eq.s32.totalorder %s49, 0
      %p342 = por %p340, %p341
      %p343 = scmp.ne.s32.totalorder %s335, %s337
      %p344 = scmp.eq.s32.totalorder %s54, 1
      %p345 = por %p343, %p344
      %p346 = scmp.ne.s32.totalorder %s337, %s338
      %p347 = scmp.eq.s32.totalorder %s54, 0
      %p348 = por %p346, %p347
      %p349 = scmp.ne.s32.totalorder %s337, %s338
      %p350 = scmp.eq.s32.totalorder %s55, 1
      %p351 = por %p349, %p350
      %p353 = scmp.ne.s32.totalorder %s338, %s352
      %p354 = scmp.eq.s32.totalorder %s55, 0
      %p355 = por %p353, %p354
      %s357 = sadd.s32 %s356, 1
      %p360 = scmp.eq.s32.totalorder %s49, 1
      %p361 = scmp.ne.s32.totalorder %s356, %s358
      %p362 = scmp.eq.s32.totalorder %s49, 0
      %p363 = por %p361, %p362
      %p364 = scmp.ne.s32.totalorder %s356, %s358
      %p365 = scmp.eq.s32.totalorder %s54, 1
      %p366 = por %p364, %p365
      %p367 = scmp.ne.s32.totalorder %s358, %s359
      %p368 = scmp.eq.s32.totalorder %s54, 0
      %p369 = por %p367, %p368
      %p370 = scmp.ne.s32.totalorder %s358, %s359
      %p371 = scmp.eq.s32.totalorder %s55, 1
      %p372 = por %p370, %p371
      %p374 = scmp.ne.s32.totalorder %s359, %s373
      %p375 = scmp.eq.s32.totalorder %s55, 0
      %p376 = por %p374, %p375
      %s378 = sadd.s32 %s377, 1
      %p381 = scmp.eq.s32.totalorder %s49, 1
      %p382 = scmp.ne.s32.totalorder %s377, %s379
      %p383 = scmp.eq.s32.totalorder %s49, 0
      %p384 = por %p382, %p383
      %p385 = scmp.ne.s32.totalorder %s377, %s379
      %p386 = scmp.eq.s32.totalorder %s54, 1
      %p387 = por %p385, %p386
      %p388 = scmp.ne.s32.totalorder %s379, %s380
      %p389 = scmp.eq.s32.totalorder %s54, 0
      %p390 = por %p388, %p389
      %p391 = scmp.ne.s32.totalorder %s379, %s380
      %p392 = scmp.eq.s32.totalorder %s55, 1
      %p393 = por %p391, %p392
      %p395 = scmp.ne.s32.totalorder %s380, %s394
      %p396 = scmp.eq.s32.totalorder %s55, 0
      %p397 = por %p395, %p396
      %s399 = sadd.s32 %s398, 1
      %p402 = scmp.eq.s32.totalorder %s49, 1
      %p403 = scmp.ne.s32.totalorder %s398, %s400
      %p404 = scmp.eq.s32.totalorder %s49, 0
      %p405 = por %p403, %p404
      %p406 = scmp.ne.s32.totalorder %s398, %s400
      %p407 = scmp.eq.s32.totalorder %s54, 1
      %p408 = por %p406, %p407
      %p409 = scmp.ne.s32.totalorder %s400, %s401
      %p410 = scmp.eq.s32.totalorder %s54, 0
      %p411 = por %p409, %p410
      %p412 = scmp.ne.s32.totalorder %s400, %s401
      %p413 = scmp.eq.s32.totalorder %s55, 1
      %p414 = por %p412, %p413
      %p416 = scmp.ne.s32.totalorder %s401, %s415
      %p417 = scmp.eq.s32.totalorder %s55, 0
      %p418 = por %p416, %p417
      %s420 = sadd.s32 %s419, 1
      %p423 = scmp.eq.s32.totalorder %s49, 1
      %p424 = scmp.ne.s32.totalorder %s419, %s421
      %p425 = scmp.eq.s32.totalorder %s49, 0
      %p426 = por %p424, %p425
      %p427 = scmp.ne.s32.totalorder %s419, %s421
      %p428 = scmp.eq.s32.totalorder %s54, 1
      %p429 = por %p427, %p428
      %p430 = scmp.ne.s32.totalorder %s421, %s422
      %p431 = scmp.eq.s32.totalorder %s54, 0
      %p432 = por %p430, %p431
      %p433 = scmp.ne.s32.totalorder %s421, %s422
      %p434 = scmp.eq.s32.totalorder %s55, 1
      %p435 = por %p433, %p434
      %p437 = scmp.ne.s32.totalorder %s422, %s436
      %p438 = scmp.eq.s32.totalorder %s55, 0
      %p439 = por %p437, %p438
      %s441 = sadd.s32 %s440, 1
      %p444 = scmp.eq.s32.totalorder %s49, 1
      %p445 = scmp.ne.s32.totalorder %s440, %s442
      %p446 = scmp.eq.s32.totalorder %s49, 0
      %p447 = por %p445, %p446
      %p448 = scmp.ne.s32.totalorder %s440, %s442
      %p449 = scmp.eq.s32.totalorder %s54, 1
      %p450 = por %p448, %p449
      %p451 = scmp.ne.s32.totalorder %s442, %s443
      %p452 = scmp.eq.s32.totalorder %s54, 0
      %p453 = por %p451, %p452
      %p454 = scmp.ne.s32.totalorder %s442, %s443
      %p455 = scmp.eq.s32.totalorder %s55, 1
      %p456 = por %p454, %p455
      %p458 = scmp.ne.s32.totalorder %s443, %s457
      %p459 = scmp.eq.s32.totalorder %s55, 0
      %p460 = por %p458, %p459
      %s462 = sadd.s32 %s461, 1
      %p465 = scmp.eq.s32.totalorder %s49, 1
      %p466 = scmp.ne.s32.totalorder %s461, %s463
      %p467 = scmp.eq.s32.totalorder %s49, 0
      %p468 = por %p466, %p467
      %p469 = scmp.ne.s32.totalorder %s461, %s463
      %p470 = scmp.eq.s32.totalorder %s54, 1
      %p471 = por %p469, %p470
      %p472 = scmp.ne.s32.totalorder %s463, %s464
      %p473 = scmp.eq.s32.totalorder %s54, 0
      %p474 = por %p472, %p473
      %p475 = scmp.ne.s32.totalorder %s463, %s464
      %p476 = scmp.eq.s32.totalorder %s55, 1
      %p477 = por %p475, %p476
      %p479 = scmp.ne.s32.totalorder %s464, %s478
      %p480 = scmp.eq.s32.totalorder %s55, 0
      %p481 = por %p479, %p480
      %s483 = sadd.s32 %s482, 1
      %p486 = scmp.eq.s32.totalorder %s49, 1
      %p487 = scmp.ne.s32.totalorder %s482, %s484
      %p488 = scmp.eq.s32.totalorder %s49, 0
      %p489 = por %p487, %p488
      %p490 = scmp.ne.s32.totalorder %s482, %s484
      %p491 = scmp.eq.s32.totalorder %s54, 1
      %p492 = por %p490, %p491
      %p493 = scmp.ne.s32.totalorder %s484, %s485
      %p494 = scmp.eq.s32.totalorder %s54, 0
      %p495 = por %p493, %p494
      %p496 = scmp.ne.s32.totalorder %s484, %s485
      %p497 = scmp.eq.s32.totalorder %s55, 1
      %p498 = por %p496, %p497
      %p500 = scmp.ne.s32.totalorder %s485, %s499
      %p501 = scmp.eq.s32.totalorder %s55, 0
      %p502 = por %p500, %p501
      %s504 = sadd.s32 %s503, 1
      %p507 = scmp.eq.s32.totalorder %s49, 1
      %p508 = scmp.ne.s32.totalorder %s503, %s505
      %p509 = scmp.eq.s32.totalorder %s49, 0
      %p510 = por %p508, %p509
      %p511 = scmp.ne.s32.totalorder %s503, %s505
      %p512 = scmp.eq.s32.totalorder %s54, 1
      %p513 = por %p511, %p512
      %p514 = scmp.ne.s32.totalorder %s505, %s506
      %p515 = scmp.eq.s32.totalorder %s54, 0
      %p516 = por %p514, %p515
      %p517 = scmp.ne.s32.totalorder %s505, %s506
      %p518 = scmp.eq.s32.totalorder %s55, 1
      %p519 = por %p517, %p518
      %p521 = scmp.ne.s32.totalorder %s506, %s520
      %p522 = scmp.eq.s32.totalorder %s55, 0
      %p523 = por %p521, %p522
      %s524 = ssub.s32 %s49, %s56
      %p525 = scmp.eq.s32.totalorder %s524, 0
      %s527 = sadd.s32 %s526, 1
      %s528 = scalar_select %p525, %s526, %s527
      %p531 = pneg %p525
      %p532 = scmp.eq.s32.totalorder %s49, 1
      %p533 = por %p531, %p532
      %p534 = scmp.ne.s32.totalorder %s526, %s529
      %p535 = scmp.eq.s32.totalorder %s49, 0
      %p536 = por %p534, %p535
      %p537 = scmp.ne.s32.totalorder %s526, %s529
      %p538 = scmp.eq.s32.totalorder %s54, 1
      %p539 = por %p537, %p538
      %p540 = scmp.ne.s32.totalorder %s529, %s530
      %p541 = scmp.eq.s32.totalorder %s54, 0
      %p542 = por %p540, %p541
      %p543 = scmp.ne.s32.totalorder %s529, %s530
      %p544 = scmp.eq.s32.totalorder %s55, 1
      %p545 = por %p543, %p544
      %p547 = scmp.ne.s32.totalorder %s530, %s546
      %p548 = scmp.eq.s32.totalorder %s55, 0
      %p549 = por %p547, %p548
      %p550 = scmp.le.s32.totalorder 1, %s49
      %p551 = scmp.lt.s32.totalorder %s49, 3
      %p552 = pnand %p550, %p551
      %p553 = pneg %p552
      // Predicated region
      $region9: #{tpu_custom_call.1} parent=5 // pred_check
        _
      $region10: #{tpu_custom_call.1} parent=5 // pred_check_branch
        %555 = sbr.rel (%p552) target = $region12
      $region11: #{tpu_custom_call.1} parent=5 // pred_region
        %s556 = ssub.s32 %s49, 1
        // Predicated region
        $region13: #{tpu_custom_call.1} parent=11 // pred_check
          %p557 = pneg %p70
        $region14: #{tpu_custom_call.1} parent=11 // pred_check_branch
          %559 = sbr.rel (%p557) target = $region16
        $region15: #{tpu_custom_call.1} parent=11 // pred_region
          %561 = vsyncadd [#allocation7], 0
          %s563 = sshll.u32 %s2, 4
          %s564 = int_to_ptr.hbm [resolvable:$true] %s563
          %s565 = sshll.u32 [#allocation6], 4
          %s566 = int_to_ptr.vmem [resolvable:$true] %s565
          %568 = dma.hbm_to_vmem [thread:$0]  %s564, 128, %s566, [#allocation7]
        $region16: #{tpu_custom_call.1} parent=11 // pred_fallthru
          _
        // Predicated region
        $region17: #{tpu_custom_call.1} parent=11 // pred_check
          %p569 = pneg %p117
        $region18: #{tpu_custom_call.1} parent=11 // pred_check_branch
          %571 = sbr.rel (%p569) target = $region20
        $region19: #{tpu_custom_call.1} parent=11 // pred_region
          %573 = vsyncadd [#allocation10], 0
          %s574 = sshll.u32 %s4, 4
          %s575 = int_to_ptr.hbm [resolvable:$true] %s574
          %s576 = sshll.u32 [#allocation11], 4
          %s577 = int_to_ptr.vmem [resolvable:$true] %s576
          %582 = dma.hbm_to_vmem [thread:$0]  %s575, 1024, %s577, [#allocation10], 64, 64, 4
        $region20: #{tpu_custom_call.1} parent=11 // pred_fallthru
          _
        // Predicated region
        $region21: #{tpu_custom_call.1} parent=11 // pred_check
          %p583 = pneg %p138
        $region22: #{tpu_custom_call.1} parent=11 // pred_check_branch
          %585 = sbr.rel (%p583) target = $region24
        $region23: #{tpu_custom_call.1} parent=11 // pred_region
          _
        $region24: #{tpu_custom_call.1} parent=11 // pred_fallthru
          _
        // Predicated region
        $region25: #{tpu_custom_call.1} parent=11 // pred_check
          %p586 = pneg %p159
        $region26: #{tpu_custom_call.1} parent=11 // pred_check_branch
          %588 = sbr.rel (%p586) target = $region28
        $region27: #{tpu_custom_call.1} parent=11 // pred_region
          %590 = vsyncadd [#allocation13], 0
          %s591 = sshll.u32 %s6, 4
          %s592 = int_to_ptr.hbm [resolvable:$true] %s591
          %s593 = sshll.u32 [#allocation12], 4
          %s594 = int_to_ptr.vmem [resolvable:$true] %s593
          %599 = dma.hbm_to_vmem [thread:$0]  %s592, 1024, %s594, [#allocation13], 64, 64, 4
        $region28: #{tpu_custom_call.1} parent=11 // pred_fallthru
          _
        // Predicated region
        $region29: #{tpu_custom_call.1} parent=11 // pred_check
          %p600 = pneg %p180
        $region30: #{tpu_custom_call.1} parent=11 // pred_check_branch
          %602 = sbr.rel (%p600) target = $region32
        $region31: #{tpu_custom_call.1} parent=11 // pred_region
          _
        $region32: #{tpu_custom_call.1} parent=11 // pred_fallthru
          _
        // Predicated region
        $region33: #{tpu_custom_call.1} parent=11 // pred_check
          %p603 = pneg %p201
        $region34: #{tpu_custom_call.1} parent=11 // pred_check_branch
          %605 = sbr.rel (%p603) target = $region36
        $region35: #{tpu_custom_call.1} parent=11 // pred_region
          %607 = vsyncadd [#allocation13], 0
          %s608 = sshll.u32 %s8, 4
          %s609 = int_to_ptr.hbm [resolvable:$true] %s608
          %s610 = sshll.u32 [#allocation14], 4
          %s611 = int_to_ptr.vmem [resolvable:$true] %s610
          %616 = dma.hbm_to_vmem [thread:$0]  %s609, 1024, %s611, [#allocation13], 64, 64, 4
        $region36: #{tpu_custom_call.1} parent=11 // pred_fallthru
          _
        // Predicated region
        $region37: #{tpu_custom_call.1} parent=11 // pred_check
          %p617 = pneg %p222
        $region38: #{tpu_custom_call.1} parent=11 // pred_check_branch
          %619 = sbr.rel (%p617) target = $region40
        $region39: #{tpu_custom_call.1} parent=11 // pred_region
          _
        $region40: #{tpu_custom_call.1} parent=11 // pred_fallthru
          _
        // Predicated region
        $region41: #{tpu_custom_call.1} parent=11 // pred_check
          %p620 = pneg %p243
        $region42: #{tpu_custom_call.1} parent=11 // pred_check_branch
          %622 = sbr.rel (%p620) target = $region44
        $region43: #{tpu_custom_call.1} parent=11 // pred_region
          %624 = vsyncadd [#allocation16], 0
          %s625 = sshll.u32 %s10, 4
          %s626 = int_to_ptr.hbm [resolvable:$true] %s625
          %s627 = sshll.u32 [#allocation15], 4
          %s628 = int_to_ptr.vmem [resolvable:$true] %s627
          %633 = dma.hbm_to_vmem [thread:$0]  %s626, 1024, %s628, [#allocation16], 64, 64, 4
        $region44: #{tpu_custom_call.1} parent=11 // pred_fallthru
          _
        // Predicated region
        $region45: #{tpu_custom_call.1} parent=11 // pred_check
          %p634 = pneg %p264
        $region46: #{tpu_custom_call.1} parent=11 // pred_check_branch
          %636 = sbr.rel (%p634) target = $region48
        $region47: #{tpu_custom_call.1} parent=11 // pred_region
          _
        $region48: #{tpu_custom_call.1} parent=11 // pred_fallthru
          _
        // Predicated region
        $region49: #{tpu_custom_call.1} parent=11 // pred_check
          %p637 = pneg %p285
        $region50: #{tpu_custom_call.1} parent=11 // pred_check_branch
          %639 = sbr.rel (%p637) target = $region52
        $region51: #{tpu_custom_call.1} parent=11 // pred_region
          _
        $region52: #{tpu_custom_call.1} parent=11 // pred_fallthru
          _
        // Predicated region
        $region53: #{tpu_custom_call.1} parent=11 // pred_check
          %p640 = pneg %p306
        $region54: #{tpu_custom_call.1} parent=11 // pred_check_branch
          %642 = sbr.rel (%p640) target = $region56
        $region55: #{tpu_custom_call.1} parent=11 // pred_region
          _
        $region56: #{tpu_custom_call.1} parent=11 // pred_fallthru
          _
        // Predicated region
        $region57: #{tpu_custom_call.1} parent=11 // pred_check
          %p643 = pneg %p327
        $region58: #{tpu_custom_call.1} parent=11 // pred_check_branch
          %645 = sbr.rel (%p643) target = $region60
        $region59: #{tpu_custom_call.1} parent=11 // pred_region
          %647 = vsyncadd [#allocation16], 0
          %s648 = sshll.u32 %s14, 4
          %s649 = int_to_ptr.hbm [resolvable:$true] %s648
          %s650 = sshll.u32 [#allocation17], 4
          %s651 = int_to_ptr.vmem [resolvable:$true] %s650
          %656 = dma.hbm_to_vmem [thread:$0]  %s649, 2048, %s651, [#allocation16], 128, 128, 8
        $region60: #{tpu_custom_call.1} parent=11 // pred_fallthru
          _
        // Predicated region
        $region61: #{tpu_custom_call.1} parent=11 // pred_check
          %p657 = pneg %p348
        $region62: #{tpu_custom_call.1} parent=11 // pred_check_branch
          %659 = sbr.rel (%p657) target = $region64
        $region63: #{tpu_custom_call.1} parent=11 // pred_region
          _
        $region64: #{tpu_custom_call.1} parent=11 // pred_fallthru
          _
        // Predicated region
        $region65: #{tpu_custom_call.1} parent=11 // pred_check
          %p660 = pneg %p369
        $region66: #{tpu_custom_call.1} parent=11 // pred_check_branch
          %662 = sbr.rel (%p660) target = $region68
        $region67: #{tpu_custom_call.1} parent=11 // pred_region
          %664 = vsyncadd [#allocation19], 0
          %s665 = sshll.u32 %s16, 4
          %s666 = int_to_ptr.hbm [resolvable:$true] %s665
          %s667 = sshll.u32 [#allocation18], 4
          %s668 = int_to_ptr.vmem [resolvable:$true] %s667
          %673 = dma.hbm_to_vmem [thread:$0]  %s666, 2048, %s668, [#allocation19], 64, 64, 4
        $region68: #{tpu_custom_call.1} parent=11 // pred_fallthru
          _
        // Predicated region
        $region69: #{tpu_custom_call.1} parent=11 // pred_check
          %p674 = pneg %p390
        $region70: #{tpu_custom_call.1} parent=11 // pred_check_branch
          %676 = sbr.rel (%p674) target = $region72
        $region71: #{tpu_custom_call.1} parent=11 // pred_region
          _
        $region72: #{tpu_custom_call.1} parent=11 // pred_fallthru
          _
        // Predicated region
        $region73: #{tpu_custom_call.1} parent=11 // pred_check
          %p677 = pneg %p411
        $region74: #{tpu_custom_call.1} parent=11 // pred_check_branch
          %679 = sbr.rel (%p677) target = $region76
        $region75: #{tpu_custom_call.1} parent=11 // pred_region
          _
        $region76: #{tpu_custom_call.1} parent=11 // pred_fallthru
          _
        // Predicated region
        $region77: #{tpu_custom_call.1} parent=11 // pred_check
          %p680 = pneg %p432
        $region78: #{tpu_custom_call.1} parent=11 // pred_check_branch
          %682 = sbr.rel (%p680) target = $region80
        $region79: #{tpu_custom_call.1} parent=11 // pred_region
          _
        $region80: #{tpu_custom_call.1} parent=11 // pred_fallthru
          _
        // Predicated region
        $region81: #{tpu_custom_call.1} parent=11 // pred_check
          %p683 = pneg %p453
        $region82: #{tpu_custom_call.1} parent=11 // pred_check_branch
          %685 = sbr.rel (%p683) target = $region84
        $region83: #{tpu_custom_call.1} parent=11 // pred_region
          %687 = vsyncadd [#allocation19], 0
          %s688 = sshll.u32 %s20, 4
          %s689 = int_to_ptr.hbm [resolvable:$true] %s688
          %s690 = sshll.u32 [#allocation20], 4
          %s691 = int_to_ptr.vmem [resolvable:$true] %s690
          %696 = dma.hbm_to_vmem [thread:$0]  %s689, 1024, %s691, [#allocation19], 64, 64, 4
        $region84: #{tpu_custom_call.1} parent=11 // pred_fallthru
          _
        // Predicated region
        $region85: #{tpu_custom_call.1} parent=11 // pred_check
          %p697 = pneg %p474
        $region86: #{tpu_custom_call.1} parent=11 // pred_check_branch
          %699 = sbr.rel (%p697) target = $region88
        $region87: #{tpu_custom_call.1} parent=11 // pred_region
          _
        $region88: #{tpu_custom_call.1} parent=11 // pred_fallthru
          _
        // Predicated region
        $region89: #{tpu_custom_call.1} parent=11 // pred_check
          %p700 = pneg %p495
        $region90: #{tpu_custom_call.1} parent=11 // pred_check_branch
          %702 = sbr.rel (%p700) target = $region92
        $region91: #{tpu_custom_call.1} parent=11 // pred_region
          %704 = vsyncadd [#allocation22], 0
          %s705 = sshll.u32 %s22, 4
          %s706 = int_to_ptr.hbm [resolvable:$true] %s705
          %s707 = sshll.u32 [#allocation21], 4
          %s708 = int_to_ptr.vmem [resolvable:$true] %s707
          %713 = dma.hbm_to_vmem [thread:$0]  %s706, 1024, %s708, [#allocation22], 64, 64, 4
        $region92: #{tpu_custom_call.1} parent=11 // pred_fallthru
          _
        // Predicated region
        $region93: #{tpu_custom_call.1} parent=11 // pred_check
          %p714 = pneg %p516
        $region94: #{tpu_custom_call.1} parent=11 // pred_check_branch
          %716 = sbr.rel (%p714) target = $region96
        $region95: #{tpu_custom_call.1} parent=11 // pred_region
          _
        $region96: #{tpu_custom_call.1} parent=11 // pred_fallthru
          _
      $region12: #{tpu_custom_call.1} parent=5 // pred_fallthru
        _
      %p717 = scmp.lt.s32.totalorder %s49, 2
      // Predicated region
      $region97: #{tpu_custom_call.1} parent=5 // pred_check
        %p718 = pneg %p717
      $region98: #{tpu_custom_call.1} parent=5 // pred_check_branch
        %720 = sbr.rel (%p718) target = $region100
      $region99: #{tpu_custom_call.1} parent=5 // pred_region
        // Predicated region
        $region101: #{tpu_custom_call.1} parent=99 // pred_check
          %p721 = pneg %p90
        $region102: #{tpu_custom_call.1} parent=99 // pred_check_branch
          %723 = sbr.rel (%p721) target = $region104
        $region103: #{tpu_custom_call.1} parent=99 // pred_region
          %s724 = sand.u32 %s49, 1
          %s725 = scalar_lea.sflag [#allocation10], %s724
          %s726 = sand.u32 %s80, 1
          %s727 = smul.addr %s726, 2
          %s728 = scalar_lea.vmem [#allocation9], %s727
          %s729 = smul.u32 2, %s49
          %731 = vsyncadd %s725, 0
          %s732 = scalar_lea.hbm %s3, %s729
          %s733 = sshll.u32 %s732, 4
          %s734 = int_to_ptr.hbm [resolvable:$true] %s733
          %s735 = sshll.u32 %s728, 4
          %s736 = int_to_ptr.vmem [resolvable:$true] %s735
          %741 = dma.hbm_to_vmem [thread:$0]  %s734, 32, %s736, %s725, 16, 16, 1
        $region104: #{tpu_custom_call.1} parent=99 // pred_fallthru
          _
      $region100: #{tpu_custom_call.1} parent=5 // pred_fallthru
        _
      %p742 = scmp.le.s32.totalorder 1, %s49
      %p743 = scmp.lt.s32.totalorder %s49, 3
      %p744 = pnand %p742, %p743
      %p745 = pneg %p744
      // Predicated region
      $region105: #{tpu_custom_call.1} parent=5 // pred_check
        _
      $region106: #{tpu_custom_call.1} parent=5 // pred_check_branch
        %747 = sbr.rel (%p744) target = $region108
      $region107: #{tpu_custom_call.1} parent=5 // pred_region
        %s748 = ssub.s32 %s49, 1
        // Predicated region
        $region109: #{tpu_custom_call.1} parent=107 // pred_check
          %p749 = pneg %p70
        $region110: #{tpu_custom_call.1} parent=107 // pred_check_branch
          %751 = sbr.rel (%p749) target = $region112
        $region111: #{tpu_custom_call.1} parent=107 // pred_region
          %753 = dma.done [#allocation7], 128
        $region112: #{tpu_custom_call.1} parent=107 // pred_fallthru
          _
        %s754 = sand.u32 %s54, 1
        %s755 = scalar_lea.sflag [#allocation10], %s754
        %s756 = sand.u32 %s83, 1
        %s757 = smul.addr %s756, 2
        %s758 = scalar_lea.vmem [#allocation9], %s757
        // Predicated region
        $region113: #{tpu_custom_call.1} parent=107 // pred_check
          %p759 = pneg %p96
        $region114: #{tpu_custom_call.1} parent=107 // pred_check_branch
          %761 = sbr.rel (%p759) target = $region116
        $region115: #{tpu_custom_call.1} parent=107 // pred_region
          %763 = dma.done %s755, 32
        $region116: #{tpu_custom_call.1} parent=107 // pred_fallthru
          _
        // Predicated region
        $region117: #{tpu_custom_call.1} parent=107 // pred_check
          %p764 = pneg %p117
        $region118: #{tpu_custom_call.1} parent=107 // pred_check_branch
          %766 = sbr.rel (%p764) target = $region120
        $region119: #{tpu_custom_call.1} parent=107 // pred_region
          %768 = dma.done [#allocation10], 1024
        $region120: #{tpu_custom_call.1} parent=107 // pred_fallthru
          _
        // Predicated region
        $region121: #{tpu_custom_call.1} parent=107 // pred_check
          %p769 = pneg %p159
        $region122: #{tpu_custom_call.1} parent=107 // pred_check_branch
          %771 = sbr.rel (%p769) target = $region124
        $region123: #{tpu_custom_call.1} parent=107 // pred_region
          %773 = dma.done [#allocation13], 1024
        $region124: #{tpu_custom_call.1} parent=107 // pred_fallthru
          _
        // Predicated region
        $region125: #{tpu_custom_call.1} parent=107 // pred_check
          %p774 = pneg %p201
        $region126: #{tpu_custom_call.1} parent=107 // pred_check_branch
          %776 = sbr.rel (%p774) target = $region128
        $region127: #{tpu_custom_call.1} parent=107 // pred_region
          %778 = dma.done [#allocation13], 1024
        $region128: #{tpu_custom_call.1} parent=107 // pred_fallthru
          _
        // Predicated region
        $region129: #{tpu_custom_call.1} parent=107 // pred_check
          %p779 = pneg %p243
        $region130: #{tpu_custom_call.1} parent=107 // pred_check_branch
          %781 = sbr.rel (%p779) target = $region132
        $region131: #{tpu_custom_call.1} parent=107 // pred_region
          %783 = dma.done [#allocation16], 1024
        $region132: #{tpu_custom_call.1} parent=107 // pred_fallthru
          _
        // Predicated region
        $region133: #{tpu_custom_call.1} parent=107 // pred_check
          %p784 = pneg %p327
        $region134: #{tpu_custom_call.1} parent=107 // pred_check_branch
          %786 = sbr.rel (%p784) target = $region136
        $region135: #{tpu_custom_call.1} parent=107 // pred_region
          %788 = dma.done [#allocation16], 2048
        $region136: #{tpu_custom_call.1} parent=107 // pred_fallthru
          _
        // Predicated region
        $region137: #{tpu_custom_call.1} parent=107 // pred_check
          %p789 = pneg %p369
        $region138: #{tpu_custom_call.1} parent=107 // pred_check_branch
          %791 = sbr.rel (%p789) target = $region140
        $region139: #{tpu_custom_call.1} parent=107 // pred_region
          %793 = dma.done [#allocation19], 2048
        $region140: #{tpu_custom_call.1} parent=107 // pred_fallthru
          _
        // Predicated region
        $region141: #{tpu_custom_call.1} parent=107 // pred_check
          %p794 = pneg %p453
        $region142: #{tpu_custom_call.1} parent=107 // pred_check_branch
          %796 = sbr.rel (%p794) target = $region144
        $region143: #{tpu_custom_call.1} parent=107 // pred_region
          %798 = dma.done [#allocation19], 1024
        $region144: #{tpu_custom_call.1} parent=107 // pred_fallthru
          _
        // Predicated region
        $region145: #{tpu_custom_call.1} parent=107 // pred_check
          %p799 = pneg %p495
        $region146: #{tpu_custom_call.1} parent=107 // pred_check_branch
          %801 = sbr.rel (%p799) target = $region148
        $region147: #{tpu_custom_call.1} parent=107 // pred_region
          %803 = dma.done [#allocation22], 1024
        $region148: #{tpu_custom_call.1} parent=107 // pred_fallthru
          _
        %p804 = pneg %p70
        %p805 = pneg %p67
        %s806 = sand.u32 %s54, 1
        %s807 = scalar_lea.sflag [#allocation10], %s806
        %s808 = sand.u32 %s83, 1
        %s809 = smul.addr %s808, 2
        %s810 = scalar_lea.vmem [#allocation9], %s809
        %p811 = pneg %p96
        %p812 = pneg %p93
        %p813 = pneg %p117
        %p814 = pneg %p114
        %p815 = pneg %p138
        %p816 = pneg %p135
        %p817 = pneg %p159
        %p818 = pneg %p156
        %p819 = pneg %p180
        %p820 = pneg %p177
        %p821 = pneg %p201
        %p822 = pneg %p198
        %p823 = pneg %p222
        %p824 = pneg %p219
        %p825 = pneg %p243
        %p826 = pneg %p240
        %p827 = pneg %p264
        %p828 = pneg %p261
        %p829 = pneg %p285
        %p830 = pneg %p282
        %p831 = pneg %p306
        %p832 = pneg %p303
        %p833 = pneg %p327
        %p834 = pneg %p324
        %p835 = pneg %p348
        %p836 = pneg %p345
        %p837 = pneg %p369
        %p838 = pneg %p366
        %p839 = pneg %p390
        %p840 = pneg %p387
        %p841 = pneg %p411
        %p842 = pneg %p408
        %p843 = pneg %p432
        %p844 = pneg %p429
        %p845 = pneg %p453
        %p846 = pneg %p450
        %p847 = pneg %p474
        %p848 = pneg %p471
        %p849 = pneg %p495
        %p850 = pneg %p492
        %p851 = pneg %p516
        %p852 = pneg %p513
        %p853 = pneg %p542
        %p854 = pneg %p539
        %s855 = sand.u32 %s529, 1
        %s856 = scalar_lea.sflag [#allocation8], %s855
        %s857 = sand.u32 %s529, 1
        %s858 = smul.addr %s857, 2
        %s859 = scalar_lea.vmem [#allocation23], %s858
        %s860 = smul.u32 2, %s54
        %s861 = smul.u32 2, %s54
        %s862 = smul.u32 %s54, 16
        loop: start=0, step=1, limit=8
        $region149: #{tpu_custom_call.1} parent=107 // loop_pre_header
          _
        $region150: #{tpu_custom_call.1} parent=107 // loop_header
          %s864 = sphi 0, %s868
          %p865 = scmp.ge.s32.totalorder %s864, 8
        $region151: #{tpu_custom_call.1} parent=107 // loop_header_branch
          %867 = sbr.rel (%p865) target = $region155
        $region152: #{tpu_custom_call.1} parent=107 // loop_body
          %s869 = sadd.s32 %s862, %s864
          %s870 = sld [smem:[#allocation5 + %s869]]
          %p871 = scmp.lt.s32.totalorder %s864, 0
          %s872 = ssub.s32 0, %s864
          %s873 = scalar_select %p871, %s872, %s864
          %s874 = sand.u32 %s873, 7
          %s875 = ssub.s32 0, %s874
          %s876 = scalar_select %p871, %s875, %s874
          %p877 = scmp.ne.s32.totalorder %s876, 0
          %p878 = scmp.lt.s32.totalorder %s876, 0
          %p879 = pnand %p878, %p877
          %p880 = pneg %p879
          %s881 = sadd.s32 %s876, 8
          %s882 = scalar_select %p880, %s881, %s876
          %s883 = scalar_lea.hbm %s1, %s870
          %s884 = scalar_lea.vmem [#allocation2], %s864
          %s885 = scalar_lea.sflag [#allocation3], %s882
          // Predicated region
          $region156: #{tpu_custom_call.1} parent=152 // pred_check
            _
          $region157: #{tpu_custom_call.1} parent=152 // pred_check_branch
            %887 = sbr.rel target = $region159
          $region158: #{tpu_custom_call.1} parent=152 // pred_region
            %888 = sst [smem:[#allocation26]] [#allocation25]
            %889 = sst [smem:[#allocation27]] [#allocation24]
          $region159: #{tpu_custom_call.1} parent=152 // pred_fallthru
            _
          %891 = shalt.err (0)
          %s893 = sshll.u32 %s883, 4
          %s894 = int_to_ptr.hbm [resolvable:$true] %s893
          %s895 = sshll.u32 %s884, 4
          %s896 = int_to_ptr.vmem [resolvable:$true] %s895
          %898 = dma.hbm_to_vmem [thread:$0]  %s894, 16, %s896, %s885
        $region153: #{tpu_custom_call.1} parent=107 // loop_footer
          %s868 = sadd.s32 1, %s864
        $region154: #{tpu_custom_call.1} parent=107 // loop_footer_branch
          %863 = sbr.rel target = $region150
        $region155: #{tpu_custom_call.1} parent=107 // loop_exit
          _
        loop: start=0, step=1, limit=16
        $region160: #{tpu_custom_call.1} parent=107 // loop_pre_header
          _
        $region161: #{tpu_custom_call.1} parent=107 // loop_header
          %s900 = sphi 0, %s904
          %p901 = scmp.ge.s32.totalorder %s900, 16
        $region162: #{tpu_custom_call.1} parent=107 // loop_header_branch
          %903 = sbr.rel (%p901) target = $region166
        $region163: #{tpu_custom_call.1} parent=107 // loop_body
          %s905 = sadd.s32 %s862, %s900
          %s906 = sld [smem:[#allocation5 + %s905]]
          %p907 = scmp.lt.s32.totalorder %s900, 0
          %s908 = ssub.s32 0, %s900
          %s909 = scalar_select %p907, %s908, %s900
          %s910 = sand.u32 %s909, 7
          %s911 = ssub.s32 0, %s910
          %s912 = scalar_select %p907, %s911, %s910
          %p913 = scmp.ne.s32.totalorder %s912, 0
          %p914 = scmp.lt.s32.totalorder %s912, 0
          %p915 = pnand %p914, %p913
          %p916 = pneg %p915
          %s917 = sadd.s32 %s912, 8
          %s918 = scalar_select %p916, %s917, %s912
          %s919 = scalar_lea.sflag [#allocation3], %s918
          %s920 = smul.u32 1, 1
          %s921 = sshll.u32 %s920, 4
          %922 = dma.done %s919, %s921
          %s923 = sadd.s32 %s900, 8
          %p924 = scmp.lt.s32.totalorder %s923, 16
          // Predicated region
          $region167: #{tpu_custom_call.1} parent=163 // pred_check
            %p925 = pneg %p924
          $region168: #{tpu_custom_call.1} parent=163 // pred_check_branch
            %927 = sbr.rel (%p925) target = $region170
          $region169: #{tpu_custom_call.1} parent=163 // pred_region
            %s928 = sadd.s32 %s862, %s923
            %s929 = sld [smem:[#allocation5 + %s928]]
            %p930 = scmp.lt.s32.totalorder %s923, 0
            %s931 = ssub.s32 0, %s923
            %s932 = scalar_select %p930, %s931, %s923
            %s933 = sand.u32 %s932, 7
            %s934 = ssub.s32 0, %s933
            %s935 = scalar_select %p930, %s934, %s933
            %p936 = scmp.ne.s32.totalorder %s935, 0
            %p937 = scmp.lt.s32.totalorder %s935, 0
            %p938 = pnand %p937, %p936
            %p939 = pneg %p938
            %s940 = sadd.s32 %s935, 8
            %s941 = scalar_select %p939, %s940, %s935
            %s942 = scalar_lea.hbm %s1, %s929
            %s943 = scalar_lea.vmem [#allocation2], %s923
            %s944 = scalar_lea.sflag [#allocation3], %s941
            // Predicated region
            $region171: #{tpu_custom_call.1} parent=169 // pred_check
              _
            $region172: #{tpu_custom_call.1} parent=169 // pred_check_branch
              %946 = sbr.rel target = $region174
            $region173: #{tpu_custom_call.1} parent=169 // pred_region
              %947 = sst [smem:[#allocation26]] [#allocation29]
              %948 = sst [smem:[#allocation27]] [#allocation28]
            $region174: #{tpu_custom_call.1} parent=169 // pred_fallthru
              _
            %950 = shalt.err (0)
            %s952 = sshll.u32 %s942, 4
            %s953 = int_to_ptr.hbm [resolvable:$true] %s952
            %s954 = sshll.u32 %s943, 4
            %s955 = int_to_ptr.vmem [resolvable:$true] %s954
            %957 = dma.hbm_to_vmem [thread:$0]  %s953, 16, %s955, %s944
          $region170: #{tpu_custom_call.1} parent=163 // pred_fallthru
            _
        $region164: #{tpu_custom_call.1} parent=107 // loop_footer
          %s904 = sadd.s32 1, %s900
        $region165: #{tpu_custom_call.1} parent=107 // loop_footer_branch
          %899 = sbr.rel target = $region161
        $region166: #{tpu_custom_call.1} parent=107 // loop_exit
          _
        %v958 = vld [vmem:[#allocation2] sm:$0xff]
        %v959 = vld [vmem:[#allocation2 + $0x8] sm:$0xff]
        %v960 = vld [vmem:[#allocation6] sm:$0xff]
        %v961 = vadd.f32 %v958, %v960
        %v962 = vadd.f32 %v959, %v960
        %v963 = vpack.c.bf16 %v962, %v961
        %v964 = vld [vmem:[#allocation12] sm:$0xf]
        %v965 = vld [vmem:[#allocation12 + $0x4] sm:$0xf]
        %v966 = vld [vmem:[#allocation12 + $0x8] sm:$0xf]
        %v967 = vld [vmem:[#allocation12 + $0xc] sm:$0xf]
        %v968 = vld [vmem:[#allocation12 + $0x10] sm:$0xf]
        %v969 = vld [vmem:[#allocation12 + $0x14] sm:$0xf]
        %v970 = vld [vmem:[#allocation12 + $0x18] sm:$0xf]
        %v971 = vld [vmem:[#allocation12 + $0x1c] sm:$0xf]
        %v972 = vld [vmem:[#allocation12 + $0x20] sm:$0xf]
        %v973 = vld [vmem:[#allocation12 + $0x24] sm:$0xf]
        %v974 = vld [vmem:[#allocation12 + $0x28] sm:$0xf]
        %v975 = vld [vmem:[#allocation12 + $0x2c] sm:$0xf]
        %v976 = vld [vmem:[#allocation12 + $0x30] sm:$0xf]
        %v977 = vld [vmem:[#allocation12 + $0x34] sm:$0xf]
        %v978 = vld [vmem:[#allocation12 + $0x38] sm:$0xf]
        %v979 = vld [vmem:[#allocation12 + $0x3c] sm:$0xf]
        %v980 = vld [vmem:[%s7] sm:$0x1]
        %v982 = vperm.slane %v980, 0
        %v1000 = vunpack.c.l.b16 %v964
        %v1001 = vunpack.c.l.b16 %v965
        %v1002 = vunpack.c.l.b16 %v966
        %v1003 = vunpack.c.l.b16 %v967
        %v1004 = vunpack.c.l.b16 %v968
        %v1005 = vunpack.c.l.b16 %v969
        %v1006 = vunpack.c.l.b16 %v970
        %v1007 = vunpack.c.l.b16 %v971
        %v1008 = vunpack.c.l.b16 %v972
        %v1009 = vunpack.c.l.b16 %v973
        %v1010 = vunpack.c.l.b16 %v974
        %v1011 = vunpack.c.l.b16 %v975
        %v1012 = vunpack.c.l.b16 %v976
        %v1013 = vunpack.c.l.b16 %v977
        %v1014 = vunpack.c.l.b16 %v978
        %v1015 = vunpack.c.l.b16 %v979
        %v1016 = vpack.c.b16 %v1001, %v1000
        %v1017 = vpack.c.b16 %v1003, %v1002
        %v1018 = vpack.c.b16 %v1005, %v1004
        %v1019 = vpack.c.b16 %v1007, %v1006
        %v1020 = vpack.c.b16 %v1009, %v1008
        %v1021 = vpack.c.b16 %v1011, %v1010
        %v1022 = vpack.c.b16 %v1013, %v1012
        %v1023 = vpack.c.b16 %v1015, %v1014
        %1032 = vmatpush.bf16.msra.mxu0 %v1023
        %1033 = vmatpush.bf16.msra.mxu0 %v1022
        %1034 = vmatpush.bf16.msra.mxu0 %v1021
        %1035 = vmatpush.bf16.msra.mxu0 %v1020
        %1036 = vmatpush.bf16.msra.mxu0 %v1019
        %1037 = vmatpush.bf16.msra.mxu0 %v1018
        %1038 = vmatpush.bf16.msra.mxu0 %v1017
        %1039 = vmatpush.bf16.msra.mxu0 %v1016
        %1040 = vmatmul.bf16.gmra.mxu0 %v963
        %v1041 = vpop.f32.mrf.mxu0
        %v1042 = vadd.f32 %v982, %v1041
        %v1043 = vpop.f32.mrf.mxu0
        %v1044 = vadd.f32 %v982, %v1043
        %1045 = vdwg.mxu0
        %v1046 = vld [vmem:[#allocation14] sm:$0xf]
        %v1047 = vld [vmem:[#allocation14 + $0x4] sm:$0xf]
        %v1048 = vld [vmem:[#allocation14 + $0x8] sm:$0xf]
        %v1049 = vld [vmem:[#allocation14 + $0xc] sm:$0xf]
        %v1050 = vld [vmem:[#allocation14 + $0x10] sm:$0xf]
        %v1051 = vld [vmem:[#allocation14 + $0x14] sm:$0xf]
        %v1052 = vld [vmem:[#allocation14 + $0x18] sm:$0xf]
        %v1053 = vld [vmem:[#allocation14 + $0x1c] sm:$0xf]
        %v1054 = vld [vmem:[#allocation14 + $0x20] sm:$0xf]
        %v1055 = vld [vmem:[#allocation14 + $0x24] sm:$0xf]
        %v1056 = vld [vmem:[#allocation14 + $0x28] sm:$0xf]
        %v1057 = vld [vmem:[#allocation14 + $0x2c] sm:$0xf]
        %v1058 = vld [vmem:[#allocation14 + $0x30] sm:$0xf]
        %v1059 = vld [vmem:[#allocation14 + $0x34] sm:$0xf]
        %v1060 = vld [vmem:[#allocation14 + $0x38] sm:$0xf]
        %v1061 = vld [vmem:[#allocation14 + $0x3c] sm:$0xf]
        %v1062 = vld [vmem:[%s9] sm:$0x1]
        %v1064 = vperm.slane %v1062, 0
        %v1082 = vunpack.c.l.b16 %v1046
        %v1083 = vunpack.c.l.b16 %v1047
        %v1084 = vunpack.c.l.b16 %v1048
        %v1085 = vunpack.c.l.b16 %v1049
        %v1086 = vunpack.c.l.b16 %v1050
        %v1087 = vunpack.c.l.b16 %v1051
        %v1088 = vunpack.c.l.b16 %v1052
        %v1089 = vunpack.c.l.b16 %v1053
        %v1090 = vunpack.c.l.b16 %v1054
        %v1091 = vunpack.c.l.b16 %v1055
        %v1092 = vunpack.c.l.b16 %v1056
        %v1093 = vunpack.c.l.b16 %v1057
        %v1094 = vunpack.c.l.b16 %v1058
        %v1095 = vunpack.c.l.b16 %v1059
        %v1096 = vunpack.c.l.b16 %v1060
        %v1097 = vunpack.c.l.b16 %v1061
        %v1098 = vpack.c.b16 %v1083, %v1082
        %v1099 = vpack.c.b16 %v1085, %v1084
        %v1100 = vpack.c.b16 %v1087, %v1086
        %v1101 = vpack.c.b16 %v1089, %v1088
        %v1102 = vpack.c.b16 %v1091, %v1090
        %v1103 = vpack.c.b16 %v1093, %v1092
        %v1104 = vpack.c.b16 %v1095, %v1094
        %v1105 = vpack.c.b16 %v1097, %v1096
        %1114 = vmatpush.bf16.msra.mxu0 %v1105
        %1115 = vmatpush.bf16.msra.mxu0 %v1104
        %1116 = vmatpush.bf16.msra.mxu0 %v1103
        %1117 = vmatpush.bf16.msra.mxu0 %v1102
        %1118 = vmatpush.bf16.msra.mxu0 %v1101
        %1119 = vmatpush.bf16.msra.mxu0 %v1100
        %1120 = vmatpush.bf16.msra.mxu0 %v1099
        %1121 = vmatpush.bf16.msra.mxu0 %v1098
        %1122 = vmatmul.bf16.gmra.mxu0 %v963
        %v1123 = vpop.f32.mrf.mxu0
        %v1124 = vadd.f32 %v1064, %v1123
        %v1125 = vpop.f32.mrf.mxu0
        %v1126 = vadd.f32 %v1064, %v1125
        %1127 = vdwg.mxu0
        %v1128 = vpack.c.bf16 %v961, %v961
        %v1129 = vpack.c.bf16 %v962, %v962
        %v1130 = vld [vmem:[#allocation11] sm:$0xf]
        %v1131 = vld [vmem:[#allocation11 + $0x4] sm:$0xf]
        %v1132 = vld [vmem:[#allocation11 + $0x8] sm:$0xf]
        %v1133 = vld [vmem:[#allocation11 + $0xc] sm:$0xf]
        %v1134 = vld [vmem:[#allocation11 + $0x10] sm:$0xf]
        %v1135 = vld [vmem:[#allocation11 + $0x14] sm:$0xf]
        %v1136 = vld [vmem:[#allocation11 + $0x18] sm:$0xf]
        %v1137 = vld [vmem:[#allocation11 + $0x1c] sm:$0xf]
        %v1138 = vld [vmem:[#allocation11 + $0x20] sm:$0xf]
        %v1139 = vld [vmem:[#allocation11 + $0x24] sm:$0xf]
        %v1140 = vld [vmem:[#allocation11 + $0x28] sm:$0xf]
        %v1141 = vld [vmem:[#allocation11 + $0x2c] sm:$0xf]
        %v1142 = vld [vmem:[#allocation11 + $0x30] sm:$0xf]
        %v1143 = vld [vmem:[#allocation11 + $0x34] sm:$0xf]
        %v1144 = vld [vmem:[#allocation11 + $0x38] sm:$0xf]
        %v1145 = vld [vmem:[#allocation11 + $0x3c] sm:$0xf]
        %v1146 = vld [vmem:[%s5] sm:$0x1]
        %v1148 = vperm.slane %v1146, 0
        %v1152 = vunpack.c.l.b16 %v1128
        %v1153 = vunpack.c.l.b16 %v1129
        %v1154 = vrot.slane %v1153, 7
        %vm1155 = vcmask 1041409
        %v1156 = vsel %vm1155, %v1154, %v1152
        %v1157 = vpack.c.b16 %v1156, %v1156
        %v1175 = vunpack.c.l.b16 %v1130
        %v1176 = vunpack.c.l.b16 %v1131
        %v1177 = vunpack.c.l.b16 %v1132
        %v1178 = vunpack.c.l.b16 %v1133
        %v1179 = vunpack.c.l.b16 %v1134
        %v1180 = vunpack.c.l.b16 %v1135
        %v1181 = vunpack.c.l.b16 %v1136
        %v1182 = vunpack.c.l.b16 %v1137
        %v1183 = vunpack.c.l.b16 %v1138
        %v1184 = vunpack.c.l.b16 %v1139
        %v1185 = vunpack.c.l.b16 %v1140
        %v1186 = vunpack.c.l.b16 %v1141
        %v1187 = vunpack.c.l.b16 %v1142
        %v1188 = vunpack.c.l.b16 %v1143
        %v1189 = vunpack.c.l.b16 %v1144
        %v1190 = vunpack.c.l.b16 %v1145
        %v1191 = vpack.c.b16 %v1176, %v1175
        %v1192 = vpack.c.b16 %v1178, %v1177
        %v1193 = vpack.c.b16 %v1180, %v1179
        %v1194 = vpack.c.b16 %v1182, %v1181
        %v1195 = vpack.c.b16 %v1184, %v1183
        %v1196 = vpack.c.b16 %v1186, %v1185
        %v1197 = vpack.c.b16 %v1188, %v1187
        %v1198 = vpack.c.b16 %v1190, %v1189
        %1207 = vmatpush.bf16.msra.mxu0 %v1198
        %1208 = vmatpush.bf16.msra.mxu0 %v1197
        %1209 = vmatpush.bf16.msra.mxu0 %v1196
        %1210 = vmatpush.bf16.msra.mxu0 %v1195
        %1211 = vmatpush.bf16.msra.mxu0 %v1194
        %1212 = vmatpush.bf16.msra.mxu0 %v1193
        %1213 = vmatpush.bf16.msra.mxu0 %v1192
        %1214 = vmatpush.bf16.msra.mxu0 %v1191
        %1215 = vmatmul.bf16.gmra.mxu0 %v1157
        %v1216 = vpop.f32.mrf.mxu0
        %v1217 = vadd.f32 %v1148, %v1216
        %v1218 = vpop.f32.mrf.mxu0
        %1219 = vdwg.mxu0
        %v1221 = vrot.slane %v1217, 1
        %v1222 = vperm.slane %v1217, 0
        %v1223 = vperm.slane %v1221, 0
        %v1226 = vmul.f32 %v1222, %v1042
        %v1227 = vmul.f32 %v1223, %v1044
        %1228 = vadd.xlane.f32.xlu0 %v1226
        %v1229 = vpop.xlane.xlu0 %1228
        %1230 = vadd.xlane.f32.xlu0 %v1227
        %v1231 = vpop.xlane.xlu0 %1230
        %v1232 = vld [vmem:[%s758] sm:$0x1]
        %v1233 = vld [vmem:[%s758 + $0x1] sm:$0x1]
        %v1236 = vperm.slane %v1232, 0
        %v1237 = vperm.slane %v1233, 0
        %v1238 = vlaneseq
        %v1239 = vshrl.u32 %v1238, 7
        %1241 = vset.pattern.permute.xlu0 %v1239
        %1242 = vperm.xlu0 %1241, %v1236
        %v1243 = vpop.permute.xlu0 %1242
        %v1244 = vlaneseq
        %v1245 = vshrl.u32 %v1244, 7
        %1247 = vset.pattern.permute.xlu0 %v1245
        %1248 = vperm.xlu0 %1247, %v1237
        %v1249 = vpop.permute.xlu0 %1248
        %v1252 = vadd.f32 %v1229, %v1243
        %v1253 = vadd.f32 %v1231, %v1249
        %1256 = vset.pattern.permute.xlu0 0
        %1257 = vperm.xlu0 %1256, %v1252
        %v1258 = vpop.permute.xlu0 %1257
        %1259 = vset.pattern.permute.xlu0 0
        %1260 = vperm.xlu0 %1259, %v1253
        %v1261 = vpop.permute.xlu0 %1260
        %v1262 = vlaneseq
        %v1263 = vand.u32 %v1262, 127
        %v1264 = vperm.slane %v1258, %v1263
        %v1265 = vperm.slane %v1261, %v1263
        %v1266 = vsel %vm1155, %v1265, %v1264
        %vm1268 = vcmask 58368
        %v1269 = vsel %vm1268, %v1266, -inf
        %1270 = vmax.xlane.f32.xlu0 %v1269
        %v1271 = vpop.xlane.xlu0 %1270
        %v1273 = vperm.slane %v1271, 0
        %v1274 = vperm.slane %v1271, 1
        %v1277 = vsub.f32 %v1252, %v1273
        %v1278 = vsub.f32 %v1253, %v1274
        %v1279 = vmul.f32 %v1277, 1.442695
        %v1280 = vpow.pop %v1279
        %v1281 = vmul.f32 %v1278, 1.442695
        %v1282 = vpow.pop %v1281
        %1285 = vset.pattern.permute.xlu0 0
        %1286 = vperm.xlu0 %1285, %v1280
        %v1287 = vpop.permute.xlu0 %1286
        %1288 = vset.pattern.permute.xlu0 0
        %1289 = vperm.xlu0 %1288, %v1282
        %v1290 = vpop.permute.xlu0 %1289
        %v1291 = vperm.slane %v1287, %v1263
        %v1292 = vperm.slane %v1290, %v1263
        %v1293 = vsel %vm1155, %v1292, %v1291
        %v1295 = vsel %vm1268, %v1293, 0.0
        %1296 = vadd.xlane.f32.xlu0 %v1295
        %v1297 = vpop.xlane.xlu0 %1296
        %v1299 = vperm.slane %v1297, 0
        %v1300 = vperm.slane %v1297, 1
        %v1303 = vrcp.pop %v1299
        %v1304 = vmul.f32 %v1299, %v1303
        %v1305 = vsub.f32 1.0, %v1304
        %v1306 = vmul.f32 %v1303, %v1305
        %v1307 = vadd.f32 %v1303, %v1306
        %vm1308 = vweird.f32 %v1299
        %vm1309 = vweird.f32 %v1303
        %vm1310 = vmor %vm1308, %vm1309
        %v1311 = vsel %vm1310, %v1303, %v1307
        %v1312 = vand.u32 2147483647, %v1299
        %vm1313 = vcmp.eq.f32.partialorder %v1312, 8.507059e+37
        %v1314 = vand.u32 %v1299, 2147483648
        %v1315 = vor.u32 1.1754944e-38, %v1314
        %v1316 = vsel %vm1313, %v1315, %v1311
        %v1317 = vmul.f32 %v1280, %v1316
        %v1318 = vrcp.pop %v1300
        %v1319 = vmul.f32 %v1300, %v1318
        %v1320 = vsub.f32 1.0, %v1319
        %v1321 = vmul.f32 %v1318, %v1320
        %v1322 = vadd.f32 %v1318, %v1321
        %vm1323 = vweird.f32 %v1300
        %vm1324 = vweird.f32 %v1318
        %vm1325 = vmor %vm1323, %vm1324
        %v1326 = vsel %vm1325, %v1318, %v1322
        %v1327 = vand.u32 2147483647, %v1300
        %vm1328 = vcmp.eq.f32.partialorder %v1327, 8.507059e+37
        %v1329 = vand.u32 %v1300, 2147483648
        %v1330 = vor.u32 1.1754944e-38, %v1329
        %v1331 = vsel %vm1328, %v1330, %v1326
        %v1332 = vmul.f32 %v1282, %v1331
        %1334 = vset.pattern.permute.xlu0 0
        %1335 = vperm.xlu0 %1334, %v1317
        %v1336 = vpop.permute.xlu0 %1335
        %1339 = vset.pattern.permute.xlu0 0
        %1340 = vperm.xlu0 %1339, %v1332
        %v1341 = vpop.permute.xlu0 %1340
        %v1343 = vmul.f32 %v1336, %v1124
        %v1344 = vmul.f32 %v1341, %v1126
        %v1345 = vrot.slane %v1343, 4
        %v1346 = vadd.f32 %v1343, %v1345
        %v1347 = vrot.slane %v1346, 2
        %v1348 = vadd.f32 %v1346, %v1347
        %v1349 = vrot.slane %v1348, 1
        %v1350 = vadd.f32 %v1348, %v1349
        %v1351 = vrot.slane %v1344, 4
        %v1352 = vadd.f32 %v1344, %v1351
        %v1353 = vrot.slane %v1352, 2
        %v1354 = vadd.f32 %v1352, %v1353
        %v1355 = vrot.slane %v1354, 1
        %v1356 = vadd.f32 %v1354, %v1355
        %v1357 = vpack.c.bf16 %v1350, %v1350
        %v1358 = vpack.c.bf16 %v1356, %v1356
        %v1359 = vld [vmem:[#allocation15] sm:$0xf]
        %v1360 = vld [vmem:[#allocation15 + $0x4] sm:$0xf]
        %v1361 = vld [vmem:[#allocation15 + $0x8] sm:$0xf]
        %v1362 = vld [vmem:[#allocation15 + $0xc] sm:$0xf]
        %v1363 = vld [vmem:[#allocation15 + $0x10] sm:$0xf]
        %v1364 = vld [vmem:[#allocation15 + $0x14] sm:$0xf]
        %v1365 = vld [vmem:[#allocation15 + $0x18] sm:$0xf]
        %v1366 = vld [vmem:[#allocation15 + $0x1c] sm:$0xf]
        %v1367 = vld [vmem:[#allocation15 + $0x20] sm:$0xf]
        %v1368 = vld [vmem:[#allocation15 + $0x24] sm:$0xf]
        %v1369 = vld [vmem:[#allocation15 + $0x28] sm:$0xf]
        %v1370 = vld [vmem:[#allocation15 + $0x2c] sm:$0xf]
        %v1371 = vld [vmem:[#allocation15 + $0x30] sm:$0xf]
        %v1372 = vld [vmem:[#allocation15 + $0x34] sm:$0xf]
        %v1373 = vld [vmem:[#allocation15 + $0x38] sm:$0xf]
        %v1374 = vld [vmem:[#allocation15 + $0x3c] sm:$0xf]
        %v1375 = vld [vmem:[%s11] sm:$0x1]
        %v1377 = vperm.slane %v1375, 0
        %v1381 = vunpack.c.l.b16 %v1357
        %v1382 = vunpack.c.l.b16 %v1358
        %v1383 = vsel %vm1155, %v1382, %v1381
        %v1384 = vpack.c.b16 %v1383, %v1383
        %v1402 = vunpack.c.l.b16 %v1359
        %v1403 = vunpack.c.l.b16 %v1360
        %v1404 = vunpack.c.l.b16 %v1361
        %v1405 = vunpack.c.l.b16 %v1362
        %v1406 = vunpack.c.l.b16 %v1363
        %v1407 = vunpack.c.l.b16 %v1364
        %v1408 = vunpack.c.l.b16 %v1365
        %v1409 = vunpack.c.l.b16 %v1366
        %v1410 = vunpack.c.l.b16 %v1367
        %v1411 = vunpack.c.l.b16 %v1368
        %v1412 = vunpack.c.l.b16 %v1369
        %v1413 = vunpack.c.l.b16 %v1370
        %v1414 = vunpack.c.l.b16 %v1371
        %v1415 = vunpack.c.l.b16 %v1372
        %v1416 = vunpack.c.l.b16 %v1373
        %v1417 = vunpack.c.l.b16 %v1374
        %v1418 = vpack.c.b16 %v1403, %v1402
        %v1419 = vpack.c.b16 %v1405, %v1404
        %v1420 = vpack.c.b16 %v1407, %v1406
        %v1421 = vpack.c.b16 %v1409, %v1408
        %v1422 = vpack.c.b16 %v1411, %v1410
        %v1423 = vpack.c.b16 %v1413, %v1412
        %v1424 = vpack.c.b16 %v1415, %v1414
        %v1425 = vpack.c.b16 %v1417, %v1416
        %1434 = vmatpush.bf16.msra.mxu0 %v1425
        %1435 = vmatpush.bf16.msra.mxu0 %v1424
        %1436 = vmatpush.bf16.msra.mxu0 %v1423
        %1437 = vmatpush.bf16.msra.mxu0 %v1422
        %1438 = vmatpush.bf16.msra.mxu0 %v1421
        %1439 = vmatpush.bf16.msra.mxu0 %v1420
        %1440 = vmatpush.bf16.msra.mxu0 %v1419
        %1441 = vmatpush.bf16.msra.mxu0 %v1418
        %1442 = vmatmul.bf16.gmra.mxu0 %v1384
        %v1443 = vpop.f32.mrf.mxu0
        %v1444 = vadd.f32 %v1377, %v1443
        %v1445 = vpop.f32.mrf.mxu0
        %1446 = vdwg.mxu0
        %v1448 = vrot.slane %v1444, 1
        %v1451 = vadd.f32 %v961, %v1444
        %v1452 = vadd.f32 %v962, %v1448
        %v1453 = vld [vmem:[%s12] sm:$0x1]
        %v1454 = vld [vmem:[%s13] sm:$0x1]
        %v1457 = vrot.slane %v1452, 7
        %v1458 = vsel %vm1155, %v1457, %v1451
        %vm1460 = vcmask 1041408
        %v1461 = vsel %vm1460, %v1458, 0.0
        %1462 = vadd.xlane.f32.xlu0 %v1461
        %v1463 = vpop.xlane.xlu0 %1462
        %v1464 = vrcp.pop 128.0
        %v1465 = vmul.f32 128.0, %v1464
        %v1466 = vsub.f32 1.0, %v1465
        %v1467 = vmul.f32 %v1464, %v1466
        %v1468 = vadd.f32 %v1464, %v1467
        %vm1469 = vweird.f32 %v1464
        %v1470 = vsel %vm1469, %v1464, %v1468
        %v1471 = vmul.f32 %v1463, %v1470
        %v1473 = vrot.slane %v1471, 1
        %v1476 = vsub.f32 %v1451, %v1471
        %v1477 = vsub.f32 %v1452, %v1473
        %v1478 = vmul.f32 %v1476, %v1476
        %v1479 = vmul.f32 %v1477, %v1477
        %v1482 = vrot.slane %v1479, 7
        %v1483 = vsel %vm1155, %v1482, %v1478
        %v1485 = vsel %vm1460, %v1483, 0.0
        %1486 = vadd.xlane.f32.xlu0 %v1485
        %v1487 = vpop.xlane.xlu0 %1486
        %v1488 = vmul.f32 %v1487, %v1470
        %v1489 = vadd.f32 %v1488, 1e-12
        %v1490 = vrsqrt.pop %v1489
        %v1491 = vmul.f32 %v1490, %v1489
        %v1492 = vmul.f32 %v1491, %v1490
        %v1493 = vmul.f32 0.5, %v1492
        %v1494 = vsub.f32 1.5, %v1493
        %v1495 = vmul.f32 %v1490, %v1494
        %vm1496 = vweird.f32 %v1489
        %vm1497 = vweird.f32 %v1490
        %vm1498 = vmor %vm1496, %vm1497
        %v1499 = vsel %vm1498, %v1490, %v1495
        %v1501 = vrot.slane %v1499, 1
        %v1504 = vmul.f32 %v1476, %v1499
        %v1505 = vmul.f32 %v1477, %v1501
        %v1507 = vperm.slane %v1453, 0
        %v1509 = vmul.f32 %v1504, %v1507
        %v1510 = vmul.f32 %v1505, %v1507
        %v1512 = vperm.slane %v1454, 0
        %v1514 = vadd.f32 %v1509, %v1512
        %v1515 = vadd.f32 %v1510, %v1512
        %v1516 = vpack.c.bf16 %v1514, %v1514
        %v1517 = vpack.c.bf16 %v1515, %v1515
        %v1518 = vld [vmem:[#allocation17] sm:$0xff]
        %v1519 = vld [vmem:[#allocation17 + $0x8] sm:$0xff]
        %v1520 = vld [vmem:[#allocation17 + $0x10] sm:$0xff]
        %v1521 = vld [vmem:[#allocation17 + $0x18] sm:$0xff]
        %v1522 = vld [vmem:[#allocation17 + $0x20] sm:$0xff]
        %v1523 = vld [vmem:[#allocation17 + $0x28] sm:$0xff]
        %v1524 = vld [vmem:[#allocation17 + $0x30] sm:$0xff]
        %v1525 = vld [vmem:[#allocation17 + $0x38] sm:$0xff]
        %v1526 = vld [vmem:[#allocation17 + $0x40] sm:$0xff]
        %v1527 = vld [vmem:[#allocation17 + $0x48] sm:$0xff]
        %v1528 = vld [vmem:[#allocation17 + $0x50] sm:$0xff]
        %v1529 = vld [vmem:[#allocation17 + $0x58] sm:$0xff]
        %v1530 = vld [vmem:[#allocation17 + $0x60] sm:$0xff]
        %v1531 = vld [vmem:[#allocation17 + $0x68] sm:$0xff]
        %v1532 = vld [vmem:[#allocation17 + $0x70] sm:$0xff]
        %v1533 = vld [vmem:[#allocation17 + $0x78] sm:$0xff]
        %v1534 = vld [vmem:[%s15] sm:$0x3]
        %v1536 = vperm.slane %v1534, 0
        %v1537 = vperm.slane %v1534, 1
        %v1542 = vunpack.c.l.b16 %v1516
        %v1543 = vunpack.c.l.b16 %v1517
        %v1544 = vrot.slane %v1543, 7
        %v1545 = vsel %vm1155, %v1544, %v1542
        %v1546 = vpack.c.b16 %v1545, %v1545
        %v1564 = vunpack.c.l.b16 %v1518
        %v1565 = vunpack.c.h.b16 %v1518
        %v1566 = vunpack.c.l.b16 %v1519
        %v1567 = vunpack.c.h.b16 %v1519
        %v1568 = vunpack.c.l.b16 %v1520
        %v1569 = vunpack.c.h.b16 %v1520
        %v1570 = vunpack.c.l.b16 %v1521
        %v1571 = vunpack.c.h.b16 %v1521
        %v1572 = vunpack.c.l.b16 %v1522
        %v1573 = vunpack.c.h.b16 %v1522
        %v1574 = vunpack.c.l.b16 %v1523
        %v1575 = vunpack.c.h.b16 %v1523
        %v1576 = vunpack.c.l.b16 %v1524
        %v1577 = vunpack.c.h.b16 %v1524
        %v1578 = vunpack.c.l.b16 %v1525
        %v1579 = vunpack.c.h.b16 %v1525
        %v1580 = vunpack.c.l.b16 %v1526
        %v1581 = vunpack.c.h.b16 %v1526
        %v1582 = vunpack.c.l.b16 %v1527
        %v1583 = vunpack.c.h.b16 %v1527
        %v1584 = vunpack.c.l.b16 %v1528
        %v1585 = vunpack.c.h.b16 %v1528
        %v1586 = vunpack.c.l.b16 %v1529
        %v1587 = vunpack.c.h.b16 %v1529
        %v1588 = vunpack.c.l.b16 %v1530
        %v1589 = vunpack.c.h.b16 %v1530
        %v1590 = vunpack.c.l.b16 %v1531
        %v1591 = vunpack.c.h.b16 %v1531
        %v1592 = vunpack.c.l.b16 %v1532
        %v1593 = vunpack.c.h.b16 %v1532
        %v1594 = vunpack.c.l.b16 %v1533
        %v1595 = vunpack.c.h.b16 %v1533
        %v1596 = vpack.c.b16 %v1566, %v1564
        %v1597 = vpack.c.b16 %v1567, %v1565
        %v1598 = vpack.c.b16 %v1570, %v1568
        %v1599 = vpack.c.b16 %v1571, %v1569
        %v1600 = vpack.c.b16 %v1574, %v1572
        %v1601 = vpack.c.b16 %v1575, %v1573
        %v1602 = vpack.c.b16 %v1578, %v1576
        %v1603 = vpack.c.b16 %v1579, %v1577
        %v1604 = vpack.c.b16 %v1582, %v1580
        %v1605 = vpack.c.b16 %v1583, %v1581
        %v1606 = vpack.c.b16 %v1586, %v1584
        %v1607 = vpack.c.b16 %v1587, %v1585
        %v1608 = vpack.c.b16 %v1590, %v1588
        %v1609 = vpack.c.b16 %v1591, %v1589
        %v1610 = vpack.c.b16 %v1594, %v1592
        %v1611 = vpack.c.b16 %v1595, %v1593
        %1628 = vmatpush.bf16.msra.mxu0 %v1610
        %1629 = vmatpush.bf16.msra.mxu0 %v1608
        %1630 = vmatpush.bf16.msra.mxu0 %v1606
        %1631 = vmatpush.bf16.msra.mxu0 %v1604
        %1632 = vmatpush.bf16.msra.mxu0 %v1602
        %1633 = vmatpush.bf16.msra.mxu0 %v1600
        %1634 = vmatpush.bf16.msra.mxu0 %v1598
        %1635 = vmatpush.bf16.msra.mxu0 %v1596
        %1636 = vmatmul.bf16.gmra.mxu0 %v1546
        %v1637 = vpop.f32.mrf.mxu0
        %v1638 = vadd.f32 %v1536, %v1637
        %v1639 = vpop.f32.mrf.mxu0
        %1640 = vdwg.mxu0
        %1641 = vmatpush.bf16.msra.mxu0 %v1611
        %1642 = vmatpush.bf16.msra.mxu0 %v1609
        %1643 = vmatpush.bf16.msra.mxu0 %v1607
        %1644 = vmatpush.bf16.msra.mxu0 %v1605
        %1645 = vmatpush.bf16.msra.mxu0 %v1603
        %1646 = vmatpush.bf16.msra.mxu0 %v1601
        %1647 = vmatpush.bf16.msra.mxu0 %v1599
        %1648 = vmatpush.bf16.msra.mxu0 %v1597
        %1649 = vmatmul.bf16.gmra.mxu0 %v1546
        %v1650 = vpop.f32.mrf.mxu0
        %v1651 = vadd.f32 %v1537, %v1650
        %v1652 = vpop.f32.mrf.mxu0
        %1653 = vdwg.mxu0
        %v1654 = vmul.f32 %v1638, 0.5
        %v1655 = vmul.f32 %v1651, 0.5
        %v1656 = vmul.f32 %v1638, 0.044715
        %v1657 = vmul.f32 %v1651, 0.044715
        %v1658 = vmul.f32 %v1656, %v1638
        %v1659 = vmul.f32 %v1657, %v1651
        %v1660 = vmul.f32 %v1658, %v1638
        %v1661 = vmul.f32 %v1659, %v1651
        %v1662 = vadd.f32 %v1638, %v1660
        %v1663 = vadd.f32 %v1651, %v1661
        %v1664 = vmul.f32 %v1662, 0.7978846
        %v1665 = vmul.f32 %v1663, 0.7978846
        %v1666 = vtanh.pop %v1664
        %v1667 = vtanh.pop %v1665
        %v1668 = vadd.f32 %v1666, 1.0
        %v1669 = vadd.f32 %v1667, 1.0
        %v1670 = vmul.f32 %v1654, %v1668
        %v1671 = vmul.f32 %v1655, %v1669
        %v1672 = vpack.c.bf16 %v1670, %v1670
        %v1673 = vpack.c.bf16 %v1671, %v1671
        %v1674 = vld [vmem:[#allocation18] sm:$0xf]
        %v1675 = vld [vmem:[#allocation18 + $0x4] sm:$0xf]
        %v1676 = vld [vmem:[#allocation18 + $0x8] sm:$0xf]
        %v1677 = vld [vmem:[#allocation18 + $0xc] sm:$0xf]
        %v1678 = vld [vmem:[#allocation18 + $0x10] sm:$0xf]
        %v1679 = vld [vmem:[#allocation18 + $0x14] sm:$0xf]
        %v1680 = vld [vmem:[#allocation18 + $0x18] sm:$0xf]
        %v1681 = vld [vmem:[#allocation18 + $0x1c] sm:$0xf]
        %v1682 = vld [vmem:[#allocation18 + $0x20] sm:$0xf]
        %v1683 = vld [vmem:[#allocation18 + $0x24] sm:$0xf]
        %v1684 = vld [vmem:[#allocation18 + $0x28] sm:$0xf]
        %v1685 = vld [vmem:[#allocation18 + $0x2c] sm:$0xf]
        %v1686 = vld [vmem:[#allocation18 + $0x30] sm:$0xf]
        %v1687 = vld [vmem:[#allocation18 + $0x34] sm:$0xf]
        %v1688 = vld [vmem:[#allocation18 + $0x38] sm:$0xf]
        %v1689 = vld [vmem:[#allocation18 + $0x3c] sm:$0xf]
        %v1690 = vld [vmem:[#allocation18 + $0x40] sm:$0xf]
        %v1691 = vld [vmem:[#allocation18 + $0x44] sm:$0xf]
        %v1692 = vld [vmem:[#allocation18 + $0x48] sm:$0xf]
        %v1693 = vld [vmem:[#allocation18 + $0x4c] sm:$0xf]
        %v1694 = vld [vmem:[#allocation18 + $0x50] sm:$0xf]
        %v1695 = vld [vmem:[#allocation18 + $0x54] sm:$0xf]
        %v1696 = vld [vmem:[#allocation18 + $0x58] sm:$0xf]
        %v1697 = vld [vmem:[#allocation18 + $0x5c] sm:$0xf]
        %v1698 = vld [vmem:[#allocation18 + $0x60] sm:$0xf]
        %v1699 = vld [vmem:[#allocation18 + $0x64] sm:$0xf]
        %v1700 = vld [vmem:[#allocation18 + $0x68] sm:$0xf]
        %v1701 = vld [vmem:[#allocation18 + $0x6c] sm:$0xf]
        %v1702 = vld [vmem:[#allocation18 + $0x70] sm:$0xf]
        %v1703 = vld [vmem:[#allocation18 + $0x74] sm:$0xf]
        %v1704 = vld [vmem:[#allocation18 + $0x78] sm:$0xf]
        %v1705 = vld [vmem:[#allocation18 + $0x7c] sm:$0xf]
        %v1706 = vld [vmem:[%s17] sm:$0x1]
        %v1708 = vperm.slane %v1706, 0
        %v1742 = vunpack.c.l.b16 %v1674
        %v1743 = vunpack.c.l.b16 %v1675
        %v1744 = vunpack.c.l.b16 %v1676
        %v1745 = vunpack.c.l.b16 %v1677
        %v1746 = vunpack.c.l.b16 %v1678
        %v1747 = vunpack.c.l.b16 %v1679
        %v1748 = vunpack.c.l.b16 %v1680
        %v1749 = vunpack.c.l.b16 %v1681
        %v1750 = vunpack.c.l.b16 %v1682
        %v1751 = vunpack.c.l.b16 %v1683
        %v1752 = vunpack.c.l.b16 %v1684
        %v1753 = vunpack.c.l.b16 %v1685
        %v1754 = vunpack.c.l.b16 %v1686
        %v1755 = vunpack.c.l.b16 %v1687
        %v1756 = vunpack.c.l.b16 %v1688
        %v1757 = vunpack.c.l.b16 %v1689
        %v1758 = vunpack.c.l.b16 %v1690
        %v1759 = vunpack.c.l.b16 %v1691
        %v1760 = vunpack.c.l.b16 %v1692
        %v1761 = vunpack.c.l.b16 %v1693
        %v1762 = vunpack.c.l.b16 %v1694
        %v1763 = vunpack.c.l.b16 %v1695
        %v1764 = vunpack.c.l.b16 %v1696
        %v1765 = vunpack.c.l.b16 %v1697
        %v1766 = vunpack.c.l.b16 %v1698
        %v1767 = vunpack.c.l.b16 %v1699
        %v1768 = vunpack.c.l.b16 %v1700
        %v1769 = vunpack.c.l.b16 %v1701
        %v1770 = vunpack.c.l.b16 %v1702
        %v1771 = vunpack.c.l.b16 %v1703
        %v1772 = vunpack.c.l.b16 %v1704
        %v1773 = vunpack.c.l.b16 %v1705
        %v1774 = vpack.c.b16 %v1743, %v1742
        %v1775 = vpack.c.b16 %v1745, %v1744
        %v1776 = vpack.c.b16 %v1747, %v1746
        %v1777 = vpack.c.b16 %v1749, %v1748
        %v1778 = vpack.c.b16 %v1751, %v1750
        %v1779 = vpack.c.b16 %v1753, %v1752
        %v1780 = vpack.c.b16 %v1755, %v1754
        %v1781 = vpack.c.b16 %v1757, %v1756
        %v1782 = vpack.c.b16 %v1759, %v1758
        %v1783 = vpack.c.b16 %v1761, %v1760
        %v1784 = vpack.c.b16 %v1763, %v1762
        %v1785 = vpack.c.b16 %v1765, %v1764
        %v1786 = vpack.c.b16 %v1767, %v1766
        %v1787 = vpack.c.b16 %v1769, %v1768
        %v1788 = vpack.c.b16 %v1771, %v1770
        %v1789 = vpack.c.b16 %v1773, %v1772
        %1806 = vmatpush.bf16.msra.mxu0 %v1781
        %1807 = vmatpush.bf16.msra.mxu0 %v1780
        %1808 = vmatpush.bf16.msra.mxu0 %v1779
        %1809 = vmatpush.bf16.msra.mxu0 %v1778
        %1810 = vmatpush.bf16.msra.mxu0 %v1777
        %1811 = vmatpush.bf16.msra.mxu0 %v1776
        %1812 = vmatpush.bf16.msra.mxu0 %v1775
        %1813 = vmatpush.bf16.msra.mxu0 %v1774
        %1814 = vmatmul.bf16.gmra.mxu0 %v1672
        %v1815 = vpop.f32.mrf.mxu0
        %v1816 = vadd.f32 %v1708, %v1815
        %v1817 = vpop.f32.mrf.mxu0
        %1818 = vdwg.mxu0
        %1819 = vmatpush.bf16.msra.mxu0 %v1789
        %1820 = vmatpush.bf16.msra.mxu0 %v1788
        %1821 = vmatpush.bf16.msra.mxu0 %v1787
        %1822 = vmatpush.bf16.msra.mxu0 %v1786
        %1823 = vmatpush.bf16.msra.mxu0 %v1785
        %1824 = vmatpush.bf16.msra.mxu0 %v1784
        %1825 = vmatpush.bf16.msra.mxu0 %v1783
        %1826 = vmatpush.bf16.msra.mxu0 %v1782
        %1827 = vmatmul.bf16.gmra.mxu0 %v1673
        %v1828 = vpop.f32.mrf.mxu0
        %v1829 = vadd.f32 %v1816, %v1828
        %v1830 = vpop.f32.mrf.mxu0
        %1831 = vdwg.mxu0
        %v1833 = vrot.slane %v1829, 1
        %v1836 = vadd.f32 %v1514, %v1829
        %v1837 = vadd.f32 %v1515, %v1833
        %v1838 = vld [vmem:[%s18] sm:$0x1]
        %v1839 = vld [vmem:[%s19] sm:$0x1]
        %v1842 = vrot.slane %v1837, 7
        %v1843 = vsel %vm1155, %v1842, %v1836
        %v1845 = vsel %vm1460, %v1843, 0.0
        %1846 = vadd.xlane.f32.xlu0 %v1845
        %v1847 = vpop.xlane.xlu0 %1846
        %v1848 = vmul.f32 %v1847, %v1470
        %v1850 = vrot.slane %v1848, 1
        %v1853 = vsub.f32 %v1836, %v1848
        %v1854 = vsub.f32 %v1837, %v1850
        %v1855 = vmul.f32 %v1853, %v1853
        %v1856 = vmul.f32 %v1854, %v1854
        %v1859 = vrot.slane %v1856, 7
        %v1860 = vsel %vm1155, %v1859, %v1855
        %v1862 = vsel %vm1460, %v1860, 0.0
        %1863 = vadd.xlane.f32.xlu0 %v1862
        %v1864 = vpop.xlane.xlu0 %1863
        %v1865 = vmul.f32 %v1864, %v1470
        %v1866 = vadd.f32 %v1865, 1e-12
        %v1867 = vrsqrt.pop %v1866
        %v1868 = vmul.f32 %v1867, %v1866
        %v1869 = vmul.f32 %v1868, %v1867
        %v1870 = vmul.f32 0.5, %v1869
        %v1871 = vsub.f32 1.5, %v1870
        %v1872 = vmul.f32 %v1867, %v1871
        %vm1873 = vweird.f32 %v1866
        %vm1874 = vweird.f32 %v1867
        %vm1875 = vmor %vm1873, %vm1874
        %v1876 = vsel %vm1875, %v1867, %v1872
        %v1878 = vrot.slane %v1876, 1
        %v1881 = vmul.f32 %v1853, %v1876
        %v1882 = vmul.f32 %v1854, %v1878
        %v1884 = vperm.slane %v1838, 0
        %v1886 = vmul.f32 %v1881, %v1884
        %v1887 = vmul.f32 %v1882, %v1884
        %v1889 = vperm.slane %v1839, 0
        %v1891 = vadd.f32 %v1886, %v1889
        %v1892 = vadd.f32 %v1887, %v1889
        %v1895 = vrot.slane %v1892, 7
        %v1896 = vsel %vm1155, %v1895, %v1891
        %v1898 = vsel %vm1460, %v1896, 0.0
        %1899 = vadd.xlane.f32.xlu0 %v1898
        %v1900 = vpop.xlane.xlu0 %1899
        %v1901 = vmul.f32 %v1900, %v1470
        %v1903 = vrot.slane %v1901, 1
        %v1906 = vsub.f32 %v1891, %v1901
        %v1907 = vsub.f32 %v1892, %v1903
        %v1908 = vmul.f32 %v1906, %v1906
        %v1909 = vmul.f32 %v1907, %v1907
        %v1912 = vrot.slane %v1909, 7
        %v1913 = vsel %vm1155, %v1912, %v1908
        %v1915 = vsel %vm1460, %v1913, 0.0
        %1916 = vadd.xlane.f32.xlu0 %v1915
        %v1917 = vpop.xlane.xlu0 %1916
        %v1918 = vmul.f32 %v1917, %v1470
        %v1919 = vadd.f32 %v1918, 1e-12
        %v1920 = vrsqrt.pop %v1919
        %v1921 = vmul.f32 %v1920, %v1919
        %v1922 = vmul.f32 %v1921, %v1920
        %v1923 = vmul.f32 0.5, %v1922
        %v1924 = vsub.f32 1.5, %v1923
        %v1925 = vmul.f32 %v1920, %v1924
        %vm1926 = vweird.f32 %v1919
        %vm1927 = vweird.f32 %v1920
        %vm1928 = vmor %vm1926, %vm1927
        %v1929 = vsel %vm1928, %v1920, %v1925
        %v1931 = vrot.slane %v1929, 1
        %v1934 = vmul.f32 %v1906, %v1929
        %v1935 = vmul.f32 %v1907, %v1931
        %v1936 = vpack.c.bf16 %v1934, %v1934
        %v1937 = vpack.c.bf16 %v1935, %v1935
        %v1938 = vld [vmem:[#allocation20] sm:$0xf]
        %v1939 = vld [vmem:[#allocation20 + $0x4] sm:$0xf]
        %v1940 = vld [vmem:[#allocation20 + $0x8] sm:$0xf]
        %v1941 = vld [vmem:[#allocation20 + $0xc] sm:$0xf]
        %v1942 = vld [vmem:[#allocation20 + $0x10] sm:$0xf]
        %v1943 = vld [vmem:[#allocation20 + $0x14] sm:$0xf]
        %v1944 = vld [vmem:[#allocation20 + $0x18] sm:$0xf]
        %v1945 = vld [vmem:[#allocation20 + $0x1c] sm:$0xf]
        %v1946 = vld [vmem:[#allocation20 + $0x20] sm:$0xf]
        %v1947 = vld [vmem:[#allocation20 + $0x24] sm:$0xf]
        %v1948 = vld [vmem:[#allocation20 + $0x28] sm:$0xf]
        %v1949 = vld [vmem:[#allocation20 + $0x2c] sm:$0xf]
        %v1950 = vld [vmem:[#allocation20 + $0x30] sm:$0xf]
        %v1951 = vld [vmem:[#allocation20 + $0x34] sm:$0xf]
        %v1952 = vld [vmem:[#allocation20 + $0x38] sm:$0xf]
        %v1953 = vld [vmem:[#allocation20 + $0x3c] sm:$0xf]
        %v1954 = vld [vmem:[%s21] sm:$0x1]
        %v1956 = vperm.slane %v1954, 0
        %v1960 = vunpack.c.l.b16 %v1936
        %v1961 = vunpack.c.l.b16 %v1937
        %v1962 = vrot.slane %v1961, 7
        %v1963 = vsel %vm1155, %v1962, %v1960
        %v1964 = vpack.c.b16 %v1963, %v1963
        %v1982 = vunpack.c.l.b16 %v1938
        %v1983 = vunpack.c.l.b16 %v1939
        %v1984 = vunpack.c.l.b16 %v1940
        %v1985 = vunpack.c.l.b16 %v1941
        %v1986 = vunpack.c.l.b16 %v1942
        %v1987 = vunpack.c.l.b16 %v1943
        %v1988 = vunpack.c.l.b16 %v1944
        %v1989 = vunpack.c.l.b16 %v1945
        %v1990 = vunpack.c.l.b16 %v1946
        %v1991 = vunpack.c.l.b16 %v1947
        %v1992 = vunpack.c.l.b16 %v1948
        %v1993 = vunpack.c.l.b16 %v1949
        %v1994 = vunpack.c.l.b16 %v1950
        %v1995 = vunpack.c.l.b16 %v1951
        %v1996 = vunpack.c.l.b16 %v1952
        %v1997 = vunpack.c.l.b16 %v1953
        %v1998 = vpack.c.b16 %v1983, %v1982
        %v1999 = vpack.c.b16 %v1985, %v1984
        %v2000 = vpack.c.b16 %v1987, %v1986
        %v2001 = vpack.c.b16 %v1989, %v1988
        %v2002 = vpack.c.b16 %v1991, %v1990
        %v2003 = vpack.c.b16 %v1993, %v1992
        %v2004 = vpack.c.b16 %v1995, %v1994
        %v2005 = vpack.c.b16 %v1997, %v1996
        %2014 = vmatpush.bf16.msra.mxu0 %v2005
        %2015 = vmatpush.bf16.msra.mxu0 %v2004
        %2016 = vmatpush.bf16.msra.mxu0 %v2003
        %2017 = vmatpush.bf16.msra.mxu0 %v2002
        %2018 = vmatpush.bf16.msra.mxu0 %v2001
        %2019 = vmatpush.bf16.msra.mxu0 %v2000
        %2020 = vmatpush.bf16.msra.mxu0 %v1999
        %2021 = vmatpush.bf16.msra.mxu0 %v1998
        %2022 = vmatmul.bf16.gmra.mxu0 %v1964
        %v2023 = vpop.f32.mrf.mxu0
        %v2024 = vadd.f32 %v1956, %v2023
        %v2025 = vpop.f32.mrf.mxu0
        %2026 = vdwg.mxu0
        %v2027 = vmul.f32 %v2024, 0.5
        %v2028 = vmul.f32 %v2024, 0.70710677
        %vm2029 = vcmp.ge.f32.partialorder %v2028, 0.0
        %v2030 = vsel %vm2029, 1.0, -1.0
        %v2031 = vand.u32 2147483647, %v2028
        %v2032 = vmul.f32 %v2031, 0.3275911
        %v2033 = vadd.f32 %v2032, 1.0
        %v2034 = vrcp.pop %v2033
        %v2035 = vmul.f32 %v2033, %v2034
        %v2036 = vsub.f32 1.0, %v2035
        %v2037 = vmul.f32 %v2034, %v2036
        %v2038 = vadd.f32 %v2034, %v2037
        %vm2039 = vweird.f32 %v2033
        %vm2040 = vweird.f32 %v2034
        %vm2041 = vmor %vm2039, %vm2040
        %v2042 = vsel %vm2041, %v2034, %v2038
        %v2043 = vand.u32 2147483647, %v2033
        %vm2044 = vcmp.eq.f32.partialorder %v2043, 8.507059e+37
        %v2045 = vand.u32 %v2033, 2147483648
        %v2046 = vor.u32 1.1754944e-38, %v2045
        %v2047 = vsel %vm2044, %v2046, %v2042
        %v2048 = vmul.f32 1.0, %v2047
        %v2049 = vmul.f32 %v2048, 1.0614054
        %v2050 = vadd.f32 %v2049, -1.4531521
        %v2051 = vmul.f32 %v2050, %v2048
        %v2052 = vadd.f32 %v2051, 1.4214138
        %v2053 = vmul.f32 %v2052, %v2048
        %v2054 = vadd.f32 %v2053, -0.28449672
        %v2055 = vmul.f32 %v2054, %v2048
        %v2056 = vadd.f32 %v2055, 0.2548296
        %v2057 = vmul.f32 %v2056, %v2048
        %v2058 = vsub.f32 0.0, %v2031
        %v2059 = vmul.f32 %v2058, %v2031
        %v2060 = vmul.f32 %v2059, 1.442695
        %v2061 = vpow.pop %v2060
        %v2062 = vmul.f32 %v2057, %v2061
        %v2063 = vsub.f32 1.0, %v2062
        %v2064 = vmul.f32 %v2030, %v2063
        %v2065 = vadd.f32 %v2064, 1.0
        %v2066 = vmul.f32 %v2027, %v2065
        %v2067 = vsel %vm1460, %v2066, 0.0
        %2068 = vadd.xlane.f32.xlu0 %v2067
        %v2069 = vpop.xlane.xlu0 %2068
        %v2070 = vmul.f32 %v2069, %v1470
        %v2071 = vsub.f32 %v2066, %v2070
        %v2072 = vmul.f32 %v2071, %v2071
        %v2073 = vsel %vm1460, %v2072, 0.0
        %2074 = vadd.xlane.f32.xlu0 %v2073
        %v2075 = vpop.xlane.xlu0 %2074
        %v2076 = vmul.f32 %v2075, %v1470
        %v2077 = vadd.f32 %v2076, 1e-12
        %v2078 = vrsqrt.pop %v2077
        %v2079 = vmul.f32 %v2078, %v2077
        %v2080 = vmul.f32 %v2079, %v2078
        %v2081 = vmul.f32 0.5, %v2080
        %v2082 = vsub.f32 1.5, %v2081
        %v2083 = vmul.f32 %v2078, %v2082
        %vm2084 = vweird.f32 %v2077
        %vm2085 = vweird.f32 %v2078
        %vm2086 = vmor %vm2084, %vm2085
        %v2087 = vsel %vm2086, %v2078, %v2083
        %v2088 = vmul.f32 %v2071, %v2087
        %v2089 = vpack.c.bf16 %v2088, %v2088
        %v2090 = vld [vmem:[#allocation21] sm:$0xf]
        %v2091 = vld [vmem:[#allocation21 + $0x4] sm:$0xf]
        %v2092 = vld [vmem:[#allocation21 + $0x8] sm:$0xf]
        %v2093 = vld [vmem:[#allocation21 + $0xc] sm:$0xf]
        %v2094 = vld [vmem:[#allocation21 + $0x10] sm:$0xf]
        %v2095 = vld [vmem:[#allocation21 + $0x14] sm:$0xf]
        %v2096 = vld [vmem:[#allocation21 + $0x18] sm:$0xf]
        %v2097 = vld [vmem:[#allocation21 + $0x1c] sm:$0xf]
        %v2098 = vld [vmem:[#allocation21 + $0x20] sm:$0xf]
        %v2099 = vld [vmem:[#allocation21 + $0x24] sm:$0xf]
        %v2100 = vld [vmem:[#allocation21 + $0x28] sm:$0xf]
        %v2101 = vld [vmem:[#allocation21 + $0x2c] sm:$0xf]
        %v2102 = vld [vmem:[#allocation21 + $0x30] sm:$0xf]
        %v2103 = vld [vmem:[#allocation21 + $0x34] sm:$0xf]
        %v2104 = vld [vmem:[#allocation21 + $0x38] sm:$0xf]
        %v2105 = vld [vmem:[#allocation21 + $0x3c] sm:$0xf]
        %v2106 = vld [vmem:[%s23] sm:$0x1]
        %v2108 = vperm.slane %v2106, 0
        %v2126 = vunpack.c.l.b16 %v2090
        %v2127 = vunpack.c.l.b16 %v2091
        %v2128 = vunpack.c.l.b16 %v2092
        %v2129 = vunpack.c.l.b16 %v2093
        %v2130 = vunpack.c.l.b16 %v2094
        %v2131 = vunpack.c.l.b16 %v2095
        %v2132 = vunpack.c.l.b16 %v2096
        %v2133 = vunpack.c.l.b16 %v2097
        %v2134 = vunpack.c.l.b16 %v2098
        %v2135 = vunpack.c.l.b16 %v2099
        %v2136 = vunpack.c.l.b16 %v2100
        %v2137 = vunpack.c.l.b16 %v2101
        %v2138 = vunpack.c.l.b16 %v2102
        %v2139 = vunpack.c.l.b16 %v2103
        %v2140 = vunpack.c.l.b16 %v2104
        %v2141 = vunpack.c.l.b16 %v2105
        %v2142 = vpack.c.b16 %v2127, %v2126
        %v2143 = vpack.c.b16 %v2129, %v2128
        %v2144 = vpack.c.b16 %v2131, %v2130
        %v2145 = vpack.c.b16 %v2133, %v2132
        %v2146 = vpack.c.b16 %v2135, %v2134
        %v2147 = vpack.c.b16 %v2137, %v2136
        %v2148 = vpack.c.b16 %v2139, %v2138
        %v2149 = vpack.c.b16 %v2141, %v2140
        %2158 = vmatpush.bf16.msra.mxu0 %v2149
        %2159 = vmatpush.bf16.msra.mxu0 %v2148
        %2160 = vmatpush.bf16.msra.mxu0 %v2147
        %2161 = vmatpush.bf16.msra.mxu0 %v2146
        %2162 = vmatpush.bf16.msra.mxu0 %v2145
        %2163 = vmatpush.bf16.msra.mxu0 %v2144
        %2164 = vmatpush.bf16.msra.mxu0 %v2143
        %2165 = vmatpush.bf16.msra.mxu0 %v2142
        %2166 = vmatmul.bf16.gmra.mxu0 %v2089
        %v2167 = vpop.f32.mrf.mxu0
        %v2168 = vadd.f32 %v2108, %v2167
        %v2169 = vpop.f32.mrf.mxu0
        %2170 = vdwg.mxu0
        %v2172 = vrot.slane %v2168, 1
        %2174 = vst [vmem:[%s859] sm:$0x1] %v2168
        %2175 = vst [vmem:[%s859 + $0x1] sm:$0x1] %v2172
        %s2176 = sand.u32 %s529, 1
        %s2177 = scalar_lea.sflag [#allocation8], %s2176
        %s2178 = sand.u32 %s529, 1
        %s2179 = smul.addr %s2178, 2
        %s2180 = scalar_lea.vmem [#allocation23], %s2179
        // Predicated region
        $region175: #{tpu_custom_call.1} parent=107 // pred_check
          %p2181 = pneg %p539
        $region176: #{tpu_custom_call.1} parent=107 // pred_check_branch
          %2183 = sbr.rel (%p2181) target = $region178
        $region177: #{tpu_custom_call.1} parent=107 // pred_region
          %s2184 = smul.u32 2, %s54
          %2186 = vsyncadd %s2177, 0
          %s2187 = scalar_lea.hbm %s24, %s2184
          %s2188 = sshll.u32 %s2180, 4
          %s2189 = int_to_ptr.vmem [resolvable:$true] %s2188
          %s2190 = sshll.u32 %s2187, 4
          %s2191 = int_to_ptr.hbm [resolvable:$true] %s2190
          %2196 = dma.vmem_to_hbm [thread:$0]  %s2189, 32, %s2191, %s2177, 16, 16, 1
        $region178: #{tpu_custom_call.1} parent=107 // pred_fallthru
          _
      $region108: #{tpu_custom_call.1} parent=5 // pred_fallthru
        _
      %p2197 = scmp.le.s32.totalorder 2, %s49
      // Predicated region
      $region179: #{tpu_custom_call.1} parent=5 // pred_check
        %p2198 = pneg %p2197
      $region180: #{tpu_custom_call.1} parent=5 // pred_check_branch
        %2200 = sbr.rel (%p2198) target = $region182
      $region181: #{tpu_custom_call.1} parent=5 // pred_region
        %s2201 = ssub.s32 %s49, 2
        // Predicated region
        $region183: #{tpu_custom_call.1} parent=181 // pred_check
          %p2202 = pneg %p545
        $region184: #{tpu_custom_call.1} parent=181 // pred_check_branch
          %2204 = sbr.rel (%p2202) target = $region186
        $region185: #{tpu_custom_call.1} parent=181 // pred_region
          %s2205 = sand.u32 %s530, 1
          %s2206 = scalar_lea.sflag [#allocation8], %s2205
          %s2207 = sand.u32 %s530, 1
          %s2208 = smul.addr %s2207, 2
          %s2209 = scalar_lea.vmem [#allocation23], %s2208
          %2211 = dma.done %s2206, 32
        $region186: #{tpu_custom_call.1} parent=181 // pred_fallthru
          _
      $region182: #{tpu_custom_call.1} parent=5 // pred_fallthru
        _
    $region6: #{tpu_custom_call.1} parent=1 // loop_footer
      %s53 = sadd.s32 1, %s49
    $region7: #{tpu_custom_call.1} parent=1 // loop_footer_branch
      %48 = sbr.rel target = $region3
    $region8: #{tpu_custom_call.1} parent=1 // loop_exit
      _
    %2212 = vsyncpa [#allocation7], 1
    %s2213 = scalar_lea.sflag [#allocation7], 1
    %2214 = vsyncpa %s2213, 1
    %2215 = vsyncpa [#allocation10], 1
    %s2216 = scalar_lea.sflag [#allocation10], 1
    %2217 = vsyncpa %s2216, 1
    %2218 = vsyncpa [#allocation13], 1
    %2219 = vsyncpa [#allocation16], 1
    %2220 = vsyncpa [#allocation19], 1
    %2221 = vsyncpa [#allocation22], 1
    %2222 = vsyncpa [#allocation8], 1
    %s2223 = scalar_lea.sflag [#allocation8], 1
    %2224 = vsyncpa %s2223, 1
  %2225 = vsyncmov [#allocation3]
  %s2226 = vpop.sfrf %2225
  %p2227 = scmp.eq.s32.totalorder %s2226, 0
  %p2228 = pneg %p2227
  %2230 = shalt.err (%p2228)
  %s2231 = scalar_lea.sflag [#allocation3], 1
  %2232 = vsyncmov %s2231
  %s2233 = vpop.sfrf %2232
  %p2234 = scmp.eq.s32.totalorder %s2233, 0
  %p2235 = pneg %p2234
  %2237 = shalt.err (%p2235)
  %s2238 = scalar_lea.sflag [#allocation3], 2
  %2239 = vsyncmov %s2238
  %s2240 = vpop.sfrf %2239
  %p2241 = scmp.eq.s32.totalorder %s2240, 0
  %p2242 = pneg %p2241
  %2244 = shalt.err (%p2242)
  %s2245 = scalar_lea.sflag [#allocation3], 3
  %2246 = vsyncmov %s2245
  %s2247 = vpop.sfrf %2246
  %p2248 = scmp.eq.s32.totalorder %s2247, 0
  %p2249 = pneg %p2248
  %2251 = shalt.err (%p2249)
  %s2252 = scalar_lea.sflag [#allocation3], 4
  %2253 = vsyncmov %s2252
  %s2254 = vpop.sfrf %2253
  %p2255 = scmp.eq.s32.totalorder %s2254, 0
  %p2256 = pneg %p2255
  %2258 = shalt.err (%p2256)
  %s2259 = scalar_lea.sflag [#allocation3], 5
  %2260 = vsyncmov %s2259
  %s2261 = vpop.sfrf %2260
  %p2262 = scmp.eq.s32.totalorder %s2261, 0
  %p2263 = pneg %p2262
  %2265 = shalt.err (%p2263)
  %s2266 = scalar_lea.sflag [#allocation3], 6
  %2267 = vsyncmov %s2266
  %s2268 = vpop.sfrf %2267
  %p2269 = scmp.eq.s32.totalorder %s2268, 0
  %p2270 = pneg %p2269
  %2272 = shalt.err (%p2270)
  %s2273 = scalar_lea.sflag [#allocation3], 7
  %2274 = vsyncmov %s2273
  %s2275 = vpop.sfrf %2274
  %p2276 = scmp.eq.s32.totalorder %s2275, 0
  %p2277 = pneg %p2276
  %2279 = shalt.err (%p2277)

</llo_original>
